<compile_context>
chip_gen: v5e
topology: v5e:2x2
jax: 0.10.0
libtpu: 0.0.40
codegen_flags: <defaults>
</compile_context>

<pallas_src>
import jax
import jax.numpy as jnp
from jax.experimental import pallas as pl
from jax.experimental.pallas import tpu as pltpu


def _round_up(x, m):
    return (x + m - 1) // m * m


def _num_tensorcores_per_chip():
    """Best-effort: 2 TCs per chip on v7x, 1 on v5e/v6e. Fail-safe to 1."""
    try:
        kind = jax.devices()[0].device_kind.lower()
    except Exception:
        return 1
    return 2 if "v7" in kind else 1


# ----------------------------------------------------------------------------
# Fused LSTM layer kernel.
# grid = (batch tiles [parallel], time chunks [arbitrary]).
# Per chunk:
#   1. gates_x = x_chunk @ W_ih + b  (one big MXU matmul into VMEM scratch)
#   2. fori_loop over timesteps: gates = gates_x[t] + h @ W_hh; activations
#      via a single tanh pass (sigmoid lanes use 0.5*tanh(0.5x)+0.5);
#      h/c persist in VMEM scratch across chunks.
# PyTorch gate order: i, f, g, o.
# NOTE: the h/c scratch carry relies on the time axis being the innermost grid
# axis with re-init at program_id(1)==0; do not reorder the grid or mark the
# time axis parallel.
# ----------------------------------------------------------------------------
def _lstm_layer_kernel(x_ref, wih_ref, whh_ref, b_ref, out_ref,
                       gx_sc, h_sc, c_sc):
    @pl.when(pl.program_id(1) == 0)
    def _():
        h_sc[...] = jnp.zeros_like(h_sc)
        c_sc[...] = jnp.zeros_like(c_sc)

    TC, BB, D = x_ref.shape
    H = h_sc.shape[1]
    G = 4 * H

    wih = wih_ref[...]                                   # (D, 4H) bf16
    whh = whh_ref[...]                                   # (H, 4H) bf16
    b = b_ref[...]                                       # (1, 4H) f32

    # --- fused input projection for the whole chunk (hoisted out of the loop)
    x2d = x_ref[...].reshape(TC * BB, D).astype(wih.dtype)
    gx_sc[...] = (jnp.dot(x2d, wih, preferred_element_type=jnp.float32)
                  + b).reshape(TC, BB, G)

    # --- per-lane activation constants, built once per chunk at full (BB, G).
    # sigmoid(x) = 0.5*tanh(0.5*x) + 0.5 ; tanh ("g") lanes: scale=1, offset=0.
    col = jax.lax.broadcasted_iota(jnp.int32, (BB, G), 1)
    is_g = jnp.logical_and(col >= 2 * H, col < 3 * H)
    scale = jnp.where(is_g, jnp.float32(1.0), jnp.float32(0.5))
    offset = jnp.where(is_g, jnp.float32(0.0), jnp.float32(0.5))

    def step(t, carry):
        h, c = carry
        gates = gx_sc[t] + jnp.dot(h.astype(whh.dtype), whh,
                                   preferred_element_type=jnp.float32)
        # Single tanh over all 4H lanes (EUP), then cheap VPU scale/offset.
        acts = jnp.tanh(gates * scale) * scale + offset
        i = acts[:, 0:H]
        f = acts[:, H:2 * H]
        g = acts[:, 2 * H:3 * H]
        o = acts[:, 3 * H:4 * H]
        c_new = f * c + i * g
        h_new = o * jnp.tanh(c_new)
        out_ref[t] = h_new.astype(out_ref.dtype)          # chunk is DMA'd once
        return h_new, c_new

    unroll = TC if TC <= 16 else 8                         # partial unroll
    h_fin, c_fin = jax.lax.fori_loop(0, TC, step, (h_sc[...], c_sc[...]),
                                     unroll=unroll)
    h_sc[...] = h_fin
    c_sc[...] = c_fin


def lstm_layer(x_tm, w_ih, w_hh, b, *, time_block=None, batch_block=None):
    """x_tm: (T, B, D) bf16 time-major; w_ih: (D,4H) bf16; w_hh: (H,4H) bf16;
    b: (1,4H) f32  ->  (T, B, H) bf16."""
    T, B, D = x_tm.shape
    H = w_hh.shape[0]
    G = 4 * H

    if batch_block is None:
        # Split batch tiles only when a second TensorCore exists and both
        # halves stay bf16-sublane aligned (multiple of 16).
        if _num_tensorcores_per_chip() >= 2 and B % 32 == 0:
            batch_block = B // 2
        else:
            batch_block = B

    if time_block is None:
        # Budget the resident chunk so it also fits v7x's 64 MiB VMEM:
        # double-buffered bf16 in/out chunks + f32 gates scratch + weights.
        weight_bytes = 2 * 2 * (D + H) * G + 4 * G         # double-buffered bf16 + bias
        chunk_budget = max(2 * 1024 * 1024, 24 * 1024 * 1024 - weight_bytes)
        bytes_per_step = batch_block * (2 * 2 * D + 2 * 2 * H + 4 * G)
        time_block = max(1, min(T, chunk_budget // max(1, bytes_per_step)))

    T_pad = _round_up(T, time_block)
    if T_pad != T:
        # Pad time with zeros (extra trailing steps are computed and discarded).
        x_tm = jnp.pad(x_tm, ((0, T_pad - T), (0, 0), (0, 0)))

    out = pl.pallas_call(
        _lstm_layer_kernel,
        out_shape=jax.ShapeDtypeStruct((T_pad, B, H), jnp.bfloat16),
        grid_spec=pltpu.PrefetchScalarGridSpec(
            num_scalar_prefetch=0,
            grid=(B // batch_block, T_pad // time_block),
            in_specs=[
                pl.BlockSpec((time_block, batch_block, D),
                             lambda bi, ci: (ci, bi, 0)),
                pl.BlockSpec((D, G), lambda bi, ci: (0, 0)),   # constant block
                pl.BlockSpec((H, G), lambda bi, ci: (0, 0)),   # constant block
                pl.BlockSpec((1, G), lambda bi, ci: (0, 0)),   # constant block
            ],
            out_specs=pl.BlockSpec((time_block, batch_block, H),
                                   lambda bi, ci: (ci, bi, 0)),
            scratch_shapes=[
                pltpu.VMEM((time_block, batch_block, G), jnp.float32),  # gates
                pltpu.VMEM((batch_block, H), jnp.float32),              # h carry
                pltpu.VMEM((batch_block, H), jnp.float32),              # c carry
            ],
        ),
        # Batch tiles are independent (megacore-shardable); the time axis must
        # stay sequential because h/c persist in scratch across it.
        compiler_params=pltpu.CompilerParams(
            dimension_semantics=("parallel", "arbitrary"),
            vmem_limit_bytes=32 * 1024 * 1024),
    )(x_tm, w_ih, w_hh, b)
    return out[:T] if T_pad != T else out


# ----------------------------------------------------------------------------
# Head kernel (row-tiled): linear -> sigmoid -> MCM hierarchy constraint
#   final[n, j] = max_k R[j, k] * sigmoid(h[n] @ W + b)[k]
# ----------------------------------------------------------------------------
def _head_kernel(h_ref, w_ref, b_ref, r_ref, out_ref):
    w = w_ref[...]                                        # (H, O) bf16
    h = h_ref[...].astype(w.dtype)
    logits = jnp.dot(h, w, preferred_element_type=jnp.float32) + b_ref[...]
    p = jax.nn.sigmoid(logits)                            # (rows, O) f32
    r = r_ref[...]                                        # (O, O) f32
    out_ref[...] = jnp.max(r[None, :, :] * p[:, None, :], axis=2)


def head(h_rows, w, b, R, *, row_block=None):
    """h_rows: (N, H) bf16; w: (H, O) bf16; b: (1, O) f32; R: (O, O) f32."""
    N, H = h_rows.shape
    O = w.shape[1]
    if row_block is None:
        # Cap rows so the (row_block, O, O) f32 broadcast intermediate stays
        # within ~64 KiB of the vreg file (avoids spill); keep bf16 alignment.
        cap = max(16, ((64 * 1024) // max(1, O * O * 4)) // 16 * 16)
        row_block = min(512, cap)
    N_pad = _round_up(N, row_block)
    if N_pad != N:
        h_rows = jnp.pad(h_rows, ((0, N_pad - N), (0, 0)))
    out = pl.pallas_call(
        _head_kernel,
        out_shape=jax.ShapeDtypeStruct((N_pad, O), jnp.float32),
        grid_spec=pltpu.PrefetchScalarGridSpec(
            num_scalar_prefetch=0,
            grid=(N_pad // row_block,),
            in_specs=[
                pl.BlockSpec((row_block, H), lambda i: (i, 0)),
                pl.BlockSpec((H, O), lambda i: (0, 0)),
                pl.BlockSpec((1, O), lambda i: (0, 0)),
                pl.BlockSpec((O, O), lambda i: (0, 0)),
            ],
            out_specs=pl.BlockSpec((row_block, O), lambda i: (i, 0)),
        ),
        compiler_params=pltpu.CompilerParams(
            dimension_semantics=("parallel",)),
    )(h_rows, w, b, R)
    return out[:N] if N_pad != N else out


# ----------------------------------------------------------------------------
# Full model forward (eval mode, matching LSTMModel.forward with training=False)
# ----------------------------------------------------------------------------
def lstm_model_forward(x, params, R):
    """x: (B, T, input_size), batch_first as in PyTorch. Returns (B, T, O) f32."""
    B, T, _ = x.shape
    B_pad = _round_up(B, 16)                  # bf16 sublane packing (16 rows/vreg)
    x = x.astype(jnp.bfloat16)                # matmul operands are bf16 anyway
    if B_pad != B:
        x = jnp.pad(x, ((0, B_pad - B), (0, 0), (0, 0)))
    # One transpose of the (small) raw input to time-major; all intermediate
    # activations stay time-major bf16 (no per-layer transposes, no gates_x
    # HBM round-trip — the projection is fused into the recurrence kernel).
    h = jnp.transpose(x, (1, 0, 2))           # (T, B_pad, D) bf16
    for layer in params["lstm"]:
        h = lstm_layer(h, layer["w_ih"], layer["w_hh"], layer["b"])
    # Head rows are order-independent; feed time-major rows directly.
    out = head(h.reshape(T * B_pad, -1),
               params["w_lin"], params["b_lin"], R)        # (T*B_pad, O) f32
    out = out.reshape(T, B_pad, -1)[:, :B, :]
    return jnp.transpose(out, (1, 0, 2)).astype(jnp.float32)   # (B, T, O)


# ----------------------------------------------------------------------------
# Deterministic parameter init (PyTorch nn.LSTM / nn.Linear shapes & init
# range).  Matmul weights stored in bf16 (f32 accumulation in the kernels).
# ----------------------------------------------------------------------------
def init_params(key, input_size, hidden_size, output_size, num_layers):
    k = 1.0 / jnp.sqrt(hidden_size)
    params = {"lstm": []}
    for layer in range(num_layers):
        in_dim = input_size if layer == 0 else hidden_size
        key, k1, k2, k3, k4 = jax.random.split(key, 5)
        w_ih = jax.random.uniform(k1, (4 * hidden_size, in_dim), minval=-k, maxval=k)
        w_hh = jax.random.uniform(k2, (4 * hidden_size, hidden_size), minval=-k, maxval=k)
        b_ih = jax.random.uniform(k3, (4 * hidden_size,), minval=-k, maxval=k)
        b_hh = jax.random.uniform(k4, (4 * hidden_size,), minval=-k, maxval=k)
        params["lstm"].append({
            "w_ih": w_ih.T.astype(jnp.bfloat16),                       # (in_dim, 4H)
            "w_hh": w_hh.T.astype(jnp.bfloat16),                       # (H, 4H)
            "b": (b_ih + b_hh).reshape(1, -1).astype(jnp.float32),     # (1, 4H)
        })
    key, k5, k6 = jax.random.split(key, 3)
    w_lin = jax.random.uniform(k5, (output_size, hidden_size), minval=-k, maxval=k)
    b_lin = jax.random.uniform(k6, (output_size,), minval=-k, maxval=k)
    params["w_lin"] = w_lin.T.astype(jnp.bfloat16)                     # (H, O)
    params["b_lin"] = b_lin.reshape(1, -1).astype(jnp.float32)         # (1, O)
    return params


# ----------------------------------------------------------------------------
# Pure-JAX f32 reference (same bf16-rounded weight values, f32 compute)
# ----------------------------------------------------------------------------
def reference_forward(x, params, R):
    B, T, _ = x.shape
    h_seq = x.astype(jnp.float32)
    for layer in params["lstm"]:
        w_ih = layer["w_ih"].astype(jnp.float32)
        w_hh = layer["w_hh"].astype(jnp.float32)
        b = layer["b"]
        H = w_hh.shape[0]

        def step(carry, x_t, w_ih=w_ih, w_hh=w_hh, b=b, H=H):
            h, c = carry
            gates = x_t @ w_ih + h @ w_hh + b
            i = jax.nn.sigmoid(gates[:, :H])
            f = jax.nn.sigmoid(gates[:, H:2 * H])
            g = jnp.tanh(gates[:, 2 * H:3 * H])
            o = jax.nn.sigmoid(gates[:, 3 * H:])
            c = f * c + i * g
            h = o * jnp.tanh(c)
            return (h, c), h

        init = (jnp.zeros((B, H), jnp.float32), jnp.zeros((B, H), jnp.float32))
        _, h_tm = jax.lax.scan(step, init, jnp.transpose(h_seq, (1, 0, 2)))
        h_seq = jnp.transpose(h_tm, (1, 0, 2))
    w_lin = params["w_lin"].astype(jnp.float32)
    p = jax.nn.sigmoid(h_seq.reshape(B * T, -1) @ w_lin + params["b_lin"])
    final = jnp.max(R[None, :, :] * p[:, None, :], axis=2)
    return final.reshape(B, T, -1)


if __name__ == "__main__":
    input_size, hidden_size, output_size, num_layers = 8, 32, 16, 2
    B, T = 2, 8

    key = jax.random.PRNGKey(0)
    key, kx, kr, kp = jax.random.split(key, 4)
    x = jax.random.normal(kx, (B, T, input_size), dtype=jnp.float32)
    # Deterministic hierarchy constraint matrix R (O, O): ancestry-style upper
    # triangular 0/1 mask with ones on the diagonal.
    rand = (jax.random.uniform(kr, (output_size, output_size)) > 0.7).astype(jnp.float32)
    R = jnp.clip(jnp.triu(rand) + jnp.eye(output_size, dtype=jnp.float32), 0.0, 1.0)
    params = init_params(kp, input_size, hidden_size, output_size, num_layers)

    fwd = jax.jit(lstm_model_forward)
    out = jax.block_until_ready(fwd(x, params, R))

    ref = reference_forward(x, params, R)
    assert out.shape == (B, T, output_size)
    if not jnp.allclose(out, ref, atol=1e-2, rtol=1e-2):
        raise AssertionError("Pallas output mismatch vs JAX reference")
    print("KERNEL_OK")
</pallas_src>

<mosaic_0001>
module attributes {stable_mosaic.version = 11 : i64} {
  func.func @_lstm_layer_kernel(%arg0: i32, %arg1: i32, %arg2: memref<8x16x8xbf16, #tpu.memory_space<vmem>>, %arg3: memref<8x128xbf16, #tpu.memory_space<vmem>>, %arg4: memref<32x128xbf16, #tpu.memory_space<vmem>>, %arg5: memref<1x128xf32, #tpu.memory_space<vmem>>, %arg6: memref<8x16x32xbf16, #tpu.memory_space<vmem>>, %arg7: memref<8x16x128xf32, #tpu.memory_space<vmem>>, %arg8: memref<16x32xf32, #tpu.memory_space<vmem>>, %arg9: memref<16x32xf32, #tpu.memory_space<vmem>>) attributes {dimension_semantics = [#tpu.dimension_semantics<parallel>, #tpu.dimension_semantics<arbitrary>], iteration_bounds = array<i64: 1, 1>, scalar_prefetch = 0 : i64, scratch_operands = 3 : i64, tpu.core_type = #tpu.core_type<tc>, window_params = [{transform_indices = @transform_0, window_bounds = array<i64: 8, 16, 8>}, {pipeline_mode = #tpu.pipeline_mode<synchronous>, transform_indices = @transform_1, window_bounds = array<i64: 8, 128>}, {pipeline_mode = #tpu.pipeline_mode<synchronous>, transform_indices = @transform_2, window_bounds = array<i64: 32, 128>}, {pipeline_mode = #tpu.pipeline_mode<synchronous>, transform_indices = @transform_3, window_bounds = array<i64: 1, 128>}, {transform_indices = @transform_4, window_bounds = array<i64: 8, 16, 32>}]} {
    %c0_i32 = arith.constant 0 : i32
    %0 = arith.cmpi eq, %arg1, %c0_i32 : i32
    %1 = arith.extui %0 : i1 to i32
    %c0_i32_0 = arith.constant 0 : i32
    %2 = arith.cmpi ne, %1, %c0_i32_0 : i32
    scf.if %2 {
      %cst_65 = arith.constant 0.000000e+00 : f32
      %221 = vector.broadcast %cst_65 : f32 to vector<16x32xf32>
      %c0_66 = arith.constant 0 : index
      %c0_67 = arith.constant 0 : index
      %222 = vector.load %arg8[%c0_66, %c0_67] : memref<16x32xf32, #tpu.memory_space<vmem>>, vector<16x32xf32>
      tpu.vector_store %arg8[%c0_66, %c0_67], %221 {strides = array<i32>} : memref<16x32xf32, #tpu.memory_space<vmem>>, vector<16x32xf32>,
      %cst_68 = arith.constant 0.000000e+00 : f32
      %223 = vector.broadcast %cst_68 : f32 to vector<16x32xf32>
      %c0_69 = arith.constant 0 : index
      %c0_70 = arith.constant 0 : index
      %224 = vector.load %arg9[%c0_69, %c0_70] : memref<16x32xf32, #tpu.memory_space<vmem>>, vector<16x32xf32>
      tpu.vector_store %arg9[%c0_69, %c0_70], %223 {strides = array<i32>} : memref<16x32xf32, #tpu.memory_space<vmem>>, vector<16x32xf32>,
    } else {
    }
    %c0 = arith.constant 0 : index
    %c0_1 = arith.constant 0 : index
    %3 = vector.load %arg3[%c0, %c0_1] : memref<8x128xbf16, #tpu.memory_space<vmem>>, vector<8x128xbf16>
    %c0_2 = arith.constant 0 : index
    %c0_3 = arith.constant 0 : index
    %4 = vector.load %arg4[%c0_2, %c0_3] : memref<32x128xbf16, #tpu.memory_space<vmem>>, vector<32x128xbf16>
    %c0_4 = arith.constant 0 : index
    %c0_5 = arith.constant 0 : index
    %5 = vector.load %arg5[%c0_4, %c0_5] : memref<1x128xf32, #tpu.memory_space<vmem>>, vector<1x128xf32>
    %c0_6 = arith.constant 0 : index
    %c0_7 = arith.constant 0 : index
    %c0_8 = arith.constant 0 : index
    %6 = vector.load %arg2[%c0_6, %c0_7, %c0_8] : memref<8x16x8xbf16, #tpu.memory_space<vmem>>, vector<8x16x8xbf16>
    %7 = vector.shape_cast %6 : vector<8x16x8xbf16> to vector<128x8xbf16>
    %cst = arith.constant dense<0.000000e+00> : vector<128x128xf32>
    %8 = tpu.matmul %7, %3, %cst {dimension_numbers = #tpu.dot_dimension_numbers<[1], [0], [0], [1], [0, 0, 1, 1], [], []>} : vector<128x8xbf16>, vector<8x128xbf16>, vector<128x128xf32> -> vector<128x128xf32>
    %9 = vector.broadcast %5 : vector<1x128xf32> to vector<128x128xf32>
    %10 = arith.addf %8, %9 : vector<128x128xf32>
    %11 = vector.shape_cast %10 : vector<128x128xf32> to vector<8x16x128xf32>
    %c0_9 = arith.constant 0 : index
    %c0_10 = arith.constant 0 : index
    %c0_11 = arith.constant 0 : index
    %12 = vector.load %arg7[%c0_9, %c0_10, %c0_11] : memref<8x16x128xf32, #tpu.memory_space<vmem>>, vector<8x16x128xf32>
    tpu.vector_store %arg7[%c0_9, %c0_10, %c0_11], %11 {strides = array<i32>} : memref<8x16x128xf32, #tpu.memory_space<vmem>>, vector<8x16x128xf32>,
    %13 = tpu.iota {dimensions = array<i32: 1>} : vector<16x128xi32>
    %c64_i32 = arith.constant 64 : i32
    %14 = vector.broadcast %c64_i32 : i32 to vector<16x128xi32>
    %15 = arith.cmpi sge, %13, %14 : vector<16x128xi32>
    %c96_i32 = arith.constant 96 : i32
    %16 = vector.broadcast %c96_i32 : i32 to vector<16x128xi32>
    %17 = arith.cmpi slt, %13, %16 : vector<16x128xi32>
    %18 = arith.andi %15, %17 : vector<16x128xi1>
    %cst_12 = arith.constant 1.000000e+00 : f32
    %cst_13 = arith.constant 5.000000e-01 : f32
    %19 = vector.broadcast %cst_12 : f32 to vector<16x128xf32>
    %20 = vector.broadcast %cst_13 : f32 to vector<16x128xf32>
    %21 = arith.select %18, %19, %20 : vector<16x128xi1>, vector<16x128xf32>
    %cst_14 = arith.constant 0.000000e+00 : f32
    %cst_15 = arith.constant 5.000000e-01 : f32
    %22 = vector.broadcast %cst_14 : f32 to vector<16x128xf32>
    %23 = vector.broadcast %cst_15 : f32 to vector<16x128xf32>
    %24 = arith.select %18, %22, %23 : vector<16x128xi1>, vector<16x128xf32>
    %c0_16 = arith.constant 0 : index
    %c0_17 = arith.constant 0 : index
    %25 = vector.load %arg8[%c0_16, %c0_17] : memref<16x32xf32, #tpu.memory_space<vmem>>, vector<16x32xf32>
    %c0_18 = arith.constant 0 : index
    %c0_19 = arith.constant 0 : index
    %26 = vector.load %arg9[%c0_18, %c0_19] : memref<16x32xf32, #tpu.memory_space<vmem>>, vector<16x32xf32>
    %c0_i32_20 = arith.constant 0 : i32
    %27 = arith.index_cast %c0_i32_20 : i32 to index
    %c0_21 = arith.constant 0 : index
    %c0_22 = arith.constant 0 : index
    %28 = vector.load %arg7[%27, %c0_21, %c0_22] : memref<8x16x128xf32, #tpu.memory_space<vmem>>, vector<1x16x128xf32>
    %29 = vector.shape_cast %28 : vector<1x16x128xf32> to vector<16x128xf32>
    %30 = arith.truncf %25 : vector<16x32xf32> to vector<16x32xbf16>
    %cst_23 = arith.constant dense<0.000000e+00> : vector<16x128xf32>
    %31 = tpu.matmul %30, %4, %cst_23 {dimension_numbers = #tpu.dot_dimension_numbers<[1], [0], [0], [1], [0, 0, 1, 1], [], []>} : vector<16x32xbf16>, vector<32x128xbf16>, vector<16x128xf32> -> vector<16x128xf32>
    %32 = arith.addf %29, %31 : vector<16x128xf32>
    %33 = arith.mulf %32, %21 : vector<16x128xf32>
    %34 = math.tanh %33 : vector<16x128xf32>
    %35 = arith.mulf %34, %21 : vector<16x128xf32>
    %36 = arith.addf %35, %24 : vector<16x128xf32>
    %37 = vector.extract_strided_slice %36 {offsets = [0, 0], sizes = [16, 32], strides = [1, 1]} : vector<16x128xf32> to vector<16x32xf32>
    %38 = vector.extract_strided_slice %36 {offsets = [0, 32], sizes = [16, 32], strides = [1, 1]} : vector<16x128xf32> to vector<16x32xf32>
    %39 = vector.extract_strided_slice %36 {offsets = [0, 64], sizes = [16, 32], strides = [1, 1]} : vector<16x128xf32> to vector<16x32xf32>
    %40 = vector.extract_strided_slice %36 {offsets = [0, 96], sizes = [16, 32], strides = [1, 1]} : vector<16x128xf32> to vector<16x32xf32>
    %41 = arith.mulf %38, %26 : vector<16x32xf32>
    %42 = arith.mulf %37, %39 : vector<16x32xf32>
    %43 = arith.addf %41, %42 : vector<16x32xf32>
    %44 = math.tanh %43 : vector<16x32xf32>
    %45 = arith.mulf %40, %44 : vector<16x32xf32>
    %46 = arith.truncf %45 : vector<16x32xf32> to vector<16x32xbf16>
    %47 = arith.index_cast %c0_i32_20 : i32 to index
    %c0_24 = arith.constant 0 : index
    %c0_25 = arith.constant 0 : index
    %48 = vector.load %arg6[%47, %c0_24, %c0_25] : memref<8x16x32xbf16, #tpu.memory_space<vmem>>, vector<1x16x32xbf16>
    %49 = vector.shape_cast %48 : vector<1x16x32xbf16> to vector<16x32xbf16>
    %50 = vector.shape_cast %46 : vector<16x32xbf16> to vector<1x16x32xbf16>
    tpu.vector_store %arg6[%47, %c0_24, %c0_25], %50 {strides = array<i32>} : memref<8x16x32xbf16, #tpu.memory_space<vmem>>, vector<1x16x32xbf16>,
    %c1_i32 = arith.constant 1 : i32
    %51 = arith.index_cast %c1_i32 : i32 to index
    %c0_26 = arith.constant 0 : index
    %c0_27 = arith.constant 0 : index
    %52 = vector.load %arg7[%51, %c0_26, %c0_27] : memref<8x16x128xf32, #tpu.memory_space<vmem>>, vector<1x16x128xf32>
    %53 = vector.shape_cast %52 : vector<1x16x128xf32> to vector<16x128xf32>
    %54 = arith.truncf %45 : vector<16x32xf32> to vector<16x32xbf16>
    %cst_28 = arith.constant dense<0.000000e+00> : vector<16x128xf32>
    %55 = tpu.matmul %54, %4, %cst_28 {dimension_numbers = #tpu.dot_dimension_numbers<[1], [0], [0], [1], [0, 0, 1, 1], [], []>} : vector<16x32xbf16>, vector<32x128xbf16>, vector<16x128xf32> -> vector<16x128xf32>
    %56 = arith.addf %53, %55 : vector<16x128xf32>
    %57 = arith.mulf %56, %21 : vector<16x128xf32>
    %58 = math.tanh %57 : vector<16x128xf32>
    %59 = arith.mulf %58, %21 : vector<16x128xf32>
    %60 = arith.addf %59, %24 : vector<16x128xf32>
    %61 = vector.extract_strided_slice %60 {offsets = [0, 0], sizes = [16, 32], strides = [1, 1]} : vector<16x128xf32> to vector<16x32xf32>
    %62 = vector.extract_strided_slice %60 {offsets = [0, 32], sizes = [16, 32], strides = [1, 1]} : vector<16x128xf32> to vector<16x32xf32>
    %63 = vector.extract_strided_slice %60 {offsets = [0, 64], sizes = [16, 32], strides = [1, 1]} : vector<16x128xf32> to vector<16x32xf32>
    %64 = vector.extract_strided_slice %60 {offsets = [0, 96], sizes = [16, 32], strides = [1, 1]} : vector<16x128xf32> to vector<16x32xf32>
    %65 = arith.mulf %62, %43 : vector<16x32xf32>
    %66 = arith.mulf %61, %63 : vector<16x32xf32>
    %67 = arith.addf %65, %66 : vector<16x32xf32>
    %68 = math.tanh %67 : vector<16x32xf32>
    %69 = arith.mulf %64, %68 : vector<16x32xf32>
    %70 = arith.truncf %69 : vector<16x32xf32> to vector<16x32xbf16>
    %71 = arith.index_cast %c1_i32 : i32 to index
    %c0_29 = arith.constant 0 : index
    %c0_30 = arith.constant 0 : index
    %72 = vector.load %arg6[%71, %c0_29, %c0_30] : memref<8x16x32xbf16, #tpu.memory_space<vmem>>, vector<1x16x32xbf16>
    %73 = vector.shape_cast %72 : vector<1x16x32xbf16> to vector<16x32xbf16>
    %74 = vector.shape_cast %70 : vector<16x32xbf16> to vector<1x16x32xbf16>
    tpu.vector_store %arg6[%71, %c0_29, %c0_30], %74 {strides = array<i32>} : memref<8x16x32xbf16, #tpu.memory_space<vmem>>, vector<1x16x32xbf16>,
    %c2_i32 = arith.constant 2 : i32
    %75 = arith.index_cast %c2_i32 : i32 to index
    %c0_31 = arith.constant 0 : index
    %c0_32 = arith.constant 0 : index
    %76 = vector.load %arg7[%75, %c0_31, %c0_32] : memref<8x16x128xf32, #tpu.memory_space<vmem>>, vector<1x16x128xf32>
    %77 = vector.shape_cast %76 : vector<1x16x128xf32> to vector<16x128xf32>
    %78 = arith.truncf %69 : vector<16x32xf32> to vector<16x32xbf16>
    %cst_33 = arith.constant dense<0.000000e+00> : vector<16x128xf32>
    %79 = tpu.matmul %78, %4, %cst_33 {dimension_numbers = #tpu.dot_dimension_numbers<[1], [0], [0], [1], [0, 0, 1, 1], [], []>} : vector<16x32xbf16>, vector<32x128xbf16>, vector<16x128xf32> -> vector<16x128xf32>
    %80 = arith.addf %77, %79 : vector<16x128xf32>
    %81 = arith.mulf %80, %21 : vector<16x128xf32>
    %82 = math.tanh %81 : vector<16x128xf32>
    %83 = arith.mulf %82, %21 : vector<16x128xf32>
    %84 = arith.addf %83, %24 : vector<16x128xf32>
    %85 = vector.extract_strided_slice %84 {offsets = [0, 0], sizes = [16, 32], strides = [1, 1]} : vector<16x128xf32> to vector<16x32xf32>
    %86 = vector.extract_strided_slice %84 {offsets = [0, 32], sizes = [16, 32], strides = [1, 1]} : vector<16x128xf32> to vector<16x32xf32>
    %87 = vector.extract_strided_slice %84 {offsets = [0, 64], sizes = [16, 32], strides = [1, 1]} : vector<16x128xf32> to vector<16x32xf32>
    %88 = vector.extract_strided_slice %84 {offsets = [0, 96], sizes = [16, 32], strides = [1, 1]} : vector<16x128xf32> to vector<16x32xf32>
    %89 = arith.mulf %86, %67 : vector<16x32xf32>
    %90 = arith.mulf %85, %87 : vector<16x32xf32>
    %91 = arith.addf %89, %90 : vector<16x32xf32>
    %92 = math.tanh %91 : vector<16x32xf32>
    %93 = arith.mulf %88, %92 : vector<16x32xf32>
    %94 = arith.truncf %93 : vector<16x32xf32> to vector<16x32xbf16>
    %95 = arith.index_cast %c2_i32 : i32 to index
    %c0_34 = arith.constant 0 : index
    %c0_35 = arith.constant 0 : index
    %96 = vector.load %arg6[%95, %c0_34, %c0_35] : memref<8x16x32xbf16, #tpu.memory_space<vmem>>, vector<1x16x32xbf16>
    %97 = vector.shape_cast %96 : vector<1x16x32xbf16> to vector<16x32xbf16>
    %98 = vector.shape_cast %94 : vector<16x32xbf16> to vector<1x16x32xbf16>
    tpu.vector_store %arg6[%95, %c0_34, %c0_35], %98 {strides = array<i32>} : memref<8x16x32xbf16, #tpu.memory_space<vmem>>, vector<1x16x32xbf16>,
    %c3_i32 = arith.constant 3 : i32
    %99 = arith.index_cast %c3_i32 : i32 to index
    %c0_36 = arith.constant 0 : index
    %c0_37 = arith.constant 0 : index
    %100 = vector.load %arg7[%99, %c0_36, %c0_37] : memref<8x16x128xf32, #tpu.memory_space<vmem>>, vector<1x16x128xf32>
    %101 = vector.shape_cast %100 : vector<1x16x128xf32> to vector<16x128xf32>
    %102 = arith.truncf %93 : vector<16x32xf32> to vector<16x32xbf16>
    %cst_38 = arith.constant dense<0.000000e+00> : vector<16x128xf32>
    %103 = tpu.matmul %102, %4, %cst_38 {dimension_numbers = #tpu.dot_dimension_numbers<[1], [0], [0], [1], [0, 0, 1, 1], [], []>} : vector<16x32xbf16>, vector<32x128xbf16>, vector<16x128xf32> -> vector<16x128xf32>
    %104 = arith.addf %101, %103 : vector<16x128xf32>
    %105 = arith.mulf %104, %21 : vector<16x128xf32>
    %106 = math.tanh %105 : vector<16x128xf32>
    %107 = arith.mulf %106, %21 : vector<16x128xf32>
    %108 = arith.addf %107, %24 : vector<16x128xf32>
    %109 = vector.extract_strided_slice %108 {offsets = [0, 0], sizes = [16, 32], strides = [1, 1]} : vector<16x128xf32> to vector<16x32xf32>
    %110 = vector.extract_strided_slice %108 {offsets = [0, 32], sizes = [16, 32], strides = [1, 1]} : vector<16x128xf32> to vector<16x32xf32>
    %111 = vector.extract_strided_slice %108 {offsets = [0, 64], sizes = [16, 32], strides = [1, 1]} : vector<16x128xf32> to vector<16x32xf32>
    %112 = vector.extract_strided_slice %108 {offsets = [0, 96], sizes = [16, 32], strides = [1, 1]} : vector<16x128xf32> to vector<16x32xf32>
    %113 = arith.mulf %110, %91 : vector<16x32xf32>
    %114 = arith.mulf %109, %111 : vector<16x32xf32>
    %115 = arith.addf %113, %114 : vector<16x32xf32>
    %116 = math.tanh %115 : vector<16x32xf32>
    %117 = arith.mulf %112, %116 : vector<16x32xf32>
    %118 = arith.truncf %117 : vector<16x32xf32> to vector<16x32xbf16>
    %119 = arith.index_cast %c3_i32 : i32 to index
    %c0_39 = arith.constant 0 : index
    %c0_40 = arith.constant 0 : index
    %120 = vector.load %arg6[%119, %c0_39, %c0_40] : memref<8x16x32xbf16, #tpu.memory_space<vmem>>, vector<1x16x32xbf16>
    %121 = vector.shape_cast %120 : vector<1x16x32xbf16> to vector<16x32xbf16>
    %122 = vector.shape_cast %118 : vector<16x32xbf16> to vector<1x16x32xbf16>
    tpu.vector_store %arg6[%119, %c0_39, %c0_40], %122 {strides = array<i32>} : memref<8x16x32xbf16, #tpu.memory_space<vmem>>, vector<1x16x32xbf16>,
    %c4_i32 = arith.constant 4 : i32
    %123 = arith.index_cast %c4_i32 : i32 to index
    %c0_41 = arith.constant 0 : index
    %c0_42 = arith.constant 0 : index
    %124 = vector.load %arg7[%123, %c0_41, %c0_42] : memref<8x16x128xf32, #tpu.memory_space<vmem>>, vector<1x16x128xf32>
    %125 = vector.shape_cast %124 : vector<1x16x128xf32> to vector<16x128xf32>
    %126 = arith.truncf %117 : vector<16x32xf32> to vector<16x32xbf16>
    %cst_43 = arith.constant dense<0.000000e+00> : vector<16x128xf32>
    %127 = tpu.matmul %126, %4, %cst_43 {dimension_numbers = #tpu.dot_dimension_numbers<[1], [0], [0], [1], [0, 0, 1, 1], [], []>} : vector<16x32xbf16>, vector<32x128xbf16>, vector<16x128xf32> -> vector<16x128xf32>
    %128 = arith.addf %125, %127 : vector<16x128xf32>
    %129 = arith.mulf %128, %21 : vector<16x128xf32>
    %130 = math.tanh %129 : vector<16x128xf32>
    %131 = arith.mulf %130, %21 : vector<16x128xf32>
    %132 = arith.addf %131, %24 : vector<16x128xf32>
    %133 = vector.extract_strided_slice %132 {offsets = [0, 0], sizes = [16, 32], strides = [1, 1]} : vector<16x128xf32> to vector<16x32xf32>
    %134 = vector.extract_strided_slice %132 {offsets = [0, 32], sizes = [16, 32], strides = [1, 1]} : vector<16x128xf32> to vector<16x32xf32>
    %135 = vector.extract_strided_slice %132 {offsets = [0, 64], sizes = [16, 32], strides = [1, 1]} : vector<16x128xf32> to vector<16x32xf32>
    %136 = vector.extract_strided_slice %132 {offsets = [0, 96], sizes = [16, 32], strides = [1, 1]} : vector<16x128xf32> to vector<16x32xf32>
    %137 = arith.mulf %134, %115 : vector<16x32xf32>
    %138 = arith.mulf %133, %135 : vector<16x32xf32>
    %139 = arith.addf %137, %138 : vector<16x32xf32>
    %140 = math.tanh %139 : vector<16x32xf32>
    %141 = arith.mulf %136, %140 : vector<16x32xf32>
    %142 = arith.truncf %141 : vector<16x32xf32> to vector<16x32xbf16>
    %143 = arith.index_cast %c4_i32 : i32 to index
    %c0_44 = arith.constant 0 : index
    %c0_45 = arith.constant 0 : index
    %144 = vector.load %arg6[%143, %c0_44, %c0_45] : memref<8x16x32xbf16, #tpu.memory_space<vmem>>, vector<1x16x32xbf16>
    %145 = vector.shape_cast %144 : vector<1x16x32xbf16> to vector<16x32xbf16>
    %146 = vector.shape_cast %142 : vector<16x32xbf16> to vector<1x16x32xbf16>
    tpu.vector_store %arg6[%143, %c0_44, %c0_45], %146 {strides = array<i32>} : memref<8x16x32xbf16, #tpu.memory_space<vmem>>, vector<1x16x32xbf16>,
    %c5_i32 = arith.constant 5 : i32
    %147 = arith.index_cast %c5_i32 : i32 to index
    %c0_46 = arith.constant 0 : index
    %c0_47 = arith.constant 0 : index
    %148 = vector.load %arg7[%147, %c0_46, %c0_47] : memref<8x16x128xf32, #tpu.memory_space<vmem>>, vector<1x16x128xf32>
    %149 = vector.shape_cast %148 : vector<1x16x128xf32> to vector<16x128xf32>
    %150 = arith.truncf %141 : vector<16x32xf32> to vector<16x32xbf16>
    %cst_48 = arith.constant dense<0.000000e+00> : vector<16x128xf32>
    %151 = tpu.matmul %150, %4, %cst_48 {dimension_numbers = #tpu.dot_dimension_numbers<[1], [0], [0], [1], [0, 0, 1, 1], [], []>} : vector<16x32xbf16>, vector<32x128xbf16>, vector<16x128xf32> -> vector<16x128xf32>
    %152 = arith.addf %149, %151 : vector<16x128xf32>
    %153 = arith.mulf %152, %21 : vector<16x128xf32>
    %154 = math.tanh %153 : vector<16x128xf32>
    %155 = arith.mulf %154, %21 : vector<16x128xf32>
    %156 = arith.addf %155, %24 : vector<16x128xf32>
    %157 = vector.extract_strided_slice %156 {offsets = [0, 0], sizes = [16, 32], strides = [1, 1]} : vector<16x128xf32> to vector<16x32xf32>
    %158 = vector.extract_strided_slice %156 {offsets = [0, 32], sizes = [16, 32], strides = [1, 1]} : vector<16x128xf32> to vector<16x32xf32>
    %159 = vector.extract_strided_slice %156 {offsets = [0, 64], sizes = [16, 32], strides = [1, 1]} : vector<16x128xf32> to vector<16x32xf32>
    %160 = vector.extract_strided_slice %156 {offsets = [0, 96], sizes = [16, 32], strides = [1, 1]} : vector<16x128xf32> to vector<16x32xf32>
    %161 = arith.mulf %158, %139 : vector<16x32xf32>
    %162 = arith.mulf %157, %159 : vector<16x32xf32>
    %163 = arith.addf %161, %162 : vector<16x32xf32>
    %164 = math.tanh %163 : vector<16x32xf32>
    %165 = arith.mulf %160, %164 : vector<16x32xf32>
    %166 = arith.truncf %165 : vector<16x32xf32> to vector<16x32xbf16>
    %167 = arith.index_cast %c5_i32 : i32 to index
    %c0_49 = arith.constant 0 : index
    %c0_50 = arith.constant 0 : index
    %168 = vector.load %arg6[%167, %c0_49, %c0_50] : memref<8x16x32xbf16, #tpu.memory_space<vmem>>, vector<1x16x32xbf16>
    %169 = vector.shape_cast %168 : vector<1x16x32xbf16> to vector<16x32xbf16>
    %170 = vector.shape_cast %166 : vector<16x32xbf16> to vector<1x16x32xbf16>
    tpu.vector_store %arg6[%167, %c0_49, %c0_50], %170 {strides = array<i32>} : memref<8x16x32xbf16, #tpu.memory_space<vmem>>, vector<1x16x32xbf16>,
    %c6_i32 = arith.constant 6 : i32
    %171 = arith.index_cast %c6_i32 : i32 to index
    %c0_51 = arith.constant 0 : index
    %c0_52 = arith.constant 0 : index
    %172 = vector.load %arg7[%171, %c0_51, %c0_52] : memref<8x16x128xf32, #tpu.memory_space<vmem>>, vector<1x16x128xf32>
    %173 = vector.shape_cast %172 : vector<1x16x128xf32> to vector<16x128xf32>
    %174 = arith.truncf %165 : vector<16x32xf32> to vector<16x32xbf16>
    %cst_53 = arith.constant dense<0.000000e+00> : vector<16x128xf32>
    %175 = tpu.matmul %174, %4, %cst_53 {dimension_numbers = #tpu.dot_dimension_numbers<[1], [0], [0], [1], [0, 0, 1, 1], [], []>} : vector<16x32xbf16>, vector<32x128xbf16>, vector<16x128xf32> -> vector<16x128xf32>
    %176 = arith.addf %173, %175 : vector<16x128xf32>
    %177 = arith.mulf %176, %21 : vector<16x128xf32>
    %178 = math.tanh %177 : vector<16x128xf32>
    %179 = arith.mulf %178, %21 : vector<16x128xf32>
    %180 = arith.addf %179, %24 : vector<16x128xf32>
    %181 = vector.extract_strided_slice %180 {offsets = [0, 0], sizes = [16, 32], strides = [1, 1]} : vector<16x128xf32> to vector<16x32xf32>
    %182 = vector.extract_strided_slice %180 {offsets = [0, 32], sizes = [16, 32], strides = [1, 1]} : vector<16x128xf32> to vector<16x32xf32>
    %183 = vector.extract_strided_slice %180 {offsets = [0, 64], sizes = [16, 32], strides = [1, 1]} : vector<16x128xf32> to vector<16x32xf32>
    %184 = vector.extract_strided_slice %180 {offsets = [0, 96], sizes = [16, 32], strides = [1, 1]} : vector<16x128xf32> to vector<16x32xf32>
    %185 = arith.mulf %182, %163 : vector<16x32xf32>
    %186 = arith.mulf %181, %183 : vector<16x32xf32>
    %187 = arith.addf %185, %186 : vector<16x32xf32>
    %188 = math.tanh %187 : vector<16x32xf32>
    %189 = arith.mulf %184, %188 : vector<16x32xf32>
    %190 = arith.truncf %189 : vector<16x32xf32> to vector<16x32xbf16>
    %191 = arith.index_cast %c6_i32 : i32 to index
    %c0_54 = arith.constant 0 : index
    %c0_55 = arith.constant 0 : index
    %192 = vector.load %arg6[%191, %c0_54, %c0_55] : memref<8x16x32xbf16, #tpu.memory_space<vmem>>, vector<1x16x32xbf16>
    %193 = vector.shape_cast %192 : vector<1x16x32xbf16> to vector<16x32xbf16>
    %194 = vector.shape_cast %190 : vector<16x32xbf16> to vector<1x16x32xbf16>
    tpu.vector_store %arg6[%191, %c0_54, %c0_55], %194 {strides = array<i32>} : memref<8x16x32xbf16, #tpu.memory_space<vmem>>, vector<1x16x32xbf16>,
    %c7_i32 = arith.constant 7 : i32
    %195 = arith.index_cast %c7_i32 : i32 to index
    %c0_56 = arith.constant 0 : index
    %c0_57 = arith.constant 0 : index
    %196 = vector.load %arg7[%195, %c0_56, %c0_57] : memref<8x16x128xf32, #tpu.memory_space<vmem>>, vector<1x16x128xf32>
    %197 = vector.shape_cast %196 : vector<1x16x128xf32> to vector<16x128xf32>
    %198 = arith.truncf %189 : vector<16x32xf32> to vector<16x32xbf16>
    %cst_58 = arith.constant dense<0.000000e+00> : vector<16x128xf32>
    %199 = tpu.matmul %198, %4, %cst_58 {dimension_numbers = #tpu.dot_dimension_numbers<[1], [0], [0], [1], [0, 0, 1, 1], [], []>} : vector<16x32xbf16>, vector<32x128xbf16>, vector<16x128xf32> -> vector<16x128xf32>
    %200 = arith.addf %197, %199 : vector<16x128xf32>
    %201 = arith.mulf %200, %21 : vector<16x128xf32>
    %202 = math.tanh %201 : vector<16x128xf32>
    %203 = arith.mulf %202, %21 : vector<16x128xf32>
    %204 = arith.addf %203, %24 : vector<16x128xf32>
    %205 = vector.extract_strided_slice %204 {offsets = [0, 0], sizes = [16, 32], strides = [1, 1]} : vector<16x128xf32> to vector<16x32xf32>
    %206 = vector.extract_strided_slice %204 {offsets = [0, 32], sizes = [16, 32], strides = [1, 1]} : vector<16x128xf32> to vector<16x32xf32>
    %207 = vector.extract_strided_slice %204 {offsets = [0, 64], sizes = [16, 32], strides = [1, 1]} : vector<16x128xf32> to vector<16x32xf32>
    %208 = vector.extract_strided_slice %204 {offsets = [0, 96], sizes = [16, 32], strides = [1, 1]} : vector<16x128xf32> to vector<16x32xf32>
    %209 = arith.mulf %206, %187 : vector<16x32xf32>
    %210 = arith.mulf %205, %207 : vector<16x32xf32>
    %211 = arith.addf %209, %210 : vector<16x32xf32>
    %212 = math.tanh %211 : vector<16x32xf32>
    %213 = arith.mulf %208, %212 : vector<16x32xf32>
    %214 = arith.truncf %213 : vector<16x32xf32> to vector<16x32xbf16>
    %215 = arith.index_cast %c7_i32 : i32 to index
    %c0_59 = arith.constant 0 : index
    %c0_60 = arith.constant 0 : index
    %216 = vector.load %arg6[%215, %c0_59, %c0_60] : memref<8x16x32xbf16, #tpu.memory_space<vmem>>, vector<1x16x32xbf16>
    %217 = vector.shape_cast %216 : vector<1x16x32xbf16> to vector<16x32xbf16>
    %218 = vector.shape_cast %214 : vector<16x32xbf16> to vector<1x16x32xbf16>
    tpu.vector_store %arg6[%215, %c0_59, %c0_60], %218 {strides = array<i32>} : memref<8x16x32xbf16, #tpu.memory_space<vmem>>, vector<1x16x32xbf16>,
    %c8_i32 = arith.constant 8 : i32
    %c0_61 = arith.constant 0 : index
    %c0_62 = arith.constant 0 : index
    %219 = vector.load %arg8[%c0_61, %c0_62] : memref<16x32xf32, #tpu.memory_space<vmem>>, vector<16x32xf32>
    tpu.vector_store %arg8[%c0_61, %c0_62], %213 {strides = array<i32>} : memref<16x32xf32, #tpu.memory_space<vmem>>, vector<16x32xf32>,
    %c0_63 = arith.constant 0 : index
    %c0_64 = arith.constant 0 : index
    %220 = vector.load %arg9[%c0_63, %c0_64] : memref<16x32xf32, #tpu.memory_space<vmem>>, vector<16x32xf32>
    tpu.vector_store %arg9[%c0_63, %c0_64], %211 {strides = array<i32>} : memref<16x32xf32, #tpu.memory_space<vmem>>, vector<16x32xf32>,
    return
  }
  func.func @transform_0(%arg0: i32, %arg1: i32) -> (i32, i32, i32) {
    %c0_i32 = arith.constant 0 : i32
    %c0_i32_0 = arith.constant 0 : i32
    return %arg1, %arg0, %c0_i32 : i32, i32, i32
  }
  func.func @transform_1(%arg0: i32, %arg1: i32) -> (i32, i32) {
    %c0_i32 = arith.constant 0 : i32
    %c0_i32_0 = arith.constant 0 : i32
    %c0_i32_1 = arith.constant 0 : i32
    return %c0_i32, %c0_i32_0 : i32, i32
  }
  func.func @transform_2(%arg0: i32, %arg1: i32) -> (i32, i32) {
    %c0_i32 = arith.constant 0 : i32
    %c0_i32_0 = arith.constant 0 : i32
    %c0_i32_1 = arith.constant 0 : i32
    return %c0_i32, %c0_i32_0 : i32, i32
  }
  func.func @transform_3(%arg0: i32, %arg1: i32) -> (i32, i32) {
    %c0_i32 = arith.constant 0 : i32
    %c0_i32_0 = arith.constant 0 : i32
    %c0_i32_1 = arith.constant 0 : i32
    return %c0_i32, %c0_i32_0 : i32, i32
  }
  func.func @transform_4(%arg0: i32, %arg1: i32) -> (i32, i32, i32) {
    %c0_i32 = arith.constant 0 : i32
    %c0_i32_0 = arith.constant 0 : i32
    return %arg1, %arg0, %c0_i32 : i32, i32, i32
  }
}

module attributes {stable_mosaic.version = 11 : i64} {
  func.func @_head_kernel(%arg0: i32, %arg1: memref<64x32xbf16, #tpu.memory_space<vmem>>, %arg2: memref<32x16xbf16, #tpu.memory_space<vmem>>, %arg3: memref<1x16xf32, #tpu.memory_space<vmem>>, %arg4: memref<16x16xf32, #tpu.memory_space<vmem>>, %arg5: memref<64x16xf32, #tpu.memory_space<vmem>>) attributes {dimension_semantics = [#tpu.dimension_semantics<parallel>], iteration_bounds = array<i64: 2>, scalar_prefetch = 0 : i64, scratch_operands = 0 : i64, tpu.core_type = #tpu.core_type<tc>, window_params = [{transform_indices = @transform_0, window_bounds = array<i64: 64, 32>}, {pipeline_mode = #tpu.pipeline_mode<synchronous>, transform_indices = @transform_1, window_bounds = array<i64: 32, 16>}, {pipeline_mode = #tpu.pipeline_mode<synchronous>, transform_indices = @transform_2, window_bounds = array<i64: 1, 16>}, {pipeline_mode = #tpu.pipeline_mode<synchronous>, transform_indices = @transform_3, window_bounds = array<i64: 16, 16>}, {transform_indices = @transform_4, window_bounds = array<i64: 64, 16>}]} {
    %c0 = arith.constant 0 : index
    %c0_0 = arith.constant 0 : index
    %0 = vector.load %arg2[%c0, %c0_0] : memref<32x16xbf16, #tpu.memory_space<vmem>>, vector<32x16xbf16>
    %c0_1 = arith.constant 0 : index
    %c0_2 = arith.constant 0 : index
    %1 = vector.load %arg1[%c0_1, %c0_2] : memref<64x32xbf16, #tpu.memory_space<vmem>>, vector<64x32xbf16>
    %cst = arith.constant dense<0.000000e+00> : vector<64x16xf32>
    %2 = tpu.matmul %1, %0, %cst {dimension_numbers = #tpu.dot_dimension_numbers<[1], [0], [0], [1], [0, 0, 1, 1], [], []>} : vector<64x32xbf16>, vector<32x16xbf16>, vector<64x16xf32> -> vector<64x16xf32>
    %c0_3 = arith.constant 0 : index
    %c0_4 = arith.constant 0 : index
    %3 = vector.load %arg3[%c0_3, %c0_4] : memref<1x16xf32, #tpu.memory_space<vmem>>, vector<1x16xf32>
    %4 = vector.broadcast %3 : vector<1x16xf32> to vector<64x16xf32>
    %5 = arith.addf %2, %4 : vector<64x16xf32>
    %6 = arith.negf %5 : vector<64x16xf32>
    %7 = math.exp %6 : vector<64x16xf32>
    %cst_5 = arith.constant 1.000000e+00 : f32
    %8 = vector.broadcast %cst_5 : f32 to vector<64x16xf32>
    %9 = arith.addf %8, %7 : vector<64x16xf32>
    %10 = arith.divf %8, %9 : vector<64x16xf32>
    %c0_6 = arith.constant 0 : index
    %c0_7 = arith.constant 0 : index
    %11 = vector.load %arg4[%c0_6, %c0_7] : memref<16x16xf32, #tpu.memory_space<vmem>>, vector<16x16xf32>
    %12 = vector.shape_cast %11 : vector<16x16xf32> to vector<1x16x16xf32>
    %13 = vector.shape_cast %10 : vector<64x16xf32> to vector<64x1x16xf32>
    %14 = vector.broadcast %12 : vector<1x16x16xf32> to vector<64x16x16xf32>
    %15 = vector.broadcast %13 : vector<64x1x16xf32> to vector<64x16x16xf32>
    %16 = arith.mulf %14, %15 : vector<64x16x16xf32>
    %cst_8 = arith.constant dense<0xFF800000> : vector<64x16xf32>
    %17 = vector.multi_reduction <maximumf>, %16, %cst_8 [2] : vector<64x16x16xf32> to vector<64x16xf32>
    %c0_9 = arith.constant 0 : index
    %c0_10 = arith.constant 0 : index
    %18 = vector.load %arg5[%c0_9, %c0_10] : memref<64x16xf32, #tpu.memory_space<vmem>>, vector<64x16xf32>
    tpu.vector_store %arg5[%c0_9, %c0_10], %17 {strides = array<i32>} : memref<64x16xf32, #tpu.memory_space<vmem>>, vector<64x16xf32>,
    return
  }
  func.func @transform_0(%arg0: i32) -> (i32, i32) {
    %c0_i32 = arith.constant 0 : i32
    %c0_i32_0 = arith.constant 0 : i32
    return %arg0, %c0_i32 : i32, i32
  }
  func.func @transform_1(%arg0: i32) -> (i32, i32) {
    %c0_i32 = arith.constant 0 : i32
    %c0_i32_0 = arith.constant 0 : i32
    %c0_i32_1 = arith.constant 0 : i32
    return %c0_i32, %c0_i32_0 : i32, i32
  }
  func.func @transform_2(%arg0: i32) -> (i32, i32) {
    %c0_i32 = arith.constant 0 : i32
    %c0_i32_0 = arith.constant 0 : i32
    %c0_i32_1 = arith.constant 0 : i32
    return %c0_i32, %c0_i32_0 : i32, i32
  }
  func.func @transform_3(%arg0: i32) -> (i32, i32) {
    %c0_i32 = arith.constant 0 : i32
    %c0_i32_0 = arith.constant 0 : i32
    %c0_i32_1 = arith.constant 0 : i32
    return %c0_i32, %c0_i32_0 : i32, i32
  }
  func.func @transform_4(%arg0: i32) -> (i32, i32) {
    %c0_i32 = arith.constant 0 : i32
    %c0_i32_0 = arith.constant 0 : i32
    return %arg0, %c0_i32 : i32, i32
  }
}

module attributes {stable_mosaic.version = 11 : i64} {
  func.func @_lstm_layer_kernel(%arg0: i32, %arg1: i32, %arg2: memref<8x16x32xbf16, #tpu.memory_space<vmem>>, %arg3: memref<32x128xbf16, #tpu.memory_space<vmem>>, %arg4: memref<32x128xbf16, #tpu.memory_space<vmem>>, %arg5: memref<1x128xf32, #tpu.memory_space<vmem>>, %arg6: memref<8x16x32xbf16, #tpu.memory_space<vmem>>, %arg7: memref<8x16x128xf32, #tpu.memory_space<vmem>>, %arg8: memref<16x32xf32, #tpu.memory_space<vmem>>, %arg9: memref<16x32xf32, #tpu.memory_space<vmem>>) attributes {dimension_semantics = [#tpu.dimension_semantics<parallel>, #tpu.dimension_semantics<arbitrary>], iteration_bounds = array<i64: 1, 1>, scalar_prefetch = 0 : i64, scratch_operands = 3 : i64, tpu.core_type = #tpu.core_type<tc>, window_params = [{transform_indices = @transform_0, window_bounds = array<i64: 8, 16, 32>}, {pipeline_mode = #tpu.pipeline_mode<synchronous>, transform_indices = @transform_1, window_bounds = array<i64: 32, 128>}, {pipeline_mode = #tpu.pipeline_mode<synchronous>, transform_indices = @transform_2, window_bounds = array<i64: 32, 128>}, {pipeline_mode = #tpu.pipeline_mode<synchronous>, transform_indices = @transform_3, window_bounds = array<i64: 1, 128>}, {transform_indices = @transform_4, window_bounds = array<i64: 8, 16, 32>}]} {
    %c0_i32 = arith.constant 0 : i32
    %0 = arith.cmpi eq, %arg1, %c0_i32 : i32
    %1 = arith.extui %0 : i1 to i32
    %c0_i32_0 = arith.constant 0 : i32
    %2 = arith.cmpi ne, %1, %c0_i32_0 : i32
    scf.if %2 {
      %cst_65 = arith.constant 0.000000e+00 : f32
      %221 = vector.broadcast %cst_65 : f32 to vector<16x32xf32>
      %c0_66 = arith.constant 0 : index
      %c0_67 = arith.constant 0 : index
      %222 = vector.load %arg8[%c0_66, %c0_67] : memref<16x32xf32, #tpu.memory_space<vmem>>, vector<16x32xf32>
      tpu.vector_store %arg8[%c0_66, %c0_67], %221 {strides = array<i32>} : memref<16x32xf32, #tpu.memory_space<vmem>>, vector<16x32xf32>,
      %cst_68 = arith.constant 0.000000e+00 : f32
      %223 = vector.broadcast %cst_68 : f32 to vector<16x32xf32>
      %c0_69 = arith.constant 0 : index
      %c0_70 = arith.constant 0 : index
      %224 = vector.load %arg9[%c0_69, %c0_70] : memref<16x32xf32, #tpu.memory_space<vmem>>, vector<16x32xf32>
      tpu.vector_store %arg9[%c0_69, %c0_70], %223 {strides = array<i32>} : memref<16x32xf32, #tpu.memory_space<vmem>>, vector<16x32xf32>,
    } else {
    }
    %c0 = arith.constant 0 : index
    %c0_1 = arith.constant 0 : index
    %3 = vector.load %arg3[%c0, %c0_1] : memref<32x128xbf16, #tpu.memory_space<vmem>>, vector<32x128xbf16>
    %c0_2 = arith.constant 0 : index
    %c0_3 = arith.constant 0 : index
    %4 = vector.load %arg4[%c0_2, %c0_3] : memref<32x128xbf16, #tpu.memory_space<vmem>>, vector<32x128xbf16>
    %c0_4 = arith.constant 0 : index
    %c0_5 = arith.constant 0 : index
    %5 = vector.load %arg5[%c0_4, %c0_5] : memref<1x128xf32, #tpu.memory_space<vmem>>, vector<1x128xf32>
    %c0_6 = arith.constant 0 : index
    %c0_7 = arith.constant 0 : index
    %c0_8 = arith.constant 0 : index
    %6 = vector.load %arg2[%c0_6, %c0_7, %c0_8] : memref<8x16x32xbf16, #tpu.memory_space<vmem>>, vector<8x16x32xbf16>
    %7 = vector.shape_cast %6 : vector<8x16x32xbf16> to vector<128x32xbf16>
    %cst = arith.constant dense<0.000000e+00> : vector<128x128xf32>
    %8 = tpu.matmul %7, %3, %cst {dimension_numbers = #tpu.dot_dimension_numbers<[1], [0], [0], [1], [0, 0, 1, 1], [], []>} : vector<128x32xbf16>, vector<32x128xbf16>, vector<128x128xf32> -> vector<128x128xf32>
    %9 = vector.broadcast %5 : vector<1x128xf32> to vector<128x128xf32>
    %10 = arith.addf %8, %9 : vector<128x128xf32>
    %11 = vector.shape_cast %10 : vector<128x128xf32> to vector<8x16x128xf32>
    %c0_9 = arith.constant 0 : index
    %c0_10 = arith.constant 0 : index
    %c0_11 = arith.constant 0 : index
    %12 = vector.load %arg7[%c0_9, %c0_10, %c0_11] : memref<8x16x128xf32, #tpu.memory_space<vmem>>, vector<8x16x128xf32>
    tpu.vector_store %arg7[%c0_9, %c0_10, %c0_11], %11 {strides = array<i32>} : memref<8x16x128xf32, #tpu.memory_space<vmem>>, vector<8x16x128xf32>,
    %13 = tpu.iota {dimensions = array<i32: 1>} : vector<16x128xi32>
    %c64_i32 = arith.constant 64 : i32
    %14 = vector.broadcast %c64_i32 : i32 to vector<16x128xi32>
    %15 = arith.cmpi sge, %13, %14 : vector<16x128xi32>
    %c96_i32 = arith.constant 96 : i32
    %16 = vector.broadcast %c96_i32 : i32 to vector<16x128xi32>
    %17 = arith.cmpi slt, %13, %16 : vector<16x128xi32>
    %18 = arith.andi %15, %17 : vector<16x128xi1>
    %cst_12 = arith.constant 1.000000e+00 : f32
    %cst_13 = arith.constant 5.000000e-01 : f32
    %19 = vector.broadcast %cst_12 : f32 to vector<16x128xf32>
    %20 = vector.broadcast %cst_13 : f32 to vector<16x128xf32>
    %21 = arith.select %18, %19, %20 : vector<16x128xi1>, vector<16x128xf32>
    %cst_14 = arith.constant 0.000000e+00 : f32
    %cst_15 = arith.constant 5.000000e-01 : f32
    %22 = vector.broadcast %cst_14 : f32 to vector<16x128xf32>
    %23 = vector.broadcast %cst_15 : f32 to vector<16x128xf32>
    %24 = arith.select %18, %22, %23 : vector<16x128xi1>, vector<16x128xf32>
    %c0_16 = arith.constant 0 : index
    %c0_17 = arith.constant 0 : index
    %25 = vector.load %arg8[%c0_16, %c0_17] : memref<16x32xf32, #tpu.memory_space<vmem>>, vector<16x32xf32>
    %c0_18 = arith.constant 0 : index
    %c0_19 = arith.constant 0 : index
    %26 = vector.load %arg9[%c0_18, %c0_19] : memref<16x32xf32, #tpu.memory_space<vmem>>, vector<16x32xf32>
    %c0_i32_20 = arith.constant 0 : i32
    %27 = arith.index_cast %c0_i32_20 : i32 to index
    %c0_21 = arith.constant 0 : index
    %c0_22 = arith.constant 0 : index
    %28 = vector.load %arg7[%27, %c0_21, %c0_22] : memref<8x16x128xf32, #tpu.memory_space<vmem>>, vector<1x16x128xf32>
    %29 = vector.shape_cast %28 : vector<1x16x128xf32> to vector<16x128xf32>
    %30 = arith.truncf %25 : vector<16x32xf32> to vector<16x32xbf16>
    %cst_23 = arith.constant dense<0.000000e+00> : vector<16x128xf32>
    %31 = tpu.matmul %30, %4, %cst_23 {dimension_numbers = #tpu.dot_dimension_numbers<[1], [0], [0], [1], [0, 0, 1, 1], [], []>} : vector<16x32xbf16>, vector<32x128xbf16>, vector<16x128xf32> -> vector<16x128xf32>
    %32 = arith.addf %29, %31 : vector<16x128xf32>
    %33 = arith.mulf %32, %21 : vector<16x128xf32>
    %34 = math.tanh %33 : vector<16x128xf32>
    %35 = arith.mulf %34, %21 : vector<16x128xf32>
    %36 = arith.addf %35, %24 : vector<16x128xf32>
    %37 = vector.extract_strided_slice %36 {offsets = [0, 0], sizes = [16, 32], strides = [1, 1]} : vector<16x128xf32> to vector<16x32xf32>
    %38 = vector.extract_strided_slice %36 {offsets = [0, 32], sizes = [16, 32], strides = [1, 1]} : vector<16x128xf32> to vector<16x32xf32>
    %39 = vector.extract_strided_slice %36 {offsets = [0, 64], sizes = [16, 32], strides = [1, 1]} : vector<16x128xf32> to vector<16x32xf32>
    %40 = vector.extract_strided_slice %36 {offsets = [0, 96], sizes = [16, 32], strides = [1, 1]} : vector<16x128xf32> to vector<16x32xf32>
    %41 = arith.mulf %38, %26 : vector<16x32xf32>
    %42 = arith.mulf %37, %39 : vector<16x32xf32>
    %43 = arith.addf %41, %42 : vector<16x32xf32>
    %44 = math.tanh %43 : vector<16x32xf32>
    %45 = arith.mulf %40, %44 : vector<16x32xf32>
    %46 = arith.truncf %45 : vector<16x32xf32> to vector<16x32xbf16>
    %47 = arith.index_cast %c0_i32_20 : i32 to index
    %c0_24 = arith.constant 0 : index
    %c0_25 = arith.constant 0 : index
    %48 = vector.load %arg6[%47, %c0_24, %c0_25] : memref<8x16x32xbf16, #tpu.memory_space<vmem>>, vector<1x16x32xbf16>
    %49 = vector.shape_cast %48 : vector<1x16x32xbf16> to vector<16x32xbf16>
    %50 = vector.shape_cast %46 : vector<16x32xbf16> to vector<1x16x32xbf16>
    tpu.vector_store %arg6[%47, %c0_24, %c0_25], %50 {strides = array<i32>} : memref<8x16x32xbf16, #tpu.memory_space<vmem>>, vector<1x16x32xbf16>,
    %c1_i32 = arith.constant 1 : i32
    %51 = arith.index_cast %c1_i32 : i32 to index
    %c0_26 = arith.constant 0 : index
    %c0_27 = arith.constant 0 : index
    %52 = vector.load %arg7[%51, %c0_26, %c0_27] : memref<8x16x128xf32, #tpu.memory_space<vmem>>, vector<1x16x128xf32>
    %53 = vector.shape_cast %52 : vector<1x16x128xf32> to vector<16x128xf32>
    %54 = arith.truncf %45 : vector<16x32xf32> to vector<16x32xbf16>
    %cst_28 = arith.constant dense<0.000000e+00> : vector<16x128xf32>
    %55 = tpu.matmul %54, %4, %cst_28 {dimension_numbers = #tpu.dot_dimension_numbers<[1], [0], [0], [1], [0, 0, 1, 1], [], []>} : vector<16x32xbf16>, vector<32x128xbf16>, vector<16x128xf32> -> vector<16x128xf32>
    %56 = arith.addf %53, %55 : vector<16x128xf32>
    %57 = arith.mulf %56, %21 : vector<16x128xf32>
    %58 = math.tanh %57 : vector<16x128xf32>
    %59 = arith.mulf %58, %21 : vector<16x128xf32>
    %60 = arith.addf %59, %24 : vector<16x128xf32>
    %61 = vector.extract_strided_slice %60 {offsets = [0, 0], sizes = [16, 32], strides = [1, 1]} : vector<16x128xf32> to vector<16x32xf32>
    %62 = vector.extract_strided_slice %60 {offsets = [0, 32], sizes = [16, 32], strides = [1, 1]} : vector<16x128xf32> to vector<16x32xf32>
    %63 = vector.extract_strided_slice %60 {offsets = [0, 64], sizes = [16, 32], strides = [1, 1]} : vector<16x128xf32> to vector<16x32xf32>
    %64 = vector.extract_strided_slice %60 {offsets = [0, 96], sizes = [16, 32], strides = [1, 1]} : vector<16x128xf32> to vector<16x32xf32>
    %65 = arith.mulf %62, %43 : vector<16x32xf32>
    %66 = arith.mulf %61, %63 : vector<16x32xf32>
    %67 = arith.addf %65, %66 : vector<16x32xf32>
    %68 = math.tanh %67 : vector<16x32xf32>
    %69 = arith.mulf %64, %68 : vector<16x32xf32>
    %70 = arith.truncf %69 : vector<16x32xf32> to vector<16x32xbf16>
    %71 = arith.index_cast %c1_i32 : i32 to index
    %c0_29 = arith.constant 0 : index
    %c0_30 = arith.constant 0 : index
    %72 = vector.load %arg6[%71, %c0_29, %c0_30] : memref<8x16x32xbf16, #tpu.memory_space<vmem>>, vector<1x16x32xbf16>
    %73 = vector.shape_cast %72 : vector<1x16x32xbf16> to vector<16x32xbf16>
    %74 = vector.shape_cast %70 : vector<16x32xbf16> to vector<1x16x32xbf16>
    tpu.vector_store %arg6[%71, %c0_29, %c0_30], %74 {strides = array<i32>} : memref<8x16x32xbf16, #tpu.memory_space<vmem>>, vector<1x16x32xbf16>,
    %c2_i32 = arith.constant 2 : i32
    %75 = arith.index_cast %c2_i32 : i32 to index
    %c0_31 = arith.constant 0 : index
    %c0_32 = arith.constant 0 : index
    %76 = vector.load %arg7[%75, %c0_31, %c0_32] : memref<8x16x128xf32, #tpu.memory_space<vmem>>, vector<1x16x128xf32>
    %77 = vector.shape_cast %76 : vector<1x16x128xf32> to vector<16x128xf32>
    %78 = arith.truncf %69 : vector<16x32xf32> to vector<16x32xbf16>
    %cst_33 = arith.constant dense<0.000000e+00> : vector<16x128xf32>
    %79 = tpu.matmul %78, %4, %cst_33 {dimension_numbers = #tpu.dot_dimension_numbers<[1], [0], [0], [1], [0, 0, 1, 1], [], []>} : vector<16x32xbf16>, vector<32x128xbf16>, vector<16x128xf32> -> vector<16x128xf32>
    %80 = arith.addf %77, %79 : vector<16x128xf32>
    %81 = arith.mulf %80, %21 : vector<16x128xf32>
    %82 = math.tanh %81 : vector<16x128xf32>
    %83 = arith.mulf %82, %21 : vector<16x128xf32>
    %84 = arith.addf %83, %24 : vector<16x128xf32>
    %85 = vector.extract_strided_slice %84 {offsets = [0, 0], sizes = [16, 32], strides = [1, 1]} : vector<16x128xf32> to vector<16x32xf32>
    %86 = vector.extract_strided_slice %84 {offsets = [0, 32], sizes = [16, 32], strides = [1, 1]} : vector<16x128xf32> to vector<16x32xf32>
    %87 = vector.extract_strided_slice %84 {offsets = [0, 64], sizes = [16, 32], strides = [1, 1]} : vector<16x128xf32> to vector<16x32xf32>
    %88 = vector.extract_strided_slice %84 {offsets = [0, 96], sizes = [16, 32], strides = [1, 1]} : vector<16x128xf32> to vector<16x32xf32>
    %89 = arith.mulf %86, %67 : vector<16x32xf32>
    %90 = arith.mulf %85, %87 : vector<16x32xf32>
    %91 = arith.addf %89, %90 : vector<16x32xf32>
    %92 = math.tanh %91 : vector<16x32xf32>
    %93 = arith.mulf %88, %92 : vector<16x32xf32>
    %94 = arith.truncf %93 : vector<16x32xf32> to vector<16x32xbf16>
    %95 = arith.index_cast %c2_i32 : i32 to index
    %c0_34 = arith.constant 0 : index
    %c0_35 = arith.constant 0 : index
    %96 = vector.load %arg6[%95, %c0_34, %c0_35] : memref<8x16x32xbf16, #tpu.memory_space<vmem>>, vector<1x16x32xbf16>
    %97 = vector.shape_cast %96 : vector<1x16x32xbf16> to vector<16x32xbf16>
    %98 = vector.shape_cast %94 : vector<16x32xbf16> to vector<1x16x32xbf16>
    tpu.vector_store %arg6[%95, %c0_34, %c0_35], %98 {strides = array<i32>} : memref<8x16x32xbf16, #tpu.memory_space<vmem>>, vector<1x16x32xbf16>,
    %c3_i32 = arith.constant 3 : i32
    %99 = arith.index_cast %c3_i32 : i32 to index
    %c0_36 = arith.constant 0 : index
    %c0_37 = arith.constant 0 : index
    %100 = vector.load %arg7[%99, %c0_36, %c0_37] : memref<8x16x128xf32, #tpu.memory_space<vmem>>, vector<1x16x128xf32>
    %101 = vector.shape_cast %100 : vector<1x16x128xf32> to vector<16x128xf32>
    %102 = arith.truncf %93 : vector<16x32xf32> to vector<16x32xbf16>
    %cst_38 = arith.constant dense<0.000000e+00> : vector<16x128xf32>
    %103 = tpu.matmul %102, %4, %cst_38 {dimension_numbers = #tpu.dot_dimension_numbers<[1], [0], [0], [1], [0, 0, 1, 1], [], []>} : vector<16x32xbf16>, vector<32x128xbf16>, vector<16x128xf32> -> vector<16x128xf32>
    %104 = arith.addf %101, %103 : vector<16x128xf32>
    %105 = arith.mulf %104, %21 : vector<16x128xf32>
    %106 = math.tanh %105 : vector<16x128xf32>
    %107 = arith.mulf %106, %21 : vector<16x128xf32>
    %108 = arith.addf %107, %24 : vector<16x128xf32>
    %109 = vector.extract_strided_slice %108 {offsets = [0, 0], sizes = [16, 32], strides = [1, 1]} : vector<16x128xf32> to vector<16x32xf32>
    %110 = vector.extract_strided_slice %108 {offsets = [0, 32], sizes = [16, 32], strides = [1, 1]} : vector<16x128xf32> to vector<16x32xf32>
    %111 = vector.extract_strided_slice %108 {offsets = [0, 64], sizes = [16, 32], strides = [1, 1]} : vector<16x128xf32> to vector<16x32xf32>
    %112 = vector.extract_strided_slice %108 {offsets = [0, 96], sizes = [16, 32], strides = [1, 1]} : vector<16x128xf32> to vector<16x32xf32>
    %113 = arith.mulf %110, %91 : vector<16x32xf32>
    %114 = arith.mulf %109, %111 : vector<16x32xf32>
    %115 = arith.addf %113, %114 : vector<16x32xf32>
    %116 = math.tanh %115 : vector<16x32xf32>
    %117 = arith.mulf %112, %116 : vector<16x32xf32>
    %118 = arith.truncf %117 : vector<16x32xf32> to vector<16x32xbf16>
    %119 = arith.index_cast %c3_i32 : i32 to index
    %c0_39 = arith.constant 0 : index
    %c0_40 = arith.constant 0 : index
    %120 = vector.load %arg6[%119, %c0_39, %c0_40] : memref<8x16x32xbf16, #tpu.memory_space<vmem>>, vector<1x16x32xbf16>
    %121 = vector.shape_cast %120 : vector<1x16x32xbf16> to vector<16x32xbf16>
    %122 = vector.shape_cast %118 : vector<16x32xbf16> to vector<1x16x32xbf16>
    tpu.vector_store %arg6[%119, %c0_39, %c0_40], %122 {strides = array<i32>} : memref<8x16x32xbf16, #tpu.memory_space<vmem>>, vector<1x16x32xbf16>,
    %c4_i32 = arith.constant 4 : i32
    %123 = arith.index_cast %c4_i32 : i32 to index
    %c0_41 = arith.constant 0 : index
    %c0_42 = arith.constant 0 : index
    %124 = vector.load %arg7[%123, %c0_41, %c0_42] : memref<8x16x128xf32, #tpu.memory_space<vmem>>, vector<1x16x128xf32>
    %125 = vector.shape_cast %124 : vector<1x16x128xf32> to vector<16x128xf32>
    %126 = arith.truncf %117 : vector<16x32xf32> to vector<16x32xbf16>
    %cst_43 = arith.constant dense<0.000000e+00> : vector<16x128xf32>
    %127 = tpu.matmul %126, %4, %cst_43 {dimension_numbers = #tpu.dot_dimension_numbers<[1], [0], [0], [1], [0, 0, 1, 1], [], []>} : vector<16x32xbf16>, vector<32x128xbf16>, vector<16x128xf32> -> vector<16x128xf32>
    %128 = arith.addf %125, %127 : vector<16x128xf32>
    %129 = arith.mulf %128, %21 : vector<16x128xf32>
    %130 = math.tanh %129 : vector<16x128xf32>
    %131 = arith.mulf %130, %21 : vector<16x128xf32>
    %132 = arith.addf %131, %24 : vector<16x128xf32>
    %133 = vector.extract_strided_slice %132 {offsets = [0, 0], sizes = [16, 32], strides = [1, 1]} : vector<16x128xf32> to vector<16x32xf32>
    %134 = vector.extract_strided_slice %132 {offsets = [0, 32], sizes = [16, 32], strides = [1, 1]} : vector<16x128xf32> to vector<16x32xf32>
    %135 = vector.extract_strided_slice %132 {offsets = [0, 64], sizes = [16, 32], strides = [1, 1]} : vector<16x128xf32> to vector<16x32xf32>
    %136 = vector.extract_strided_slice %132 {offsets = [0, 96], sizes = [16, 32], strides = [1, 1]} : vector<16x128xf32> to vector<16x32xf32>
    %137 = arith.mulf %134, %115 : vector<16x32xf32>
    %138 = arith.mulf %133, %135 : vector<16x32xf32>
    %139 = arith.addf %137, %138 : vector<16x32xf32>
    %140 = math.tanh %139 : vector<16x32xf32>
    %141 = arith.mulf %136, %140 : vector<16x32xf32>
    %142 = arith.truncf %141 : vector<16x32xf32> to vector<16x32xbf16>
    %143 = arith.index_cast %c4_i32 : i32 to index
    %c0_44 = arith.constant 0 : index
    %c0_45 = arith.constant 0 : index
    %144 = vector.load %arg6[%143, %c0_44, %c0_45] : memref<8x16x32xbf16, #tpu.memory_space<vmem>>, vector<1x16x32xbf16>
    %145 = vector.shape_cast %144 : vector<1x16x32xbf16> to vector<16x32xbf16>
    %146 = vector.shape_cast %142 : vector<16x32xbf16> to vector<1x16x32xbf16>
    tpu.vector_store %arg6[%143, %c0_44, %c0_45], %146 {strides = array<i32>} : memref<8x16x32xbf16, #tpu.memory_space<vmem>>, vector<1x16x32xbf16>,
    %c5_i32 = arith.constant 5 : i32
    %147 = arith.index_cast %c5_i32 : i32 to index
    %c0_46 = arith.constant 0 : index
    %c0_47 = arith.constant 0 : index
    %148 = vector.load %arg7[%147, %c0_46, %c0_47] : memref<8x16x128xf32, #tpu.memory_space<vmem>>, vector<1x16x128xf32>
    %149 = vector.shape_cast %148 : vector<1x16x128xf32> to vector<16x128xf32>
    %150 = arith.truncf %141 : vector<16x32xf32> to vector<16x32xbf16>
    %cst_48 = arith.constant dense<0.000000e+00> : vector<16x128xf32>
    %151 = tpu.matmul %150, %4, %cst_48 {dimension_numbers = #tpu.dot_dimension_numbers<[1], [0], [0], [1], [0, 0, 1, 1], [], []>} : vector<16x32xbf16>, vector<32x128xbf16>, vector<16x128xf32> -> vector<16x128xf32>
    %152 = arith.addf %149, %151 : vector<16x128xf32>
    %153 = arith.mulf %152, %21 : vector<16x128xf32>
    %154 = math.tanh %153 : vector<16x128xf32>
    %155 = arith.mulf %154, %21 : vector<16x128xf32>
    %156 = arith.addf %155, %24 : vector<16x128xf32>
    %157 = vector.extract_strided_slice %156 {offsets = [0, 0], sizes = [16, 32], strides = [1, 1]} : vector<16x128xf32> to vector<16x32xf32>
    %158 = vector.extract_strided_slice %156 {offsets = [0, 32], sizes = [16, 32], strides = [1, 1]} : vector<16x128xf32> to vector<16x32xf32>
    %159 = vector.extract_strided_slice %156 {offsets = [0, 64], sizes = [16, 32], strides = [1, 1]} : vector<16x128xf32> to vector<16x32xf32>
    %160 = vector.extract_strided_slice %156 {offsets = [0, 96], sizes = [16, 32], strides = [1, 1]} : vector<16x128xf32> to vector<16x32xf32>
    %161 = arith.mulf %158, %139 : vector<16x32xf32>
    %162 = arith.mulf %157, %159 : vector<16x32xf32>
    %163 = arith.addf %161, %162 : vector<16x32xf32>
    %164 = math.tanh %163 : vector<16x32xf32>
    %165 = arith.mulf %160, %164 : vector<16x32xf32>
    %166 = arith.truncf %165 : vector<16x32xf32> to vector<16x32xbf16>
    %167 = arith.index_cast %c5_i32 : i32 to index
    %c0_49 = arith.constant 0 : index
    %c0_50 = arith.constant 0 : index
    %168 = vector.load %arg6[%167, %c0_49, %c0_50] : memref<8x16x32xbf16, #tpu.memory_space<vmem>>, vector<1x16x32xbf16>
    %169 = vector.shape_cast %168 : vector<1x16x32xbf16> to vector<16x32xbf16>
    %170 = vector.shape_cast %166 : vector<16x32xbf16> to vector<1x16x32xbf16>
    tpu.vector_store %arg6[%167, %c0_49, %c0_50], %170 {strides = array<i32>} : memref<8x16x32xbf16, #tpu.memory_space<vmem>>, vector<1x16x32xbf16>,
    %c6_i32 = arith.constant 6 : i32
    %171 = arith.index_cast %c6_i32 : i32 to index
    %c0_51 = arith.constant 0 : index
    %c0_52 = arith.constant 0 : index
    %172 = vector.load %arg7[%171, %c0_51, %c0_52] : memref<8x16x128xf32, #tpu.memory_space<vmem>>, vector<1x16x128xf32>
    %173 = vector.shape_cast %172 : vector<1x16x128xf32> to vector<16x128xf32>
    %174 = arith.truncf %165 : vector<16x32xf32> to vector<16x32xbf16>
    %cst_53 = arith.constant dense<0.000000e+00> : vector<16x128xf32>
    %175 = tpu.matmul %174, %4, %cst_53 {dimension_numbers = #tpu.dot_dimension_numbers<[1], [0], [0], [1], [0, 0, 1, 1], [], []>} : vector<16x32xbf16>, vector<32x128xbf16>, vector<16x128xf32> -> vector<16x128xf32>
    %176 = arith.addf %173, %175 : vector<16x128xf32>
    %177 = arith.mulf %176, %21 : vector<16x128xf32>
    %178 = math.tanh %177 : vector<16x128xf32>
    %179 = arith.mulf %178, %21 : vector<16x128xf32>
    %180 = arith.addf %179, %24 : vector<16x128xf32>
    %181 = vector.extract_strided_slice %180 {offsets = [0, 0], sizes = [16, 32], strides = [1, 1]} : vector<16x128xf32> to vector<16x32xf32>
    %182 = vector.extract_strided_slice %180 {offsets = [0, 32], sizes = [16, 32], strides = [1, 1]} : vector<16x128xf32> to vector<16x32xf32>
    %183 = vector.extract_strided_slice %180 {offsets = [0, 64], sizes = [16, 32], strides = [1, 1]} : vector<16x128xf32> to vector<16x32xf32>
    %184 = vector.extract_strided_slice %180 {offsets = [0, 96], sizes = [16, 32], strides = [1, 1]} : vector<16x128xf32> to vector<16x32xf32>
    %185 = arith.mulf %182, %163 : vector<16x32xf32>
    %186 = arith.mulf %181, %183 : vector<16x32xf32>
    %187 = arith.addf %185, %186 : vector<16x32xf32>
    %188 = math.tanh %187 : vector<16x32xf32>
    %189 = arith.mulf %184, %188 : vector<16x32xf32>
    %190 = arith.truncf %189 : vector<16x32xf32> to vector<16x32xbf16>
    %191 = arith.index_cast %c6_i32 : i32 to index
    %c0_54 = arith.constant 0 : index
    %c0_55 = arith.constant 0 : index
    %192 = vector.load %arg6[%191, %c0_54, %c0_55] : memref<8x16x32xbf16, #tpu.memory_space<vmem>>, vector<1x16x32xbf16>
    %193 = vector.shape_cast %192 : vector<1x16x32xbf16> to vector<16x32xbf16>
    %194 = vector.shape_cast %190 : vector<16x32xbf16> to vector<1x16x32xbf16>
    tpu.vector_store %arg6[%191, %c0_54, %c0_55], %194 {strides = array<i32>} : memref<8x16x32xbf16, #tpu.memory_space<vmem>>, vector<1x16x32xbf16>,
    %c7_i32 = arith.constant 7 : i32
    %195 = arith.index_cast %c7_i32 : i32 to index
    %c0_56 = arith.constant 0 : index
    %c0_57 = arith.constant 0 : index
    %196 = vector.load %arg7[%195, %c0_56, %c0_57] : memref<8x16x128xf32, #tpu.memory_space<vmem>>, vector<1x16x128xf32>
    %197 = vector.shape_cast %196 : vector<1x16x128xf32> to vector<16x128xf32>
    %198 = arith.truncf %189 : vector<16x32xf32> to vector<16x32xbf16>
    %cst_58 = arith.constant dense<0.000000e+00> : vector<16x128xf32>
    %199 = tpu.matmul %198, %4, %cst_58 {dimension_numbers = #tpu.dot_dimension_numbers<[1], [0], [0], [1], [0, 0, 1, 1], [], []>} : vector<16x32xbf16>, vector<32x128xbf16>, vector<16x128xf32> -> vector<16x128xf32>
    %200 = arith.addf %197, %199 : vector<16x128xf32>
    %201 = arith.mulf %200, %21 : vector<16x128xf32>
    %202 = math.tanh %201 : vector<16x128xf32>
    %203 = arith.mulf %202, %21 : vector<16x128xf32>
    %204 = arith.addf %203, %24 : vector<16x128xf32>
    %205 = vector.extract_strided_slice %204 {offsets = [0, 0], sizes = [16, 32], strides = [1, 1]} : vector<16x128xf32> to vector<16x32xf32>
    %206 = vector.extract_strided_slice %204 {offsets = [0, 32], sizes = [16, 32], strides = [1, 1]} : vector<16x128xf32> to vector<16x32xf32>
    %207 = vector.extract_strided_slice %204 {offsets = [0, 64], sizes = [16, 32], strides = [1, 1]} : vector<16x128xf32> to vector<16x32xf32>
    %208 = vector.extract_strided_slice %204 {offsets = [0, 96], sizes = [16, 32], strides = [1, 1]} : vector<16x128xf32> to vector<16x32xf32>
    %209 = arith.mulf %206, %187 : vector<16x32xf32>
    %210 = arith.mulf %205, %207 : vector<16x32xf32>
    %211 = arith.addf %209, %210 : vector<16x32xf32>
    %212 = math.tanh %211 : vector<16x32xf32>
    %213 = arith.mulf %208, %212 : vector<16x32xf32>
    %214 = arith.truncf %213 : vector<16x32xf32> to vector<16x32xbf16>
    %215 = arith.index_cast %c7_i32 : i32 to index
    %c0_59 = arith.constant 0 : index
    %c0_60 = arith.constant 0 : index
    %216 = vector.load %arg6[%215, %c0_59, %c0_60] : memref<8x16x32xbf16, #tpu.memory_space<vmem>>, vector<1x16x32xbf16>
    %217 = vector.shape_cast %216 : vector<1x16x32xbf16> to vector<16x32xbf16>
    %218 = vector.shape_cast %214 : vector<16x32xbf16> to vector<1x16x32xbf16>
    tpu.vector_store %arg6[%215, %c0_59, %c0_60], %218 {strides = array<i32>} : memref<8x16x32xbf16, #tpu.memory_space<vmem>>, vector<1x16x32xbf16>,
    %c8_i32 = arith.constant 8 : i32
    %c0_61 = arith.constant 0 : index
    %c0_62 = arith.constant 0 : index
    %219 = vector.load %arg8[%c0_61, %c0_62] : memref<16x32xf32, #tpu.memory_space<vmem>>, vector<16x32xf32>
    tpu.vector_store %arg8[%c0_61, %c0_62], %213 {strides = array<i32>} : memref<16x32xf32, #tpu.memory_space<vmem>>, vector<16x32xf32>,
    %c0_63 = arith.constant 0 : index
    %c0_64 = arith.constant 0 : index
    %220 = vector.load %arg9[%c0_63, %c0_64] : memref<16x32xf32, #tpu.memory_space<vmem>>, vector<16x32xf32>
    tpu.vector_store %arg9[%c0_63, %c0_64], %211 {strides = array<i32>} : memref<16x32xf32, #tpu.memory_space<vmem>>, vector<16x32xf32>,
    return
  }
  func.func @transform_0(%arg0: i32, %arg1: i32) -> (i32, i32, i32) {
    %c0_i32 = arith.constant 0 : i32
    %c0_i32_0 = arith.constant 0 : i32
    return %arg1, %arg0, %c0_i32 : i32, i32, i32
  }
  func.func @transform_1(%arg0: i32, %arg1: i32) -> (i32, i32) {
    %c0_i32 = arith.constant 0 : i32
    %c0_i32_0 = arith.constant 0 : i32
    %c0_i32_1 = arith.constant 0 : i32
    return %c0_i32, %c0_i32_0 : i32, i32
  }
  func.func @transform_2(%arg0: i32, %arg1: i32) -> (i32, i32) {
    %c0_i32 = arith.constant 0 : i32
    %c0_i32_0 = arith.constant 0 : i32
    %c0_i32_1 = arith.constant 0 : i32
    return %c0_i32, %c0_i32_0 : i32, i32
  }
  func.func @transform_3(%arg0: i32, %arg1: i32) -> (i32, i32) {
    %c0_i32 = arith.constant 0 : i32
    %c0_i32_0 = arith.constant 0 : i32
    %c0_i32_1 = arith.constant 0 : i32
    return %c0_i32, %c0_i32_0 : i32, i32
  }
  func.func @transform_4(%arg0: i32, %arg1: i32) -> (i32, i32, i32) {
    %c0_i32 = arith.constant 0 : i32
    %c0_i32_0 = arith.constant 0 : i32
    return %arg1, %arg0, %c0_i32 : i32, i32, i32
  }
}

</mosaic_0001>

<llo_original>
// kernel: lstm_model_forward.3
$region0: #{lstm_model_forward.3}
  #allocation0 [shape = 'u32[]', space=smem, size = 0x4, offset = 0x4, fixed_abs, tag = 'smem constant byte address 0x4 - core index']
  #allocation1 [shape = 'u32[72,128]{1,0:T(1,128)}', space=vmem, size = 0x9000, scoped, tag = 'internal scratch']
  #allocation2 [shape = 'f32[8,16,128]{2,1,0:T(8,128)}', space=vmem, size = 0x10000, scoped, tag = 'scratch operand']
  #allocation3 [shape = 'f32[16,32]{1,0:T(8,128)}', space=vmem, size = 0x2000, scoped, tag = 'scratch operand']
  #allocation4 [shape = 'f32[16,32]{1,0:T(8,128)}', space=vmem, size = 0x2000, scoped, tag = 'scratch operand']
  %s0 = inlined_call_operand.vmem [shape: bf16[8,16,8], index: 0, kind: input, shape index: {}]
  %s1 = inlined_call_operand.vmem [shape: bf16[8,128], index: 1, kind: input, shape index: {}]
  %s2 = inlined_call_operand.vmem [shape: bf16[32,128], index: 2, kind: input, shape index: {}]
  %s3 = inlined_call_operand.vmem [shape: f32[1,128], index: 3, kind: input, shape index: {}]
  %s4 = inlined_call_operand.vmem [shape: bf16[8,16,32], index: 4, kind: output, shape index: {}]
  %s5 = sld [smem:[#allocation0]]
  $region30: #{lstm_model_forward.3} parent=0
    _
  %s7 = ssub.s32 1, %s5
  %s8 = scalar_select 0, %s7, %s5
  // Predicated region
  $region2: #{lstm_model_forward.3} parent=0 // pred_check
    _
  $region3: #{lstm_model_forward.3} parent=0 // pred_check_branch
    %10 = sbr.rel (0) target = $region5
  $region4: #{lstm_model_forward.3} parent=0 // pred_region
    _
  $region5: #{lstm_model_forward.3} parent=0 // pred_fallthru
    _
  // Predicated region
  $region6: #{lstm_model_forward.3} parent=0 // pred_check
    _
  $region7: #{lstm_model_forward.3} parent=0 // pred_check_branch
    %12 = sbr.rel (0) target = $region9
  $region8: #{lstm_model_forward.3} parent=0 // pred_region
    _
  $region9: #{lstm_model_forward.3} parent=0 // pred_fallthru
    _
  // Predicated region
  $region10: #{lstm_model_forward.3} parent=0 // pred_check
    _
  $region11: #{lstm_model_forward.3} parent=0 // pred_check_branch
    %14 = sbr.rel (0) target = $region13
  $region12: #{lstm_model_forward.3} parent=0 // pred_region
    _
  $region13: #{lstm_model_forward.3} parent=0 // pred_fallthru
    _
  // Predicated region
  $region14: #{lstm_model_forward.3} parent=0 // pred_check
    _
  $region15: #{lstm_model_forward.3} parent=0 // pred_check_branch
    %16 = sbr.rel (0) target = $region17
  $region16: #{lstm_model_forward.3} parent=0 // pred_region
    _
  $region17: #{lstm_model_forward.3} parent=0 // pred_fallthru
    _
  %p18 = scmp.eq.s32.totalorder 0, 0
  // Predicated region
  $region18: #{lstm_model_forward.3} parent=0 // pred_check
    %p19 = pneg %p18
  $region19: #{lstm_model_forward.3} parent=0 // pred_check_branch
    %21 = sbr.rel (%p19) target = $region21
  $region20: #{lstm_model_forward.3} parent=0 // pred_region
    %vm22 = vcmask 261120
    %23 = vst.msk [vmem:[#allocation3] sm:$0xff] %vm22, 0.0
    %24 = vst.msk [vmem:[#allocation3 + $0x8] sm:$0xff] %vm22, 0.0
    %25 = vst.msk [vmem:[#allocation4] sm:$0xff] %vm22, 0.0
    %26 = vst.msk [vmem:[#allocation4 + $0x8] sm:$0xff] %vm22, 0.0
  $region21: #{lstm_model_forward.3} parent=0 // pred_fallthru
    _
  %v27 = vld [vmem:[%s1] sm:$0xf]
  %v28 = vld [vmem:[%s2] sm:$0xf]
  %v29 = vld [vmem:[%s2 + $0x4] sm:$0xf]
  %v30 = vld [vmem:[%s2 + $0x8] sm:$0xf]
  %v31 = vld [vmem:[%s2 + $0xc] sm:$0xf]
  %v32 = vld [vmem:[%s3] sm:$0x1]
  %v33 = vld [vmem:[%s0] sm:$0xf]
  %v34 = vld [vmem:[%s0 + $0x4] sm:$0xf]
  %v35 = vld [vmem:[%s0 + $0x8] sm:$0xf]
  %v36 = vld [vmem:[%s0 + $0xc] sm:$0xf]
  %v37 = vld [vmem:[%s0 + $0x10] sm:$0xf]
  %v38 = vld [vmem:[%s0 + $0x14] sm:$0xf]
  %v39 = vld [vmem:[%s0 + $0x18] sm:$0xf]
  %v40 = vld [vmem:[%s0 + $0x1c] sm:$0xf]
  %v41 = vld [vmem:[%s0 + $0x20] sm:$0xf]
  %v42 = vld [vmem:[%s0 + $0x24] sm:$0xf]
  %v43 = vld [vmem:[%s0 + $0x28] sm:$0xf]
  %v44 = vld [vmem:[%s0 + $0x2c] sm:$0xf]
  %v45 = vld [vmem:[%s0 + $0x30] sm:$0xf]
  %v46 = vld [vmem:[%s0 + $0x34] sm:$0xf]
  %v47 = vld [vmem:[%s0 + $0x38] sm:$0xf]
  %v48 = vld [vmem:[%s0 + $0x3c] sm:$0xf]
  %v50 = vperm.slane %v32, 0
  %v68 = vunpack.c.l.b16 %v33
  %v69 = vunpack.c.l.b16 %v34
  %v70 = vunpack.c.l.b16 %v35
  %v71 = vunpack.c.l.b16 %v36
  %v72 = vunpack.c.l.b16 %v37
  %v73 = vunpack.c.l.b16 %v38
  %v74 = vunpack.c.l.b16 %v39
  %v75 = vunpack.c.l.b16 %v40
  %v76 = vunpack.c.l.b16 %v41
  %v77 = vunpack.c.l.b16 %v42
  %v78 = vunpack.c.l.b16 %v43
  %v79 = vunpack.c.l.b16 %v44
  %v80 = vunpack.c.l.b16 %v45
  %v81 = vunpack.c.l.b16 %v46
  %v82 = vunpack.c.l.b16 %v47
  %v83 = vunpack.c.l.b16 %v48
  %v84 = vpack.c.b16 %v69, %v68
  %v85 = vpack.c.b16 %v71, %v70
  %v86 = vpack.c.b16 %v73, %v72
  %v87 = vpack.c.b16 %v75, %v74
  %v88 = vpack.c.b16 %v77, %v76
  %v89 = vpack.c.b16 %v79, %v78
  %v90 = vpack.c.b16 %v81, %v80
  %v91 = vpack.c.b16 %v83, %v82
  %vm92 = vcmask 64512
  %v94 = vsel %vm92, %v84, 0
  %v97 = vsel %vm92, %v85, 0
  %v100 = vsel %vm92, %v86, 0
  %v103 = vsel %vm92, %v87, 0
  %v106 = vsel %vm92, %v88, 0
  %v109 = vsel %vm92, %v89, 0
  %v112 = vsel %vm92, %v90, 0
  %v115 = vsel %vm92, %v91, 0
  %vm117 = vcmask 1043456
  %v119 = vsel %vm117, %v27, 0
  %121 = vmatpush.bf16.msra.mxu0 0
  %122 = vmatpush.bf16.msra.mxu0 0
  %123 = vmatpush.bf16.msra.mxu0 0
  %124 = vmatpush.bf16.msra.mxu0 0
  %125 = vmatpush.bf16.msra.mxu0 0
  %126 = vmatpush.bf16.msra.mxu0 0
  %127 = vmatpush.bf16.msra.mxu0 0
  %128 = vmatpush.bf16.msra.mxu0 %v119
  %129 = vmatmul.bf16.gmra.mxu0 %v94
  %v130 = vpop.f32.mrf.mxu0
  %v131 = vadd.f32 %v50, %v130
  %v132 = vpop.f32.mrf.mxu0
  %v133 = vadd.f32 %v50, %v132
  %134 = vmatmul.bf16.gmra.mxu0 %v97
  %v135 = vpop.f32.mrf.mxu0
  %v136 = vadd.f32 %v50, %v135
  %v137 = vpop.f32.mrf.mxu0
  %v138 = vadd.f32 %v50, %v137
  %139 = vmatmul.bf16.gmra.mxu0 %v100
  %v140 = vpop.f32.mrf.mxu0
  %v141 = vadd.f32 %v50, %v140
  %v142 = vpop.f32.mrf.mxu0
  %v143 = vadd.f32 %v50, %v142
  %144 = vmatmul.bf16.gmra.mxu0 %v103
  %v145 = vpop.f32.mrf.mxu0
  %v146 = vadd.f32 %v50, %v145
  %v147 = vpop.f32.mrf.mxu0
  %v148 = vadd.f32 %v50, %v147
  %149 = vmatmul.bf16.gmra.mxu0 %v106
  %v150 = vpop.f32.mrf.mxu0
  %v151 = vadd.f32 %v50, %v150
  %v152 = vpop.f32.mrf.mxu0
  %v153 = vadd.f32 %v50, %v152
  %154 = vmatmul.bf16.gmra.mxu0 %v109
  %v155 = vpop.f32.mrf.mxu0
  %v156 = vadd.f32 %v50, %v155
  %v157 = vpop.f32.mrf.mxu0
  %v158 = vadd.f32 %v50, %v157
  %159 = vmatmul.bf16.gmra.mxu0 %v112
  %v160 = vpop.f32.mrf.mxu0
  %v161 = vadd.f32 %v50, %v160
  %v162 = vpop.f32.mrf.mxu0
  %v163 = vadd.f32 %v50, %v162
  %164 = vmatmul.bf16.gmra.mxu0 %v115
  %v165 = vpop.f32.mrf.mxu0
  %v166 = vadd.f32 %v50, %v165
  %v167 = vpop.f32.mrf.mxu0
  %v168 = vadd.f32 %v50, %v167
  %169 = vdwg.mxu0
  %170 = vst [vmem:[#allocation2] sm:$0xff] %v131
  %171 = vst [vmem:[#allocation2 + $0x8] sm:$0xff] %v133
  %172 = vst [vmem:[#allocation2 + $0x10] sm:$0xff] %v136
  %173 = vst [vmem:[#allocation2 + $0x18] sm:$0xff] %v138
  %174 = vst [vmem:[#allocation2 + $0x20] sm:$0xff] %v141
  %175 = vst [vmem:[#allocation2 + $0x28] sm:$0xff] %v143
  %176 = vst [vmem:[#allocation2 + $0x30] sm:$0xff] %v146
  %177 = vst [vmem:[#allocation2 + $0x38] sm:$0xff] %v148
  %178 = vst [vmem:[#allocation2 + $0x40] sm:$0xff] %v151
  %179 = vst [vmem:[#allocation2 + $0x48] sm:$0xff] %v153
  %180 = vst [vmem:[#allocation2 + $0x50] sm:$0xff] %v156
  %181 = vst [vmem:[#allocation2 + $0x58] sm:$0xff] %v158
  %182 = vst [vmem:[#allocation2 + $0x60] sm:$0xff] %v161
  %183 = vst [vmem:[#allocation2 + $0x68] sm:$0xff] %v163
  %184 = vst [vmem:[#allocation2 + $0x70] sm:$0xff] %v166
  %185 = vst [vmem:[#allocation2 + $0x78] sm:$0xff] %v168
  %v186 = vlaneseq
  %v187 = vand.u32 %v186, 127
  %vm188 = vcmp.ge.s32.totalorder %v187, 64
  %vm189 = vcmp.lt.s32.totalorder %v187, 96
  %vm190 = vmand %vm188, %vm189
  %v191 = vsel %vm190, 1.0, 0.5
  %v192 = vsel %vm190, 0.0, 0.5
  %v193 = vld [vmem:[#allocation3] sm:$0xff]
  %v194 = vld [vmem:[#allocation3 + $0x8] sm:$0xff]
  %v195 = vld [vmem:[#allocation4] sm:$0xff]
  %v196 = vld [vmem:[#allocation4 + $0x8] sm:$0xff]
  %v197 = vld [vmem:[#allocation2] sm:$0xff]
  %v198 = vld [vmem:[#allocation2 + $0x8] sm:$0xff]
  %v199 = vpack.c.bf16 %v194, %v193
  %v204 = vunpack.c.l.b16 %v28
  %v205 = vunpack.c.l.b16 %v29
  %v206 = vunpack.c.l.b16 %v30
  %v207 = vunpack.c.l.b16 %v31
  %v208 = vpack.c.b16 %v205, %v204
  %v209 = vpack.c.b16 %v207, %v206
  %vm212 = vcmask 261120
  %v214 = vsel %vm212, %v199, 0
  %216 = vmatpush.bf16.msra.mxu0 0
  %217 = vmatpush.bf16.msra.mxu0 0
  %218 = vmatpush.bf16.msra.mxu0 0
  %219 = vmatpush.bf16.msra.mxu0 0
  %220 = vmatpush.bf16.msra.mxu0 0
  %221 = vmatpush.bf16.msra.mxu0 0
  %222 = vmatpush.bf16.msra.mxu0 %v209
  %223 = vmatpush.bf16.msra.mxu0 %v208
  %224 = vmatmul.bf16.gmra.mxu0 %v214
  %v225 = vpop.f32.mrf.mxu0
  %v226 = vadd.f32 0.0, %v225
  %v227 = vpop.f32.mrf.mxu0
  %v228 = vadd.f32 0.0, %v227
  %229 = vdwg.mxu0
  %v230 = vadd.f32 %v197, %v226
  %v231 = vadd.f32 %v198, %v228
  %v232 = vmul.f32 %v230, %v191
  %v233 = vmul.f32 %v231, %v191
  %v234 = vtanh.pop %v232
  %v235 = vtanh.pop %v233
  %v236 = vmul.f32 %v234, %v191
  %v237 = vmul.f32 %v235, %v191
  %v238 = vadd.f32 %v236, %v192
  %v239 = vadd.f32 %v237, %v192
  %242 = vrot.lane.b32.xlu0 %v195, 32
  %v243 = vpop.permute.xlu0 %242
  %244 = vrot.lane.b32.xlu0 %v196, 32
  %v245 = vpop.permute.xlu0 %244
  %v248 = vmul.f32 %v238, %v243
  %v249 = vmul.f32 %v239, %v245
  %252 = vrot.lane.b32.xlu0 %v238, 64
  %v253 = vpop.permute.xlu0 %252
  %254 = vrot.lane.b32.xlu0 %v239, 64
  %v255 = vpop.permute.xlu0 %254
  %v258 = vmul.f32 %v238, %v253
  %v259 = vmul.f32 %v239, %v255
  %262 = vrot.lane.b32.xlu0 %v258, 32
  %v263 = vpop.permute.xlu0 %262
  %264 = vrot.lane.b32.xlu0 %v259, 32
  %v265 = vpop.permute.xlu0 %264
  %v268 = vadd.f32 %v248, %v263
  %v269 = vadd.f32 %v249, %v265
  %v270 = vtanh.pop %v268
  %v271 = vtanh.pop %v269
  %274 = vrot.lane.b32.xlu0 %v270, 64
  %v275 = vpop.permute.xlu0 %274
  %276 = vrot.lane.b32.xlu0 %v271, 64
  %v277 = vpop.permute.xlu0 %276
  %v280 = vmul.f32 %v238, %v275
  %v281 = vmul.f32 %v239, %v277
  %v282 = vpack.c.bf16 %v280, %v280
  %v283 = vpack.c.bf16 %v281, %v281
  %286 = vrot.lane.b32.xlu0 %v282, 32
  %v287 = vpop.permute.xlu0 %286
  %288 = vrot.lane.b32.xlu0 %v283, 32
  %v289 = vpop.permute.xlu0 %288
  %vm292 = vcmask 257024
  %293 = vst.msk [vmem:[%s4] sm:$0xf] %vm292, %v287
  %294 = vst.msk [vmem:[%s4 + $0x4] sm:$0xf] %vm292, %v289
  %s295 = scalar_lea.vmem [#allocation2], 16
  %v296 = vld [vmem:[%s295] sm:$0xff]
  %v297 = vld [vmem:[%s295 + $0x8] sm:$0xff]
  %v298 = vunpack.c.l.b16 %v282
  %v299 = vunpack.c.l.b16 %v283
  %v300 = vpack.c.b16 %v299, %v298
  %301 = vrot.lane.b32.xlu0 %v300, 32
  %v302 = vpop.permute.xlu0 %301
  %v304 = vsel %vm212, %v302, 0
  %306 = vmatpush.bf16.msra.mxu0 0
  %307 = vmatpush.bf16.msra.mxu0 0
  %308 = vmatpush.bf16.msra.mxu0 0
  %309 = vmatpush.bf16.msra.mxu0 0
  %310 = vmatpush.bf16.msra.mxu0 0
  %311 = vmatpush.bf16.msra.mxu0 0
  %312 = vmatpush.bf16.msra.mxu0 %v209
  %313 = vmatpush.bf16.msra.mxu0 %v208
  %314 = vmatmul.bf16.gmra.mxu0 %v304
  %v315 = vpop.f32.mrf.mxu0
  %v316 = vadd.f32 0.0, %v315
  %v317 = vpop.f32.mrf.mxu0
  %v318 = vadd.f32 0.0, %v317
  %319 = vdwg.mxu0
  %v320 = vadd.f32 %v296, %v316
  %v321 = vadd.f32 %v297, %v318
  %v322 = vmul.f32 %v320, %v191
  %v323 = vmul.f32 %v321, %v191
  %v324 = vtanh.pop %v322
  %v325 = vtanh.pop %v323
  %v326 = vmul.f32 %v324, %v191
  %v327 = vmul.f32 %v325, %v191
  %v328 = vadd.f32 %v326, %v192
  %v329 = vadd.f32 %v327, %v192
  %v330 = vmul.f32 %v328, %v268
  %v331 = vmul.f32 %v329, %v269
  %334 = vrot.lane.b32.xlu0 %v328, 64
  %v335 = vpop.permute.xlu0 %334
  %336 = vrot.lane.b32.xlu0 %v329, 64
  %v337 = vpop.permute.xlu0 %336
  %v340 = vmul.f32 %v328, %v335
  %v341 = vmul.f32 %v329, %v337
  %344 = vrot.lane.b32.xlu0 %v340, 32
  %v345 = vpop.permute.xlu0 %344
  %346 = vrot.lane.b32.xlu0 %v341, 32
  %v347 = vpop.permute.xlu0 %346
  %v350 = vadd.f32 %v330, %v345
  %v351 = vadd.f32 %v331, %v347
  %v352 = vtanh.pop %v350
  %v353 = vtanh.pop %v351
  %356 = vrot.lane.b32.xlu0 %v352, 64
  %v357 = vpop.permute.xlu0 %356
  %358 = vrot.lane.b32.xlu0 %v353, 64
  %v359 = vpop.permute.xlu0 %358
  %v362 = vmul.f32 %v328, %v357
  %v363 = vmul.f32 %v329, %v359
  %v364 = vpack.c.bf16 %v362, %v362
  %v365 = vpack.c.bf16 %v363, %v363
  %368 = vrot.lane.b32.xlu0 %v364, 32
  %v369 = vpop.permute.xlu0 %368
  %370 = vrot.lane.b32.xlu0 %v365, 32
  %v371 = vpop.permute.xlu0 %370
  %s374 = scalar_lea.vmem %s4, 8
  %375 = vst.msk [vmem:[%s374] sm:$0xf] %vm292, %v369
  %376 = vst.msk [vmem:[%s374 + $0x4] sm:$0xf] %vm292, %v371
  %s377 = scalar_lea.vmem [#allocation2], 32
  %v378 = vld [vmem:[%s377] sm:$0xff]
  %v379 = vld [vmem:[%s377 + $0x8] sm:$0xff]
  %v380 = vunpack.c.l.b16 %v364
  %v381 = vunpack.c.l.b16 %v365
  %v382 = vpack.c.b16 %v381, %v380
  %383 = vrot.lane.b32.xlu0 %v382, 32
  %v384 = vpop.permute.xlu0 %383
  %v386 = vsel %vm212, %v384, 0
  %388 = vmatpush.bf16.msra.mxu0 0
  %389 = vmatpush.bf16.msra.mxu0 0
  %390 = vmatpush.bf16.msra.mxu0 0
  %391 = vmatpush.bf16.msra.mxu0 0
  %392 = vmatpush.bf16.msra.mxu0 0
  %393 = vmatpush.bf16.msra.mxu0 0
  %394 = vmatpush.bf16.msra.mxu0 %v209
  %395 = vmatpush.bf16.msra.mxu0 %v208
  %396 = vmatmul.bf16.gmra.mxu0 %v386
  %v397 = vpop.f32.mrf.mxu0
  %v398 = vadd.f32 0.0, %v397
  %v399 = vpop.f32.mrf.mxu0
  %v400 = vadd.f32 0.0, %v399
  %401 = vdwg.mxu0
  %v402 = vadd.f32 %v378, %v398
  %v403 = vadd.f32 %v379, %v400
  %v404 = vmul.f32 %v402, %v191
  %v405 = vmul.f32 %v403, %v191
  %v406 = vtanh.pop %v404
  %v407 = vtanh.pop %v405
  %v408 = vmul.f32 %v406, %v191
  %v409 = vmul.f32 %v407, %v191
  %v410 = vadd.f32 %v408, %v192
  %v411 = vadd.f32 %v409, %v192
  %v412 = vmul.f32 %v410, %v350
  %v413 = vmul.f32 %v411, %v351
  %416 = vrot.lane.b32.xlu0 %v410, 64
  %v417 = vpop.permute.xlu0 %416
  %418 = vrot.lane.b32.xlu0 %v411, 64
  %v419 = vpop.permute.xlu0 %418
  %v422 = vmul.f32 %v410, %v417
  %v423 = vmul.f32 %v411, %v419
  %426 = vrot.lane.b32.xlu0 %v422, 32
  %v427 = vpop.permute.xlu0 %426
  %428 = vrot.lane.b32.xlu0 %v423, 32
  %v429 = vpop.permute.xlu0 %428
  %v432 = vadd.f32 %v412, %v427
  %v433 = vadd.f32 %v413, %v429
  %v434 = vtanh.pop %v432
  %v435 = vtanh.pop %v433
  %438 = vrot.lane.b32.xlu0 %v434, 64
  %v439 = vpop.permute.xlu0 %438
  %440 = vrot.lane.b32.xlu0 %v435, 64
  %v441 = vpop.permute.xlu0 %440
  %v444 = vmul.f32 %v410, %v439
  %v445 = vmul.f32 %v411, %v441
  %v446 = vpack.c.bf16 %v444, %v444
  %v447 = vpack.c.bf16 %v445, %v445
  %450 = vrot.lane.b32.xlu0 %v446, 32
  %v451 = vpop.permute.xlu0 %450
  %452 = vrot.lane.b32.xlu0 %v447, 32
  %v453 = vpop.permute.xlu0 %452
  %s456 = scalar_lea.vmem %s4, 16
  %457 = vst.msk [vmem:[%s456] sm:$0xf] %vm292, %v451
  %458 = vst.msk [vmem:[%s456 + $0x4] sm:$0xf] %vm292, %v453
  %s459 = scalar_lea.vmem [#allocation2], 48
  %v460 = vld [vmem:[%s459] sm:$0xff]
  %v461 = vld [vmem:[%s459 + $0x8] sm:$0xff]
  %v462 = vunpack.c.l.b16 %v446
  %v463 = vunpack.c.l.b16 %v447
  %v464 = vpack.c.b16 %v463, %v462
  %465 = vrot.lane.b32.xlu0 %v464, 32
  %v466 = vpop.permute.xlu0 %465
  %v468 = vsel %vm212, %v466, 0
  %470 = vmatpush.bf16.msra.mxu0 0
  %471 = vmatpush.bf16.msra.mxu0 0
  %472 = vmatpush.bf16.msra.mxu0 0
  %473 = vmatpush.bf16.msra.mxu0 0
  %474 = vmatpush.bf16.msra.mxu0 0
  %475 = vmatpush.bf16.msra.mxu0 0
  %476 = vmatpush.bf16.msra.mxu0 %v209
  %477 = vmatpush.bf16.msra.mxu0 %v208
  %478 = vmatmul.bf16.gmra.mxu0 %v468
  %v479 = vpop.f32.mrf.mxu0
  %v480 = vadd.f32 0.0, %v479
  %v481 = vpop.f32.mrf.mxu0
  %v482 = vadd.f32 0.0, %v481
  %483 = vdwg.mxu0
  %v484 = vadd.f32 %v460, %v480
  %v485 = vadd.f32 %v461, %v482
  %v486 = vmul.f32 %v484, %v191
  %v487 = vmul.f32 %v485, %v191
  %v488 = vtanh.pop %v486
  %v489 = vtanh.pop %v487
  %v490 = vmul.f32 %v488, %v191
  %v491 = vmul.f32 %v489, %v191
  %v492 = vadd.f32 %v490, %v192
  %v493 = vadd.f32 %v491, %v192
  %v494 = vmul.f32 %v492, %v432
  %v495 = vmul.f32 %v493, %v433
  %498 = vrot.lane.b32.xlu0 %v492, 64
  %v499 = vpop.permute.xlu0 %498
  %500 = vrot.lane.b32.xlu0 %v493, 64
  %v501 = vpop.permute.xlu0 %500
  %v504 = vmul.f32 %v492, %v499
  %v505 = vmul.f32 %v493, %v501
  %508 = vrot.lane.b32.xlu0 %v504, 32
  %v509 = vpop.permute.xlu0 %508
  %510 = vrot.lane.b32.xlu0 %v505, 32
  %v511 = vpop.permute.xlu0 %510
  %v514 = vadd.f32 %v494, %v509
  %v515 = vadd.f32 %v495, %v511
  %v516 = vtanh.pop %v514
  %v517 = vtanh.pop %v515
  %520 = vrot.lane.b32.xlu0 %v516, 64
  %v521 = vpop.permute.xlu0 %520
  %522 = vrot.lane.b32.xlu0 %v517, 64
  %v523 = vpop.permute.xlu0 %522
  %v526 = vmul.f32 %v492, %v521
  %v527 = vmul.f32 %v493, %v523
  %v528 = vpack.c.bf16 %v526, %v526
  %v529 = vpack.c.bf16 %v527, %v527
  %532 = vrot.lane.b32.xlu0 %v528, 32
  %v533 = vpop.permute.xlu0 %532
  %534 = vrot.lane.b32.xlu0 %v529, 32
  %v535 = vpop.permute.xlu0 %534
  %s538 = scalar_lea.vmem %s4, 24
  %539 = vst.msk [vmem:[%s538] sm:$0xf] %vm292, %v533
  %540 = vst.msk [vmem:[%s538 + $0x4] sm:$0xf] %vm292, %v535
  %s541 = scalar_lea.vmem [#allocation2], 64
  %v542 = vld [vmem:[%s541] sm:$0xff]
  %v543 = vld [vmem:[%s541 + $0x8] sm:$0xff]
  %v544 = vunpack.c.l.b16 %v528
  %v545 = vunpack.c.l.b16 %v529
  %v546 = vpack.c.b16 %v545, %v544
  %547 = vrot.lane.b32.xlu0 %v546, 32
  %v548 = vpop.permute.xlu0 %547
  %v550 = vsel %vm212, %v548, 0
  %552 = vmatpush.bf16.msra.mxu0 0
  %553 = vmatpush.bf16.msra.mxu0 0
  %554 = vmatpush.bf16.msra.mxu0 0
  %555 = vmatpush.bf16.msra.mxu0 0
  %556 = vmatpush.bf16.msra.mxu0 0
  %557 = vmatpush.bf16.msra.mxu0 0
  %558 = vmatpush.bf16.msra.mxu0 %v209
  %559 = vmatpush.bf16.msra.mxu0 %v208
  %560 = vmatmul.bf16.gmra.mxu0 %v550
  %v561 = vpop.f32.mrf.mxu0
  %v562 = vadd.f32 0.0, %v561
  %v563 = vpop.f32.mrf.mxu0
  %v564 = vadd.f32 0.0, %v563
  %565 = vdwg.mxu0
  %v566 = vadd.f32 %v542, %v562
  %v567 = vadd.f32 %v543, %v564
  %v568 = vmul.f32 %v566, %v191
  %v569 = vmul.f32 %v567, %v191
  %v570 = vtanh.pop %v568
  %v571 = vtanh.pop %v569
  %v572 = vmul.f32 %v570, %v191
  %v573 = vmul.f32 %v571, %v191
  %v574 = vadd.f32 %v572, %v192
  %v575 = vadd.f32 %v573, %v192
  %v576 = vmul.f32 %v574, %v514
  %v577 = vmul.f32 %v575, %v515
  %580 = vrot.lane.b32.xlu0 %v574, 64
  %v581 = vpop.permute.xlu0 %580
  %582 = vrot.lane.b32.xlu0 %v575, 64
  %v583 = vpop.permute.xlu0 %582
  %v586 = vmul.f32 %v574, %v581
  %v587 = vmul.f32 %v575, %v583
  %590 = vrot.lane.b32.xlu0 %v586, 32
  %v591 = vpop.permute.xlu0 %590
  %592 = vrot.lane.b32.xlu0 %v587, 32
  %v593 = vpop.permute.xlu0 %592
  %v596 = vadd.f32 %v576, %v591
  %v597 = vadd.f32 %v577, %v593
  %v598 = vtanh.pop %v596
  %v599 = vtanh.pop %v597
  %602 = vrot.lane.b32.xlu0 %v598, 64
  %v603 = vpop.permute.xlu0 %602
  %604 = vrot.lane.b32.xlu0 %v599, 64
  %v605 = vpop.permute.xlu0 %604
  %v608 = vmul.f32 %v574, %v603
  %v609 = vmul.f32 %v575, %v605
  %v610 = vpack.c.bf16 %v608, %v608
  %v611 = vpack.c.bf16 %v609, %v609
  %614 = vrot.lane.b32.xlu0 %v610, 32
  %v615 = vpop.permute.xlu0 %614
  %616 = vrot.lane.b32.xlu0 %v611, 32
  %v617 = vpop.permute.xlu0 %616
  %s620 = scalar_lea.vmem %s4, 32
  %621 = vst.msk [vmem:[%s620] sm:$0xf] %vm292, %v615
  %622 = vst.msk [vmem:[%s620 + $0x4] sm:$0xf] %vm292, %v617
  %s623 = scalar_lea.vmem [#allocation2], 80
  %v624 = vld [vmem:[%s623] sm:$0xff]
  %v625 = vld [vmem:[%s623 + $0x8] sm:$0xff]
  %v626 = vunpack.c.l.b16 %v610
  %v627 = vunpack.c.l.b16 %v611
  %v628 = vpack.c.b16 %v627, %v626
  %629 = vrot.lane.b32.xlu0 %v628, 32
  %v630 = vpop.permute.xlu0 %629
  %v632 = vsel %vm212, %v630, 0
  %634 = vmatpush.bf16.msra.mxu0 0
  %635 = vmatpush.bf16.msra.mxu0 0
  %636 = vmatpush.bf16.msra.mxu0 0
  %637 = vmatpush.bf16.msra.mxu0 0
  %638 = vmatpush.bf16.msra.mxu0 0
  %639 = vmatpush.bf16.msra.mxu0 0
  %640 = vmatpush.bf16.msra.mxu0 %v209
  %641 = vmatpush.bf16.msra.mxu0 %v208
  %642 = vmatmul.bf16.gmra.mxu0 %v632
  %v643 = vpop.f32.mrf.mxu0
  %v644 = vadd.f32 0.0, %v643
  %v645 = vpop.f32.mrf.mxu0
  %v646 = vadd.f32 0.0, %v645
  %647 = vdwg.mxu0
  %v648 = vadd.f32 %v624, %v644
  %v649 = vadd.f32 %v625, %v646
  %v650 = vmul.f32 %v648, %v191
  %v651 = vmul.f32 %v649, %v191
  %v652 = vtanh.pop %v650
  %v653 = vtanh.pop %v651
  %v654 = vmul.f32 %v652, %v191
  %v655 = vmul.f32 %v653, %v191
  %v656 = vadd.f32 %v654, %v192
  %v657 = vadd.f32 %v655, %v192
  %v658 = vmul.f32 %v656, %v596
  %v659 = vmul.f32 %v657, %v597
  %662 = vrot.lane.b32.xlu0 %v656, 64
  %v663 = vpop.permute.xlu0 %662
  %664 = vrot.lane.b32.xlu0 %v657, 64
  %v665 = vpop.permute.xlu0 %664
  %v668 = vmul.f32 %v656, %v663
  %v669 = vmul.f32 %v657, %v665
  %672 = vrot.lane.b32.xlu0 %v668, 32
  %v673 = vpop.permute.xlu0 %672
  %674 = vrot.lane.b32.xlu0 %v669, 32
  %v675 = vpop.permute.xlu0 %674
  %v678 = vadd.f32 %v658, %v673
  %v679 = vadd.f32 %v659, %v675
  %v680 = vtanh.pop %v678
  %v681 = vtanh.pop %v679
  %684 = vrot.lane.b32.xlu0 %v680, 64
  %v685 = vpop.permute.xlu0 %684
  %686 = vrot.lane.b32.xlu0 %v681, 64
  %v687 = vpop.permute.xlu0 %686
  %v690 = vmul.f32 %v656, %v685
  %v691 = vmul.f32 %v657, %v687
  %v692 = vpack.c.bf16 %v690, %v690
  %v693 = vpack.c.bf16 %v691, %v691
  %696 = vrot.lane.b32.xlu0 %v692, 32
  %v697 = vpop.permute.xlu0 %696
  %698 = vrot.lane.b32.xlu0 %v693, 32
  %v699 = vpop.permute.xlu0 %698
  %s702 = scalar_lea.vmem %s4, 40
  %703 = vst.msk [vmem:[%s702] sm:$0xf] %vm292, %v697
  %704 = vst.msk [vmem:[%s702 + $0x4] sm:$0xf] %vm292, %v699
  %s705 = scalar_lea.vmem [#allocation2], 96
  %v706 = vld [vmem:[%s705] sm:$0xff]
  %v707 = vld [vmem:[%s705 + $0x8] sm:$0xff]
  %v708 = vunpack.c.l.b16 %v692
  %v709 = vunpack.c.l.b16 %v693
  %v710 = vpack.c.b16 %v709, %v708
  %711 = vrot.lane.b32.xlu0 %v710, 32
  %v712 = vpop.permute.xlu0 %711
  %v714 = vsel %vm212, %v712, 0
  %716 = vmatpush.bf16.msra.mxu0 0
  %717 = vmatpush.bf16.msra.mxu0 0
  %718 = vmatpush.bf16.msra.mxu0 0
  %719 = vmatpush.bf16.msra.mxu0 0
  %720 = vmatpush.bf16.msra.mxu0 0
  %721 = vmatpush.bf16.msra.mxu0 0
  %722 = vmatpush.bf16.msra.mxu0 %v209
  %723 = vmatpush.bf16.msra.mxu0 %v208
  %724 = vmatmul.bf16.gmra.mxu0 %v714
  %v725 = vpop.f32.mrf.mxu0
  %v726 = vadd.f32 0.0, %v725
  %v727 = vpop.f32.mrf.mxu0
  %v728 = vadd.f32 0.0, %v727
  %729 = vdwg.mxu0
  %v730 = vadd.f32 %v706, %v726
  %v731 = vadd.f32 %v707, %v728
  %v732 = vmul.f32 %v730, %v191
  %v733 = vmul.f32 %v731, %v191
  %v734 = vtanh.pop %v732
  %v735 = vtanh.pop %v733
  %v736 = vmul.f32 %v734, %v191
  %v737 = vmul.f32 %v735, %v191
  %v738 = vadd.f32 %v736, %v192
  %v739 = vadd.f32 %v737, %v192
  %v740 = vmul.f32 %v738, %v678
  %v741 = vmul.f32 %v739, %v679
  %744 = vrot.lane.b32.xlu0 %v738, 64
  %v745 = vpop.permute.xlu0 %744
  %746 = vrot.lane.b32.xlu0 %v739, 64
  %v747 = vpop.permute.xlu0 %746
  %v750 = vmul.f32 %v738, %v745
  %v751 = vmul.f32 %v739, %v747
  %754 = vrot.lane.b32.xlu0 %v750, 32
  %v755 = vpop.permute.xlu0 %754
  %756 = vrot.lane.b32.xlu0 %v751, 32
  %v757 = vpop.permute.xlu0 %756
  %v760 = vadd.f32 %v740, %v755
  %v761 = vadd.f32 %v741, %v757
  %v762 = vtanh.pop %v760
  %v763 = vtanh.pop %v761
  %766 = vrot.lane.b32.xlu0 %v762, 64
  %v767 = vpop.permute.xlu0 %766
  %768 = vrot.lane.b32.xlu0 %v763, 64
  %v769 = vpop.permute.xlu0 %768
  %v772 = vmul.f32 %v738, %v767
  %v773 = vmul.f32 %v739, %v769
  %v774 = vpack.c.bf16 %v772, %v772
  %v775 = vpack.c.bf16 %v773, %v773
  %778 = vrot.lane.b32.xlu0 %v774, 32
  %v779 = vpop.permute.xlu0 %778
  %780 = vrot.lane.b32.xlu0 %v775, 32
  %v781 = vpop.permute.xlu0 %780
  %s784 = scalar_lea.vmem %s4, 48
  %785 = vst.msk [vmem:[%s784] sm:$0xf] %vm292, %v779
  %786 = vst.msk [vmem:[%s784 + $0x4] sm:$0xf] %vm292, %v781
  %s787 = scalar_lea.vmem [#allocation2], 112
  %v788 = vld [vmem:[%s787] sm:$0xff]
  %v789 = vld [vmem:[%s787 + $0x8] sm:$0xff]
  %v790 = vunpack.c.l.b16 %v774
  %v791 = vunpack.c.l.b16 %v775
  %v792 = vpack.c.b16 %v791, %v790
  %793 = vrot.lane.b32.xlu0 %v792, 32
  %v794 = vpop.permute.xlu0 %793
  %v796 = vsel %vm212, %v794, 0
  %798 = vmatpush.bf16.msra.mxu0 0
  %799 = vmatpush.bf16.msra.mxu0 0
  %800 = vmatpush.bf16.msra.mxu0 0
  %801 = vmatpush.bf16.msra.mxu0 0
  %802 = vmatpush.bf16.msra.mxu0 0
  %803 = vmatpush.bf16.msra.mxu0 0
  %804 = vmatpush.bf16.msra.mxu0 %v209
  %805 = vmatpush.bf16.msra.mxu0 %v208
  %806 = vmatmul.bf16.gmra.mxu0 %v796
  %v807 = vpop.f32.mrf.mxu0
  %v808 = vadd.f32 0.0, %v807
  %v809 = vpop.f32.mrf.mxu0
  %v810 = vadd.f32 0.0, %v809
  %811 = vdwg.mxu0
  %v812 = vadd.f32 %v788, %v808
  %v813 = vadd.f32 %v789, %v810
  %v814 = vmul.f32 %v812, %v191
  %v815 = vmul.f32 %v813, %v191
  %v816 = vtanh.pop %v814
  %v817 = vtanh.pop %v815
  %v818 = vmul.f32 %v816, %v191
  %v819 = vmul.f32 %v817, %v191
  %v820 = vadd.f32 %v818, %v192
  %v821 = vadd.f32 %v819, %v192
  %v822 = vmul.f32 %v820, %v760
  %v823 = vmul.f32 %v821, %v761
  %826 = vrot.lane.b32.xlu0 %v820, 64
  %v827 = vpop.permute.xlu0 %826
  %828 = vrot.lane.b32.xlu0 %v821, 64
  %v829 = vpop.permute.xlu0 %828
  %v832 = vmul.f32 %v820, %v827
  %v833 = vmul.f32 %v821, %v829
  %836 = vrot.lane.b32.xlu0 %v832, 32
  %v837 = vpop.permute.xlu0 %836
  %838 = vrot.lane.b32.xlu0 %v833, 32
  %v839 = vpop.permute.xlu0 %838
  %v842 = vadd.f32 %v822, %v837
  %v843 = vadd.f32 %v823, %v839
  %v844 = vtanh.pop %v842
  %v845 = vtanh.pop %v843
  %848 = vrot.lane.b32.xlu0 %v844, 64
  %v849 = vpop.permute.xlu0 %848
  %850 = vrot.lane.b32.xlu0 %v845, 64
  %v851 = vpop.permute.xlu0 %850
  %v854 = vmul.f32 %v820, %v849
  %v855 = vmul.f32 %v821, %v851
  %v856 = vpack.c.bf16 %v854, %v854
  %v857 = vpack.c.bf16 %v855, %v855
  %860 = vrot.lane.b32.xlu0 %v856, 32
  %v861 = vpop.permute.xlu0 %860
  %862 = vrot.lane.b32.xlu0 %v857, 32
  %v863 = vpop.permute.xlu0 %862
  %s866 = scalar_lea.vmem %s4, 56
  %867 = vst.msk [vmem:[%s866] sm:$0xf] %vm292, %v861
  %868 = vst.msk [vmem:[%s866 + $0x4] sm:$0xf] %vm292, %v863
  %871 = vrot.lane.b32.xlu0 %v854, 32
  %v872 = vpop.permute.xlu0 %871
  %873 = vrot.lane.b32.xlu0 %v855, 32
  %v874 = vpop.permute.xlu0 %873
  %877 = vst.msk [vmem:[#allocation3] sm:$0xff] %vm212, %v872
  %878 = vst.msk [vmem:[#allocation3 + $0x8] sm:$0xff] %vm212, %v874
  %881 = vrot.lane.b32.xlu0 %v842, 96
  %v882 = vpop.permute.xlu0 %881
  %883 = vrot.lane.b32.xlu0 %v843, 96
  %v884 = vpop.permute.xlu0 %883
  %887 = vst.msk [vmem:[#allocation4] sm:$0xff] %vm212, %v882
  %888 = vst.msk [vmem:[#allocation4 + $0x8] sm:$0xff] %vm212, %v884
  // Predicated region
  $region22: #{lstm_model_forward.3} parent=0 // pred_check
    _
  $region23: #{lstm_model_forward.3} parent=0 // pred_check_branch
    %890 = sbr.rel (0) target = $region25
  $region24: #{lstm_model_forward.3} parent=0 // pred_region
    _
  $region25: #{lstm_model_forward.3} parent=0 // pred_fallthru
    _
  // Predicated region
  $region26: #{lstm_model_forward.3} parent=0 // pred_check
    _
  $region27: #{lstm_model_forward.3} parent=0 // pred_check_branch
    %892 = sbr.rel (0) target = $region29
  $region28: #{lstm_model_forward.3} parent=0 // pred_region
    _
  $region29: #{lstm_model_forward.3} parent=0 // pred_fallthru
    _

// kernel: lstm_model_forward.4
$region0: #{lstm_model_forward.4}
  #allocation0 [shape = 'u32[]', space=smem, size = 0x4, offset = 0x4, fixed_abs, tag = 'smem constant byte address 0x4 - core index']
  #allocation1 [shape = 'u32[72,128]{1,0:T(1,128)}', space=vmem, size = 0x9000, scoped, tag = 'internal scratch']
  #allocation2 [shape = 'f32[8,16,128]{2,1,0:T(8,128)}', space=vmem, size = 0x10000, scoped, tag = 'scratch operand']
  #allocation3 [shape = 'f32[16,32]{1,0:T(8,128)}', space=vmem, size = 0x2000, scoped, tag = 'scratch operand']
  #allocation4 [shape = 'f32[16,32]{1,0:T(8,128)}', space=vmem, size = 0x2000, scoped, tag = 'scratch operand']
  %s0 = inlined_call_operand.vmem [shape: bf16[8,16,32], index: 0, kind: input, shape index: {}]
  %s1 = inlined_call_operand.vmem [shape: bf16[32,128], index: 1, kind: input, shape index: {}]
  %s2 = inlined_call_operand.vmem [shape: bf16[32,128], index: 2, kind: input, shape index: {}]
  %s3 = inlined_call_operand.vmem [shape: f32[1,128], index: 3, kind: input, shape index: {}]
  %s4 = inlined_call_operand.vmem [shape: bf16[8,16,32], index: 4, kind: output, shape index: {}]
  %s5 = sld [smem:[#allocation0]]
  $region30: #{lstm_model_forward.4} parent=0
    _
  %s7 = ssub.s32 1, %s5
  %s8 = scalar_select 0, %s7, %s5
  // Predicated region
  $region2: #{lstm_model_forward.4} parent=0 // pred_check
    _
  $region3: #{lstm_model_forward.4} parent=0 // pred_check_branch
    %10 = sbr.rel (0) target = $region5
  $region4: #{lstm_model_forward.4} parent=0 // pred_region
    _
  $region5: #{lstm_model_forward.4} parent=0 // pred_fallthru
    _
  // Predicated region
  $region6: #{lstm_model_forward.4} parent=0 // pred_check
    _
  $region7: #{lstm_model_forward.4} parent=0 // pred_check_branch
    %12 = sbr.rel (0) target = $region9
  $region8: #{lstm_model_forward.4} parent=0 // pred_region
    _
  $region9: #{lstm_model_forward.4} parent=0 // pred_fallthru
    _
  // Predicated region
  $region10: #{lstm_model_forward.4} parent=0 // pred_check
    _
  $region11: #{lstm_model_forward.4} parent=0 // pred_check_branch
    %14 = sbr.rel (0) target = $region13
  $region12: #{lstm_model_forward.4} parent=0 // pred_region
    _
  $region13: #{lstm_model_forward.4} parent=0 // pred_fallthru
    _
  // Predicated region
  $region14: #{lstm_model_forward.4} parent=0 // pred_check
    _
  $region15: #{lstm_model_forward.4} parent=0 // pred_check_branch
    %16 = sbr.rel (0) target = $region17
  $region16: #{lstm_model_forward.4} parent=0 // pred_region
    _
  $region17: #{lstm_model_forward.4} parent=0 // pred_fallthru
    _
  %p18 = scmp.eq.s32.totalorder 0, 0
  // Predicated region
  $region18: #{lstm_model_forward.4} parent=0 // pred_check
    %p19 = pneg %p18
  $region19: #{lstm_model_forward.4} parent=0 // pred_check_branch
    %21 = sbr.rel (%p19) target = $region21
  $region20: #{lstm_model_forward.4} parent=0 // pred_region
    %vm22 = vcmask 261120
    %23 = vst.msk [vmem:[#allocation3] sm:$0xff] %vm22, 0.0
    %24 = vst.msk [vmem:[#allocation3 + $0x8] sm:$0xff] %vm22, 0.0
    %25 = vst.msk [vmem:[#allocation4] sm:$0xff] %vm22, 0.0
    %26 = vst.msk [vmem:[#allocation4 + $0x8] sm:$0xff] %vm22, 0.0
  $region21: #{lstm_model_forward.4} parent=0 // pred_fallthru
    _
  %v27 = vld [vmem:[%s1] sm:$0xf]
  %v28 = vld [vmem:[%s1 + $0x4] sm:$0xf]
  %v29 = vld [vmem:[%s1 + $0x8] sm:$0xf]
  %v30 = vld [vmem:[%s1 + $0xc] sm:$0xf]
  %v31 = vld [vmem:[%s2] sm:$0xf]
  %v32 = vld [vmem:[%s2 + $0x4] sm:$0xf]
  %v33 = vld [vmem:[%s2 + $0x8] sm:$0xf]
  %v34 = vld [vmem:[%s2 + $0xc] sm:$0xf]
  %v35 = vld [vmem:[%s3] sm:$0x1]
  %v36 = vld [vmem:[%s0] sm:$0xf]
  %v37 = vld [vmem:[%s0 + $0x4] sm:$0xf]
  %v38 = vld [vmem:[%s0 + $0x8] sm:$0xf]
  %v39 = vld [vmem:[%s0 + $0xc] sm:$0xf]
  %v40 = vld [vmem:[%s0 + $0x10] sm:$0xf]
  %v41 = vld [vmem:[%s0 + $0x14] sm:$0xf]
  %v42 = vld [vmem:[%s0 + $0x18] sm:$0xf]
  %v43 = vld [vmem:[%s0 + $0x1c] sm:$0xf]
  %v44 = vld [vmem:[%s0 + $0x20] sm:$0xf]
  %v45 = vld [vmem:[%s0 + $0x24] sm:$0xf]
  %v46 = vld [vmem:[%s0 + $0x28] sm:$0xf]
  %v47 = vld [vmem:[%s0 + $0x2c] sm:$0xf]
  %v48 = vld [vmem:[%s0 + $0x30] sm:$0xf]
  %v49 = vld [vmem:[%s0 + $0x34] sm:$0xf]
  %v50 = vld [vmem:[%s0 + $0x38] sm:$0xf]
  %v51 = vld [vmem:[%s0 + $0x3c] sm:$0xf]
  %v53 = vperm.slane %v35, 0
  %v71 = vunpack.c.l.b16 %v36
  %v72 = vunpack.c.l.b16 %v37
  %v73 = vunpack.c.l.b16 %v38
  %v74 = vunpack.c.l.b16 %v39
  %v75 = vunpack.c.l.b16 %v40
  %v76 = vunpack.c.l.b16 %v41
  %v77 = vunpack.c.l.b16 %v42
  %v78 = vunpack.c.l.b16 %v43
  %v79 = vunpack.c.l.b16 %v44
  %v80 = vunpack.c.l.b16 %v45
  %v81 = vunpack.c.l.b16 %v46
  %v82 = vunpack.c.l.b16 %v47
  %v83 = vunpack.c.l.b16 %v48
  %v84 = vunpack.c.l.b16 %v49
  %v85 = vunpack.c.l.b16 %v50
  %v86 = vunpack.c.l.b16 %v51
  %v87 = vpack.c.b16 %v72, %v71
  %v88 = vpack.c.b16 %v74, %v73
  %v89 = vpack.c.b16 %v76, %v75
  %v90 = vpack.c.b16 %v78, %v77
  %v91 = vpack.c.b16 %v80, %v79
  %v92 = vpack.c.b16 %v82, %v81
  %v93 = vpack.c.b16 %v84, %v83
  %v94 = vpack.c.b16 %v86, %v85
  %v99 = vunpack.c.l.b16 %v27
  %v100 = vunpack.c.l.b16 %v28
  %v101 = vunpack.c.l.b16 %v29
  %v102 = vunpack.c.l.b16 %v30
  %v103 = vpack.c.b16 %v100, %v99
  %v104 = vpack.c.b16 %v102, %v101
  %vm107 = vcmask 261120
  %v109 = vsel %vm107, %v87, 0
  %v112 = vsel %vm107, %v88, 0
  %v115 = vsel %vm107, %v89, 0
  %v118 = vsel %vm107, %v90, 0
  %v121 = vsel %vm107, %v91, 0
  %v124 = vsel %vm107, %v92, 0
  %v127 = vsel %vm107, %v93, 0
  %v130 = vsel %vm107, %v94, 0
  %132 = vmatpush.bf16.msra.mxu0 0
  %133 = vmatpush.bf16.msra.mxu0 0
  %134 = vmatpush.bf16.msra.mxu0 0
  %135 = vmatpush.bf16.msra.mxu0 0
  %136 = vmatpush.bf16.msra.mxu0 0
  %137 = vmatpush.bf16.msra.mxu0 0
  %138 = vmatpush.bf16.msra.mxu0 %v104
  %139 = vmatpush.bf16.msra.mxu0 %v103
  %140 = vmatmul.bf16.gmra.mxu0 %v109
  %v141 = vpop.f32.mrf.mxu0
  %v142 = vadd.f32 %v53, %v141
  %v143 = vpop.f32.mrf.mxu0
  %v144 = vadd.f32 %v53, %v143
  %145 = vmatmul.bf16.gmra.mxu0 %v112
  %v146 = vpop.f32.mrf.mxu0
  %v147 = vadd.f32 %v53, %v146
  %v148 = vpop.f32.mrf.mxu0
  %v149 = vadd.f32 %v53, %v148
  %150 = vmatmul.bf16.gmra.mxu0 %v115
  %v151 = vpop.f32.mrf.mxu0
  %v152 = vadd.f32 %v53, %v151
  %v153 = vpop.f32.mrf.mxu0
  %v154 = vadd.f32 %v53, %v153
  %155 = vmatmul.bf16.gmra.mxu0 %v118
  %v156 = vpop.f32.mrf.mxu0
  %v157 = vadd.f32 %v53, %v156
  %v158 = vpop.f32.mrf.mxu0
  %v159 = vadd.f32 %v53, %v158
  %160 = vmatmul.bf16.gmra.mxu0 %v121
  %v161 = vpop.f32.mrf.mxu0
  %v162 = vadd.f32 %v53, %v161
  %v163 = vpop.f32.mrf.mxu0
  %v164 = vadd.f32 %v53, %v163
  %165 = vmatmul.bf16.gmra.mxu0 %v124
  %v166 = vpop.f32.mrf.mxu0
  %v167 = vadd.f32 %v53, %v166
  %v168 = vpop.f32.mrf.mxu0
  %v169 = vadd.f32 %v53, %v168
  %170 = vmatmul.bf16.gmra.mxu0 %v127
  %v171 = vpop.f32.mrf.mxu0
  %v172 = vadd.f32 %v53, %v171
  %v173 = vpop.f32.mrf.mxu0
  %v174 = vadd.f32 %v53, %v173
  %175 = vmatmul.bf16.gmra.mxu0 %v130
  %v176 = vpop.f32.mrf.mxu0
  %v177 = vadd.f32 %v53, %v176
  %v178 = vpop.f32.mrf.mxu0
  %v179 = vadd.f32 %v53, %v178
  %180 = vdwg.mxu0
  %181 = vst [vmem:[#allocation2] sm:$0xff] %v142
  %182 = vst [vmem:[#allocation2 + $0x8] sm:$0xff] %v144
  %183 = vst [vmem:[#allocation2 + $0x10] sm:$0xff] %v147
  %184 = vst [vmem:[#allocation2 + $0x18] sm:$0xff] %v149
  %185 = vst [vmem:[#allocation2 + $0x20] sm:$0xff] %v152
  %186 = vst [vmem:[#allocation2 + $0x28] sm:$0xff] %v154
  %187 = vst [vmem:[#allocation2 + $0x30] sm:$0xff] %v157
  %188 = vst [vmem:[#allocation2 + $0x38] sm:$0xff] %v159
  %189 = vst [vmem:[#allocation2 + $0x40] sm:$0xff] %v162
  %190 = vst [vmem:[#allocation2 + $0x48] sm:$0xff] %v164
  %191 = vst [vmem:[#allocation2 + $0x50] sm:$0xff] %v167
  %192 = vst [vmem:[#allocation2 + $0x58] sm:$0xff] %v169
  %193 = vst [vmem:[#allocation2 + $0x60] sm:$0xff] %v172
  %194 = vst [vmem:[#allocation2 + $0x68] sm:$0xff] %v174
  %195 = vst [vmem:[#allocation2 + $0x70] sm:$0xff] %v177
  %196 = vst [vmem:[#allocation2 + $0x78] sm:$0xff] %v179
  %v197 = vlaneseq
  %v198 = vand.u32 %v197, 127
  %vm199 = vcmp.ge.s32.totalorder %v198, 64
  %vm200 = vcmp.lt.s32.totalorder %v198, 96
  %vm201 = vmand %vm199, %vm200
  %v202 = vsel %vm201, 1.0, 0.5
  %v203 = vsel %vm201, 0.0, 0.5
  %v204 = vld [vmem:[#allocation3] sm:$0xff]
  %v205 = vld [vmem:[#allocation3 + $0x8] sm:$0xff]
  %v206 = vld [vmem:[#allocation4] sm:$0xff]
  %v207 = vld [vmem:[#allocation4 + $0x8] sm:$0xff]
  %v208 = vld [vmem:[#allocation2] sm:$0xff]
  %v209 = vld [vmem:[#allocation2 + $0x8] sm:$0xff]
  %v210 = vpack.c.bf16 %v205, %v204
  %v215 = vunpack.c.l.b16 %v31
  %v216 = vunpack.c.l.b16 %v32
  %v217 = vunpack.c.l.b16 %v33
  %v218 = vunpack.c.l.b16 %v34
  %v219 = vpack.c.b16 %v216, %v215
  %v220 = vpack.c.b16 %v218, %v217
  %v224 = vsel %vm107, %v210, 0
  %226 = vmatpush.bf16.msra.mxu0 0
  %227 = vmatpush.bf16.msra.mxu0 0
  %228 = vmatpush.bf16.msra.mxu0 0
  %229 = vmatpush.bf16.msra.mxu0 0
  %230 = vmatpush.bf16.msra.mxu0 0
  %231 = vmatpush.bf16.msra.mxu0 0
  %232 = vmatpush.bf16.msra.mxu0 %v220
  %233 = vmatpush.bf16.msra.mxu0 %v219
  %234 = vmatmul.bf16.gmra.mxu0 %v224
  %v235 = vpop.f32.mrf.mxu0
  %v236 = vadd.f32 0.0, %v235
  %v237 = vpop.f32.mrf.mxu0
  %v238 = vadd.f32 0.0, %v237
  %239 = vdwg.mxu0
  %v240 = vadd.f32 %v208, %v236
  %v241 = vadd.f32 %v209, %v238
  %v242 = vmul.f32 %v240, %v202
  %v243 = vmul.f32 %v241, %v202
  %v244 = vtanh.pop %v242
  %v245 = vtanh.pop %v243
  %v246 = vmul.f32 %v244, %v202
  %v247 = vmul.f32 %v245, %v202
  %v248 = vadd.f32 %v246, %v203
  %v249 = vadd.f32 %v247, %v203
  %252 = vrot.lane.b32.xlu0 %v206, 32
  %v253 = vpop.permute.xlu0 %252
  %254 = vrot.lane.b32.xlu0 %v207, 32
  %v255 = vpop.permute.xlu0 %254
  %v258 = vmul.f32 %v248, %v253
  %v259 = vmul.f32 %v249, %v255
  %262 = vrot.lane.b32.xlu0 %v248, 64
  %v263 = vpop.permute.xlu0 %262
  %264 = vrot.lane.b32.xlu0 %v249, 64
  %v265 = vpop.permute.xlu0 %264
  %v268 = vmul.f32 %v248, %v263
  %v269 = vmul.f32 %v249, %v265
  %272 = vrot.lane.b32.xlu0 %v268, 32
  %v273 = vpop.permute.xlu0 %272
  %274 = vrot.lane.b32.xlu0 %v269, 32
  %v275 = vpop.permute.xlu0 %274
  %v278 = vadd.f32 %v258, %v273
  %v279 = vadd.f32 %v259, %v275
  %v280 = vtanh.pop %v278
  %v281 = vtanh.pop %v279
  %284 = vrot.lane.b32.xlu0 %v280, 64
  %v285 = vpop.permute.xlu0 %284
  %286 = vrot.lane.b32.xlu0 %v281, 64
  %v287 = vpop.permute.xlu0 %286
  %v290 = vmul.f32 %v248, %v285
  %v291 = vmul.f32 %v249, %v287
  %v292 = vpack.c.bf16 %v290, %v290
  %v293 = vpack.c.bf16 %v291, %v291
  %296 = vrot.lane.b32.xlu0 %v292, 32
  %v297 = vpop.permute.xlu0 %296
  %298 = vrot.lane.b32.xlu0 %v293, 32
  %v299 = vpop.permute.xlu0 %298
  %vm302 = vcmask 257024
  %303 = vst.msk [vmem:[%s4] sm:$0xf] %vm302, %v297
  %304 = vst.msk [vmem:[%s4 + $0x4] sm:$0xf] %vm302, %v299
  %s305 = scalar_lea.vmem [#allocation2], 16
  %v306 = vld [vmem:[%s305] sm:$0xff]
  %v307 = vld [vmem:[%s305 + $0x8] sm:$0xff]
  %v308 = vunpack.c.l.b16 %v292
  %v309 = vunpack.c.l.b16 %v293
  %v310 = vpack.c.b16 %v309, %v308
  %311 = vrot.lane.b32.xlu0 %v310, 32
  %v312 = vpop.permute.xlu0 %311
  %v314 = vsel %vm107, %v312, 0
  %316 = vmatpush.bf16.msra.mxu0 0
  %317 = vmatpush.bf16.msra.mxu0 0
  %318 = vmatpush.bf16.msra.mxu0 0
  %319 = vmatpush.bf16.msra.mxu0 0
  %320 = vmatpush.bf16.msra.mxu0 0
  %321 = vmatpush.bf16.msra.mxu0 0
  %322 = vmatpush.bf16.msra.mxu0 %v220
  %323 = vmatpush.bf16.msra.mxu0 %v219
  %324 = vmatmul.bf16.gmra.mxu0 %v314
  %v325 = vpop.f32.mrf.mxu0
  %v326 = vadd.f32 0.0, %v325
  %v327 = vpop.f32.mrf.mxu0
  %v328 = vadd.f32 0.0, %v327
  %329 = vdwg.mxu0
  %v330 = vadd.f32 %v306, %v326
  %v331 = vadd.f32 %v307, %v328
  %v332 = vmul.f32 %v330, %v202
  %v333 = vmul.f32 %v331, %v202
  %v334 = vtanh.pop %v332
  %v335 = vtanh.pop %v333
  %v336 = vmul.f32 %v334, %v202
  %v337 = vmul.f32 %v335, %v202
  %v338 = vadd.f32 %v336, %v203
  %v339 = vadd.f32 %v337, %v203
  %v340 = vmul.f32 %v338, %v278
  %v341 = vmul.f32 %v339, %v279
  %344 = vrot.lane.b32.xlu0 %v338, 64
  %v345 = vpop.permute.xlu0 %344
  %346 = vrot.lane.b32.xlu0 %v339, 64
  %v347 = vpop.permute.xlu0 %346
  %v350 = vmul.f32 %v338, %v345
  %v351 = vmul.f32 %v339, %v347
  %354 = vrot.lane.b32.xlu0 %v350, 32
  %v355 = vpop.permute.xlu0 %354
  %356 = vrot.lane.b32.xlu0 %v351, 32
  %v357 = vpop.permute.xlu0 %356
  %v360 = vadd.f32 %v340, %v355
  %v361 = vadd.f32 %v341, %v357
  %v362 = vtanh.pop %v360
  %v363 = vtanh.pop %v361
  %366 = vrot.lane.b32.xlu0 %v362, 64
  %v367 = vpop.permute.xlu0 %366
  %368 = vrot.lane.b32.xlu0 %v363, 64
  %v369 = vpop.permute.xlu0 %368
  %v372 = vmul.f32 %v338, %v367
  %v373 = vmul.f32 %v339, %v369
  %v374 = vpack.c.bf16 %v372, %v372
  %v375 = vpack.c.bf16 %v373, %v373
  %378 = vrot.lane.b32.xlu0 %v374, 32
  %v379 = vpop.permute.xlu0 %378
  %380 = vrot.lane.b32.xlu0 %v375, 32
  %v381 = vpop.permute.xlu0 %380
  %s384 = scalar_lea.vmem %s4, 8
  %385 = vst.msk [vmem:[%s384] sm:$0xf] %vm302, %v379
  %386 = vst.msk [vmem:[%s384 + $0x4] sm:$0xf] %vm302, %v381
  %s387 = scalar_lea.vmem [#allocation2], 32
  %v388 = vld [vmem:[%s387] sm:$0xff]
  %v389 = vld [vmem:[%s387 + $0x8] sm:$0xff]
  %v390 = vunpack.c.l.b16 %v374
  %v391 = vunpack.c.l.b16 %v375
  %v392 = vpack.c.b16 %v391, %v390
  %393 = vrot.lane.b32.xlu0 %v392, 32
  %v394 = vpop.permute.xlu0 %393
  %v396 = vsel %vm107, %v394, 0
  %398 = vmatpush.bf16.msra.mxu0 0
  %399 = vmatpush.bf16.msra.mxu0 0
  %400 = vmatpush.bf16.msra.mxu0 0
  %401 = vmatpush.bf16.msra.mxu0 0
  %402 = vmatpush.bf16.msra.mxu0 0
  %403 = vmatpush.bf16.msra.mxu0 0
  %404 = vmatpush.bf16.msra.mxu0 %v220
  %405 = vmatpush.bf16.msra.mxu0 %v219
  %406 = vmatmul.bf16.gmra.mxu0 %v396
  %v407 = vpop.f32.mrf.mxu0
  %v408 = vadd.f32 0.0, %v407
  %v409 = vpop.f32.mrf.mxu0
  %v410 = vadd.f32 0.0, %v409
  %411 = vdwg.mxu0
  %v412 = vadd.f32 %v388, %v408
  %v413 = vadd.f32 %v389, %v410
  %v414 = vmul.f32 %v412, %v202
  %v415 = vmul.f32 %v413, %v202
  %v416 = vtanh.pop %v414
  %v417 = vtanh.pop %v415
  %v418 = vmul.f32 %v416, %v202
  %v419 = vmul.f32 %v417, %v202
  %v420 = vadd.f32 %v418, %v203
  %v421 = vadd.f32 %v419, %v203
  %v422 = vmul.f32 %v420, %v360
  %v423 = vmul.f32 %v421, %v361
  %426 = vrot.lane.b32.xlu0 %v420, 64
  %v427 = vpop.permute.xlu0 %426
  %428 = vrot.lane.b32.xlu0 %v421, 64
  %v429 = vpop.permute.xlu0 %428
  %v432 = vmul.f32 %v420, %v427
  %v433 = vmul.f32 %v421, %v429
  %436 = vrot.lane.b32.xlu0 %v432, 32
  %v437 = vpop.permute.xlu0 %436
  %438 = vrot.lane.b32.xlu0 %v433, 32
  %v439 = vpop.permute.xlu0 %438
  %v442 = vadd.f32 %v422, %v437
  %v443 = vadd.f32 %v423, %v439
  %v444 = vtanh.pop %v442
  %v445 = vtanh.pop %v443
  %448 = vrot.lane.b32.xlu0 %v444, 64
  %v449 = vpop.permute.xlu0 %448
  %450 = vrot.lane.b32.xlu0 %v445, 64
  %v451 = vpop.permute.xlu0 %450
  %v454 = vmul.f32 %v420, %v449
  %v455 = vmul.f32 %v421, %v451
  %v456 = vpack.c.bf16 %v454, %v454
  %v457 = vpack.c.bf16 %v455, %v455
  %460 = vrot.lane.b32.xlu0 %v456, 32
  %v461 = vpop.permute.xlu0 %460
  %462 = vrot.lane.b32.xlu0 %v457, 32
  %v463 = vpop.permute.xlu0 %462
  %s466 = scalar_lea.vmem %s4, 16
  %467 = vst.msk [vmem:[%s466] sm:$0xf] %vm302, %v461
  %468 = vst.msk [vmem:[%s466 + $0x4] sm:$0xf] %vm302, %v463
  %s469 = scalar_lea.vmem [#allocation2], 48
  %v470 = vld [vmem:[%s469] sm:$0xff]
  %v471 = vld [vmem:[%s469 + $0x8] sm:$0xff]
  %v472 = vunpack.c.l.b16 %v456
  %v473 = vunpack.c.l.b16 %v457
  %v474 = vpack.c.b16 %v473, %v472
  %475 = vrot.lane.b32.xlu0 %v474, 32
  %v476 = vpop.permute.xlu0 %475
  %v478 = vsel %vm107, %v476, 0
  %480 = vmatpush.bf16.msra.mxu0 0
  %481 = vmatpush.bf16.msra.mxu0 0
  %482 = vmatpush.bf16.msra.mxu0 0
  %483 = vmatpush.bf16.msra.mxu0 0
  %484 = vmatpush.bf16.msra.mxu0 0
  %485 = vmatpush.bf16.msra.mxu0 0
  %486 = vmatpush.bf16.msra.mxu0 %v220
  %487 = vmatpush.bf16.msra.mxu0 %v219
  %488 = vmatmul.bf16.gmra.mxu0 %v478
  %v489 = vpop.f32.mrf.mxu0
  %v490 = vadd.f32 0.0, %v489
  %v491 = vpop.f32.mrf.mxu0
  %v492 = vadd.f32 0.0, %v491
  %493 = vdwg.mxu0
  %v494 = vadd.f32 %v470, %v490
  %v495 = vadd.f32 %v471, %v492
  %v496 = vmul.f32 %v494, %v202
  %v497 = vmul.f32 %v495, %v202
  %v498 = vtanh.pop %v496
  %v499 = vtanh.pop %v497
  %v500 = vmul.f32 %v498, %v202
  %v501 = vmul.f32 %v499, %v202
  %v502 = vadd.f32 %v500, %v203
  %v503 = vadd.f32 %v501, %v203
  %v504 = vmul.f32 %v502, %v442
  %v505 = vmul.f32 %v503, %v443
  %508 = vrot.lane.b32.xlu0 %v502, 64
  %v509 = vpop.permute.xlu0 %508
  %510 = vrot.lane.b32.xlu0 %v503, 64
  %v511 = vpop.permute.xlu0 %510
  %v514 = vmul.f32 %v502, %v509
  %v515 = vmul.f32 %v503, %v511
  %518 = vrot.lane.b32.xlu0 %v514, 32
  %v519 = vpop.permute.xlu0 %518
  %520 = vrot.lane.b32.xlu0 %v515, 32
  %v521 = vpop.permute.xlu0 %520
  %v524 = vadd.f32 %v504, %v519
  %v525 = vadd.f32 %v505, %v521
  %v526 = vtanh.pop %v524
  %v527 = vtanh.pop %v525
  %530 = vrot.lane.b32.xlu0 %v526, 64
  %v531 = vpop.permute.xlu0 %530
  %532 = vrot.lane.b32.xlu0 %v527, 64
  %v533 = vpop.permute.xlu0 %532
  %v536 = vmul.f32 %v502, %v531
  %v537 = vmul.f32 %v503, %v533
  %v538 = vpack.c.bf16 %v536, %v536
  %v539 = vpack.c.bf16 %v537, %v537
  %542 = vrot.lane.b32.xlu0 %v538, 32
  %v543 = vpop.permute.xlu0 %542
  %544 = vrot.lane.b32.xlu0 %v539, 32
  %v545 = vpop.permute.xlu0 %544
  %s548 = scalar_lea.vmem %s4, 24
  %549 = vst.msk [vmem:[%s548] sm:$0xf] %vm302, %v543
  %550 = vst.msk [vmem:[%s548 + $0x4] sm:$0xf] %vm302, %v545
  %s551 = scalar_lea.vmem [#allocation2], 64
  %v552 = vld [vmem:[%s551] sm:$0xff]
  %v553 = vld [vmem:[%s551 + $0x8] sm:$0xff]
  %v554 = vunpack.c.l.b16 %v538
  %v555 = vunpack.c.l.b16 %v539
  %v556 = vpack.c.b16 %v555, %v554
  %557 = vrot.lane.b32.xlu0 %v556, 32
  %v558 = vpop.permute.xlu0 %557
  %v560 = vsel %vm107, %v558, 0
  %562 = vmatpush.bf16.msra.mxu0 0
  %563 = vmatpush.bf16.msra.mxu0 0
  %564 = vmatpush.bf16.msra.mxu0 0
  %565 = vmatpush.bf16.msra.mxu0 0
  %566 = vmatpush.bf16.msra.mxu0 0
  %567 = vmatpush.bf16.msra.mxu0 0
  %568 = vmatpush.bf16.msra.mxu0 %v220
  %569 = vmatpush.bf16.msra.mxu0 %v219
  %570 = vmatmul.bf16.gmra.mxu0 %v560
  %v571 = vpop.f32.mrf.mxu0
  %v572 = vadd.f32 0.0, %v571
  %v573 = vpop.f32.mrf.mxu0
  %v574 = vadd.f32 0.0, %v573
  %575 = vdwg.mxu0
  %v576 = vadd.f32 %v552, %v572
  %v577 = vadd.f32 %v553, %v574
  %v578 = vmul.f32 %v576, %v202
  %v579 = vmul.f32 %v577, %v202
  %v580 = vtanh.pop %v578
  %v581 = vtanh.pop %v579
  %v582 = vmul.f32 %v580, %v202
  %v583 = vmul.f32 %v581, %v202
  %v584 = vadd.f32 %v582, %v203
  %v585 = vadd.f32 %v583, %v203
  %v586 = vmul.f32 %v584, %v524
  %v587 = vmul.f32 %v585, %v525
  %590 = vrot.lane.b32.xlu0 %v584, 64
  %v591 = vpop.permute.xlu0 %590
  %592 = vrot.lane.b32.xlu0 %v585, 64
  %v593 = vpop.permute.xlu0 %592
  %v596 = vmul.f32 %v584, %v591
  %v597 = vmul.f32 %v585, %v593
  %600 = vrot.lane.b32.xlu0 %v596, 32
  %v601 = vpop.permute.xlu0 %600
  %602 = vrot.lane.b32.xlu0 %v597, 32
  %v603 = vpop.permute.xlu0 %602
  %v606 = vadd.f32 %v586, %v601
  %v607 = vadd.f32 %v587, %v603
  %v608 = vtanh.pop %v606
  %v609 = vtanh.pop %v607
  %612 = vrot.lane.b32.xlu0 %v608, 64
  %v613 = vpop.permute.xlu0 %612
  %614 = vrot.lane.b32.xlu0 %v609, 64
  %v615 = vpop.permute.xlu0 %614
  %v618 = vmul.f32 %v584, %v613
  %v619 = vmul.f32 %v585, %v615
  %v620 = vpack.c.bf16 %v618, %v618
  %v621 = vpack.c.bf16 %v619, %v619
  %624 = vrot.lane.b32.xlu0 %v620, 32
  %v625 = vpop.permute.xlu0 %624
  %626 = vrot.lane.b32.xlu0 %v621, 32
  %v627 = vpop.permute.xlu0 %626
  %s630 = scalar_lea.vmem %s4, 32
  %631 = vst.msk [vmem:[%s630] sm:$0xf] %vm302, %v625
  %632 = vst.msk [vmem:[%s630 + $0x4] sm:$0xf] %vm302, %v627
  %s633 = scalar_lea.vmem [#allocation2], 80
  %v634 = vld [vmem:[%s633] sm:$0xff]
  %v635 = vld [vmem:[%s633 + $0x8] sm:$0xff]
  %v636 = vunpack.c.l.b16 %v620
  %v637 = vunpack.c.l.b16 %v621
  %v638 = vpack.c.b16 %v637, %v636
  %639 = vrot.lane.b32.xlu0 %v638, 32
  %v640 = vpop.permute.xlu0 %639
  %v642 = vsel %vm107, %v640, 0
  %644 = vmatpush.bf16.msra.mxu0 0
  %645 = vmatpush.bf16.msra.mxu0 0
  %646 = vmatpush.bf16.msra.mxu0 0
  %647 = vmatpush.bf16.msra.mxu0 0
  %648 = vmatpush.bf16.msra.mxu0 0
  %649 = vmatpush.bf16.msra.mxu0 0
  %650 = vmatpush.bf16.msra.mxu0 %v220
  %651 = vmatpush.bf16.msra.mxu0 %v219
  %652 = vmatmul.bf16.gmra.mxu0 %v642
  %v653 = vpop.f32.mrf.mxu0
  %v654 = vadd.f32 0.0, %v653
  %v655 = vpop.f32.mrf.mxu0
  %v656 = vadd.f32 0.0, %v655
  %657 = vdwg.mxu0
  %v658 = vadd.f32 %v634, %v654
  %v659 = vadd.f32 %v635, %v656
  %v660 = vmul.f32 %v658, %v202
  %v661 = vmul.f32 %v659, %v202
  %v662 = vtanh.pop %v660
  %v663 = vtanh.pop %v661
  %v664 = vmul.f32 %v662, %v202
  %v665 = vmul.f32 %v663, %v202
  %v666 = vadd.f32 %v664, %v203
  %v667 = vadd.f32 %v665, %v203
  %v668 = vmul.f32 %v666, %v606
  %v669 = vmul.f32 %v667, %v607
  %672 = vrot.lane.b32.xlu0 %v666, 64
  %v673 = vpop.permute.xlu0 %672
  %674 = vrot.lane.b32.xlu0 %v667, 64
  %v675 = vpop.permute.xlu0 %674
  %v678 = vmul.f32 %v666, %v673
  %v679 = vmul.f32 %v667, %v675
  %682 = vrot.lane.b32.xlu0 %v678, 32
  %v683 = vpop.permute.xlu0 %682
  %684 = vrot.lane.b32.xlu0 %v679, 32
  %v685 = vpop.permute.xlu0 %684
  %v688 = vadd.f32 %v668, %v683
  %v689 = vadd.f32 %v669, %v685
  %v690 = vtanh.pop %v688
  %v691 = vtanh.pop %v689
  %694 = vrot.lane.b32.xlu0 %v690, 64
  %v695 = vpop.permute.xlu0 %694
  %696 = vrot.lane.b32.xlu0 %v691, 64
  %v697 = vpop.permute.xlu0 %696
  %v700 = vmul.f32 %v666, %v695
  %v701 = vmul.f32 %v667, %v697
  %v702 = vpack.c.bf16 %v700, %v700
  %v703 = vpack.c.bf16 %v701, %v701
  %706 = vrot.lane.b32.xlu0 %v702, 32
  %v707 = vpop.permute.xlu0 %706
  %708 = vrot.lane.b32.xlu0 %v703, 32
  %v709 = vpop.permute.xlu0 %708
  %s712 = scalar_lea.vmem %s4, 40
  %713 = vst.msk [vmem:[%s712] sm:$0xf] %vm302, %v707
  %714 = vst.msk [vmem:[%s712 + $0x4] sm:$0xf] %vm302, %v709
  %s715 = scalar_lea.vmem [#allocation2], 96
  %v716 = vld [vmem:[%s715] sm:$0xff]
  %v717 = vld [vmem:[%s715 + $0x8] sm:$0xff]
  %v718 = vunpack.c.l.b16 %v702
  %v719 = vunpack.c.l.b16 %v703
  %v720 = vpack.c.b16 %v719, %v718
  %721 = vrot.lane.b32.xlu0 %v720, 32
  %v722 = vpop.permute.xlu0 %721
  %v724 = vsel %vm107, %v722, 0
  %726 = vmatpush.bf16.msra.mxu0 0
  %727 = vmatpush.bf16.msra.mxu0 0
  %728 = vmatpush.bf16.msra.mxu0 0
  %729 = vmatpush.bf16.msra.mxu0 0
  %730 = vmatpush.bf16.msra.mxu0 0
  %731 = vmatpush.bf16.msra.mxu0 0
  %732 = vmatpush.bf16.msra.mxu0 %v220
  %733 = vmatpush.bf16.msra.mxu0 %v219
  %734 = vmatmul.bf16.gmra.mxu0 %v724
  %v735 = vpop.f32.mrf.mxu0
  %v736 = vadd.f32 0.0, %v735
  %v737 = vpop.f32.mrf.mxu0
  %v738 = vadd.f32 0.0, %v737
  %739 = vdwg.mxu0
  %v740 = vadd.f32 %v716, %v736
  %v741 = vadd.f32 %v717, %v738
  %v742 = vmul.f32 %v740, %v202
  %v743 = vmul.f32 %v741, %v202
  %v744 = vtanh.pop %v742
  %v745 = vtanh.pop %v743
  %v746 = vmul.f32 %v744, %v202
  %v747 = vmul.f32 %v745, %v202
  %v748 = vadd.f32 %v746, %v203
  %v749 = vadd.f32 %v747, %v203
  %v750 = vmul.f32 %v748, %v688
  %v751 = vmul.f32 %v749, %v689
  %754 = vrot.lane.b32.xlu0 %v748, 64
  %v755 = vpop.permute.xlu0 %754
  %756 = vrot.lane.b32.xlu0 %v749, 64
  %v757 = vpop.permute.xlu0 %756
  %v760 = vmul.f32 %v748, %v755
  %v761 = vmul.f32 %v749, %v757
  %764 = vrot.lane.b32.xlu0 %v760, 32
  %v765 = vpop.permute.xlu0 %764
  %766 = vrot.lane.b32.xlu0 %v761, 32
  %v767 = vpop.permute.xlu0 %766
  %v770 = vadd.f32 %v750, %v765
  %v771 = vadd.f32 %v751, %v767
  %v772 = vtanh.pop %v770
  %v773 = vtanh.pop %v771
  %776 = vrot.lane.b32.xlu0 %v772, 64
  %v777 = vpop.permute.xlu0 %776
  %778 = vrot.lane.b32.xlu0 %v773, 64
  %v779 = vpop.permute.xlu0 %778
  %v782 = vmul.f32 %v748, %v777
  %v783 = vmul.f32 %v749, %v779
  %v784 = vpack.c.bf16 %v782, %v782
  %v785 = vpack.c.bf16 %v783, %v783
  %788 = vrot.lane.b32.xlu0 %v784, 32
  %v789 = vpop.permute.xlu0 %788
  %790 = vrot.lane.b32.xlu0 %v785, 32
  %v791 = vpop.permute.xlu0 %790
  %s794 = scalar_lea.vmem %s4, 48
  %795 = vst.msk [vmem:[%s794] sm:$0xf] %vm302, %v789
  %796 = vst.msk [vmem:[%s794 + $0x4] sm:$0xf] %vm302, %v791
  %s797 = scalar_lea.vmem [#allocation2], 112
  %v798 = vld [vmem:[%s797] sm:$0xff]
  %v799 = vld [vmem:[%s797 + $0x8] sm:$0xff]
  %v800 = vunpack.c.l.b16 %v784
  %v801 = vunpack.c.l.b16 %v785
  %v802 = vpack.c.b16 %v801, %v800
  %803 = vrot.lane.b32.xlu0 %v802, 32
  %v804 = vpop.permute.xlu0 %803
  %v806 = vsel %vm107, %v804, 0
  %808 = vmatpush.bf16.msra.mxu0 0
  %809 = vmatpush.bf16.msra.mxu0 0
  %810 = vmatpush.bf16.msra.mxu0 0
  %811 = vmatpush.bf16.msra.mxu0 0
  %812 = vmatpush.bf16.msra.mxu0 0
  %813 = vmatpush.bf16.msra.mxu0 0
  %814 = vmatpush.bf16.msra.mxu0 %v220
  %815 = vmatpush.bf16.msra.mxu0 %v219
  %816 = vmatmul.bf16.gmra.mxu0 %v806
  %v817 = vpop.f32.mrf.mxu0
  %v818 = vadd.f32 0.0, %v817
  %v819 = vpop.f32.mrf.mxu0
  %v820 = vadd.f32 0.0, %v819
  %821 = vdwg.mxu0
  %v822 = vadd.f32 %v798, %v818
  %v823 = vadd.f32 %v799, %v820
  %v824 = vmul.f32 %v822, %v202
  %v825 = vmul.f32 %v823, %v202
  %v826 = vtanh.pop %v824
  %v827 = vtanh.pop %v825
  %v828 = vmul.f32 %v826, %v202
  %v829 = vmul.f32 %v827, %v202
  %v830 = vadd.f32 %v828, %v203
  %v831 = vadd.f32 %v829, %v203
  %v832 = vmul.f32 %v830, %v770
  %v833 = vmul.f32 %v831, %v771
  %836 = vrot.lane.b32.xlu0 %v830, 64
  %v837 = vpop.permute.xlu0 %836
  %838 = vrot.lane.b32.xlu0 %v831, 64
  %v839 = vpop.permute.xlu0 %838
  %v842 = vmul.f32 %v830, %v837
  %v843 = vmul.f32 %v831, %v839
  %846 = vrot.lane.b32.xlu0 %v842, 32
  %v847 = vpop.permute.xlu0 %846
  %848 = vrot.lane.b32.xlu0 %v843, 32
  %v849 = vpop.permute.xlu0 %848
  %v852 = vadd.f32 %v832, %v847
  %v853 = vadd.f32 %v833, %v849
  %v854 = vtanh.pop %v852
  %v855 = vtanh.pop %v853
  %858 = vrot.lane.b32.xlu0 %v854, 64
  %v859 = vpop.permute.xlu0 %858
  %860 = vrot.lane.b32.xlu0 %v855, 64
  %v861 = vpop.permute.xlu0 %860
  %v864 = vmul.f32 %v830, %v859
  %v865 = vmul.f32 %v831, %v861
  %v866 = vpack.c.bf16 %v864, %v864
  %v867 = vpack.c.bf16 %v865, %v865
  %870 = vrot.lane.b32.xlu0 %v866, 32
  %v871 = vpop.permute.xlu0 %870
  %872 = vrot.lane.b32.xlu0 %v867, 32
  %v873 = vpop.permute.xlu0 %872
  %s876 = scalar_lea.vmem %s4, 56
  %877 = vst.msk [vmem:[%s876] sm:$0xf] %vm302, %v871
  %878 = vst.msk [vmem:[%s876 + $0x4] sm:$0xf] %vm302, %v873
  %881 = vrot.lane.b32.xlu0 %v864, 32
  %v882 = vpop.permute.xlu0 %881
  %883 = vrot.lane.b32.xlu0 %v865, 32
  %v884 = vpop.permute.xlu0 %883
  %887 = vst.msk [vmem:[#allocation3] sm:$0xff] %vm107, %v882
  %888 = vst.msk [vmem:[#allocation3 + $0x8] sm:$0xff] %vm107, %v884
  %891 = vrot.lane.b32.xlu0 %v852, 96
  %v892 = vpop.permute.xlu0 %891
  %893 = vrot.lane.b32.xlu0 %v853, 96
  %v894 = vpop.permute.xlu0 %893
  %897 = vst.msk [vmem:[#allocation4] sm:$0xff] %vm107, %v892
  %898 = vst.msk [vmem:[#allocation4 + $0x8] sm:$0xff] %vm107, %v894
  // Predicated region
  $region22: #{lstm_model_forward.4} parent=0 // pred_check
    _
  $region23: #{lstm_model_forward.4} parent=0 // pred_check_branch
    %900 = sbr.rel (0) target = $region25
  $region24: #{lstm_model_forward.4} parent=0 // pred_region
    _
  $region25: #{lstm_model_forward.4} parent=0 // pred_fallthru
    _
  // Predicated region
  $region26: #{lstm_model_forward.4} parent=0 // pred_check
    _
  $region27: #{lstm_model_forward.4} parent=0 // pred_check_branch
    %902 = sbr.rel (0) target = $region29
  $region28: #{lstm_model_forward.4} parent=0 // pred_region
    _
  $region29: #{lstm_model_forward.4} parent=0 // pred_fallthru
    _

// kernel: lstm_model_forward.5
$region0: #{lstm_model_forward.5}
  #allocation0 [shape = 'u32[]', space=smem, size = 0x4, offset = 0x4, fixed_abs, tag = 'smem constant byte address 0x4 - core index']
  #allocation1 [shape = 'u32[72,128]{1,0:T(1,128)}', space=vmem, size = 0x9000, scoped, tag = 'internal scratch']
  %s0 = inlined_call_operand.vmem [shape: bf16[128,32], index: 0, kind: input, shape index: {}]
  %s1 = inlined_call_operand.vmem [shape: bf16[32,16], index: 1, kind: input, shape index: {}]
  %s2 = inlined_call_operand.vmem [shape: f32[1,16], index: 2, kind: input, shape index: {}]
  %s3 = inlined_call_operand.vmem [shape: f32[16,16], index: 3, kind: input, shape index: {}]
  %s4 = inlined_call_operand.vmem [shape: f32[128,16], index: 4, kind: output, shape index: {}]
  %s5 = sld [smem:[#allocation0]]
  $region49: #{lstm_model_forward.5} parent=0
    _
  %s7 = ssub.s32 1, %s5
  %s8 = scalar_select 0, %s7, %s5
  loop: start=0, step=1, limit=4
  $region2: #{lstm_model_forward.5} parent=0 // loop_pre_header
    _
  $region3: #{lstm_model_forward.5} parent=0 // loop_header
    %s10 = sphi 0, %s14
    %p11 = scmp.ge.s32.totalorder %s10, 4
    %s20 = sphi 0, %s22
    %s23 = sphi 0, %s20
    %s24 = sphi 0, %s23
    %s40 = sphi 0, %s24
    %s44 = sphi 0, %s44
    %s46 = sphi 0, %s44
    %s47 = sphi 0, %s46
    %s61 = sphi 0, %s47
    %s65 = sphi 0, %s65
    %s67 = sphi 0, %s65
    %s68 = sphi 0, %s67
    %s82 = sphi 0, %s68
    %s86 = sphi 0, %s86
    %s88 = sphi 0, %s86
    %s89 = sphi 0, %s88
    %s103 = sphi 0, %s89
    %s109 = sphi 0, %s111
    %s112 = sphi 0, %s109
    %s113 = sphi 0, %s112
    %s129 = sphi 0, %s113
  $region4: #{lstm_model_forward.5} parent=0 // loop_header_branch
    %13 = sbr.rel (%p11) target = $region8
  $region5: #{lstm_model_forward.5} parent=0 // loop_body
    %s15 = ssub.s32 %s10, 1
    %s16 = ssub.s32 %s10, 2
    %s17 = sadd.s32 %s10, 1
    %s18 = ssub.s32 %s10, %s17
    %p19 = scmp.eq.s32.totalorder %s18, 0
    %s21 = sadd.s32 %s20, 1
    %s22 = scalar_select %p19, %s20, %s21
    %p25 = pneg %p19
    %p26 = scmp.eq.s32.totalorder %s10, 1
    %p27 = por %p25, %p26
    %p28 = scmp.ne.s32.totalorder %s20, %s23
    %p29 = scmp.eq.s32.totalorder %s10, 0
    %p30 = por %p28, %p29
    %p31 = scmp.ne.s32.totalorder %s20, %s23
    %p32 = scmp.eq.s32.totalorder %s15, 1
    %p33 = por %p31, %p32
    %p34 = scmp.ne.s32.totalorder %s23, %s24
    %p35 = scmp.eq.s32.totalorder %s15, 0
    %p36 = por %p34, %p35
    %p37 = scmp.ne.s32.totalorder %s23, %s24
    %p38 = scmp.eq.s32.totalorder %s16, 1
    %p39 = por %p37, %p38
    %p41 = scmp.ne.s32.totalorder %s24, %s40
    %p42 = scmp.eq.s32.totalorder %s16, 0
    %p43 = por %p41, %p42
    %s45 = sadd.s32 %s44, 1
    %p48 = scmp.eq.s32.totalorder %s10, 1
    %p49 = scmp.ne.s32.totalorder %s44, %s46
    %p50 = scmp.eq.s32.totalorder %s10, 0
    %p51 = por %p49, %p50
    %p52 = scmp.ne.s32.totalorder %s44, %s46
    %p53 = scmp.eq.s32.totalorder %s15, 1
    %p54 = por %p52, %p53
    %p55 = scmp.ne.s32.totalorder %s46, %s47
    %p56 = scmp.eq.s32.totalorder %s15, 0
    %p57 = por %p55, %p56
    %p58 = scmp.ne.s32.totalorder %s46, %s47
    %p59 = scmp.eq.s32.totalorder %s16, 1
    %p60 = por %p58, %p59
    %p62 = scmp.ne.s32.totalorder %s47, %s61
    %p63 = scmp.eq.s32.totalorder %s16, 0
    %p64 = por %p62, %p63
    %s66 = sadd.s32 %s65, 1
    %p69 = scmp.eq.s32.totalorder %s10, 1
    %p70 = scmp.ne.s32.totalorder %s65, %s67
    %p71 = scmp.eq.s32.totalorder %s10, 0
    %p72 = por %p70, %p71
    %p73 = scmp.ne.s32.totalorder %s65, %s67
    %p74 = scmp.eq.s32.totalorder %s15, 1
    %p75 = por %p73, %p74
    %p76 = scmp.ne.s32.totalorder %s67, %s68
    %p77 = scmp.eq.s32.totalorder %s15, 0
    %p78 = por %p76, %p77
    %p79 = scmp.ne.s32.totalorder %s67, %s68
    %p80 = scmp.eq.s32.totalorder %s16, 1
    %p81 = por %p79, %p80
    %p83 = scmp.ne.s32.totalorder %s68, %s82
    %p84 = scmp.eq.s32.totalorder %s16, 0
    %p85 = por %p83, %p84
    %s87 = sadd.s32 %s86, 1
    %p90 = scmp.eq.s32.totalorder %s10, 1
    %p91 = scmp.ne.s32.totalorder %s86, %s88
    %p92 = scmp.eq.s32.totalorder %s10, 0
    %p93 = por %p91, %p92
    %p94 = scmp.ne.s32.totalorder %s86, %s88
    %p95 = scmp.eq.s32.totalorder %s15, 1
    %p96 = por %p94, %p95
    %p97 = scmp.ne.s32.totalorder %s88, %s89
    %p98 = scmp.eq.s32.totalorder %s15, 0
    %p99 = por %p97, %p98
    %p100 = scmp.ne.s32.totalorder %s88, %s89
    %p101 = scmp.eq.s32.totalorder %s16, 1
    %p102 = por %p100, %p101
    %p104 = scmp.ne.s32.totalorder %s89, %s103
    %p105 = scmp.eq.s32.totalorder %s16, 0
    %p106 = por %p104, %p105
    %s107 = ssub.s32 %s10, %s17
    %p108 = scmp.eq.s32.totalorder %s107, 0
    %s110 = sadd.s32 %s109, 1
    %s111 = scalar_select %p108, %s109, %s110
    %p114 = pneg %p108
    %p115 = scmp.eq.s32.totalorder %s10, 1
    %p116 = por %p114, %p115
    %p117 = scmp.ne.s32.totalorder %s109, %s112
    %p118 = scmp.eq.s32.totalorder %s10, 0
    %p119 = por %p117, %p118
    %p120 = scmp.ne.s32.totalorder %s109, %s112
    %p121 = scmp.eq.s32.totalorder %s15, 1
    %p122 = por %p120, %p121
    %p123 = scmp.ne.s32.totalorder %s112, %s113
    %p124 = scmp.eq.s32.totalorder %s15, 0
    %p125 = por %p123, %p124
    %p126 = scmp.ne.s32.totalorder %s112, %s113
    %p127 = scmp.eq.s32.totalorder %s16, 1
    %p128 = por %p126, %p127
    %p130 = scmp.ne.s32.totalorder %s113, %s129
    %p131 = scmp.eq.s32.totalorder %s16, 0
    %p132 = por %p130, %p131
    %p133 = scmp.le.s32.totalorder 1, %s10
    %p134 = scmp.lt.s32.totalorder %s10, 3
    %p135 = pnand %p133, %p134
    %p136 = pneg %p135
    // Predicated region
    $region9: #{lstm_model_forward.5} parent=5 // pred_check
      _
    $region10: #{lstm_model_forward.5} parent=5 // pred_check_branch
      %138 = sbr.rel (%p135) target = $region12
    $region11: #{lstm_model_forward.5} parent=5 // pred_region
      %s139 = ssub.s32 %s10, 1
      // Predicated region
      $region13: #{lstm_model_forward.5} parent=11 // pred_check
        %p140 = pneg %p57
      $region14: #{lstm_model_forward.5} parent=11 // pred_check_branch
        %142 = sbr.rel (%p140) target = $region16
      $region15: #{lstm_model_forward.5} parent=11 // pred_region
        _
      $region16: #{lstm_model_forward.5} parent=11 // pred_fallthru
        _
      // Predicated region
      $region17: #{lstm_model_forward.5} parent=11 // pred_check
        %p143 = pneg %p78
      $region18: #{lstm_model_forward.5} parent=11 // pred_check_branch
        %145 = sbr.rel (%p143) target = $region20
      $region19: #{lstm_model_forward.5} parent=11 // pred_region
        _
      $region20: #{lstm_model_forward.5} parent=11 // pred_fallthru
        _
      // Predicated region
      $region21: #{lstm_model_forward.5} parent=11 // pred_check
        %p146 = pneg %p99
      $region22: #{lstm_model_forward.5} parent=11 // pred_check_branch
        %148 = sbr.rel (%p146) target = $region24
      $region23: #{lstm_model_forward.5} parent=11 // pred_region
        _
      $region24: #{lstm_model_forward.5} parent=11 // pred_fallthru
        _
    $region12: #{lstm_model_forward.5} parent=5 // pred_fallthru
      _
    %p149 = scmp.lt.s32.totalorder %s10, 2
    // Predicated region
    $region25: #{lstm_model_forward.5} parent=5 // pred_check
      %p150 = pneg %p149
    $region26: #{lstm_model_forward.5} parent=5 // pred_check_branch
      %152 = sbr.rel (%p150) target = $region28
    $region27: #{lstm_model_forward.5} parent=5 // pred_region
      // Predicated region
      $region29: #{lstm_model_forward.5} parent=27 // pred_check
        %p153 = pneg %p30
      $region30: #{lstm_model_forward.5} parent=27 // pred_check_branch
        %155 = sbr.rel (%p153) target = $region32
      $region31: #{lstm_model_forward.5} parent=27 // pred_region
        %s156 = smul.u32 8, %s10
        %p157 = scmp.lt.s32.totalorder %s156, 15
        %s158 = scalar_select %p157, %s156, 15
        %s159 = smul.addr %s158, 4
        %s160 = scalar_lea.vmem %s0, %s159
        %s161 = smul.u32 8, %s10
      $region32: #{lstm_model_forward.5} parent=27 // pred_fallthru
        _
    $region28: #{lstm_model_forward.5} parent=5 // pred_fallthru
      _
    %p162 = scmp.le.s32.totalorder 1, %s10
    %p163 = scmp.lt.s32.totalorder %s10, 3
    %p164 = pnand %p162, %p163
    %p165 = pneg %p164
    // Predicated region
    $region33: #{lstm_model_forward.5} parent=5 // pred_check
      _
    $region34: #{lstm_model_forward.5} parent=5 // pred_check_branch
      %167 = sbr.rel (%p164) target = $region36
    $region35: #{lstm_model_forward.5} parent=5 // pred_region
      %s168 = ssub.s32 %s10, 1
      %s169 = smul.u32 8, %s15
      %p170 = scmp.lt.s32.totalorder %s169, 15
      %s171 = scalar_select %p170, %s169, 15
      %s172 = smul.addr %s171, 4
      %s173 = scalar_lea.vmem %s0, %s172
      %p174 = pneg %p36
      %p175 = pneg %p33
      %p176 = pneg %p57
      %p177 = pneg %p54
      %p178 = pneg %p78
      %p179 = pneg %p75
      %p180 = pneg %p99
      %p181 = pneg %p96
      %p182 = pneg %p125
      %p183 = pneg %p122
      %s184 = smul.u32 8, %s15
      %p185 = scmp.lt.s32.totalorder %s184, 15
      %s186 = scalar_select %p185, %s184, 15
      %s187 = smul.addr %s186, 8
      %s188 = scalar_lea.vmem %s4, %s187
      %s189 = smul.u32 8, %s15
      %p190 = scmp.lt.s32.totalorder %s189, 15
      %s191 = scalar_select %p190, %s189, 15
      %s192 = smul.addr %s191, 4
      %s193 = scalar_lea.vmem %s0, %s192
      %s194 = smul.u32 8, %s15
      %s195 = smul.u32 8, %s15
      %p196 = scmp.lt.s32.totalorder %s195, 15
      %s197 = scalar_select %p196, %s195, 15
      %s198 = smul.addr %s197, 8
      %s199 = scalar_lea.vmem %s4, %s198
      %s200 = smul.u32 8, %s15
      %v202 = vld [vmem:[%s1] sm:$0xf]
      %v203 = vld [vmem:[%s1 + $0x4] sm:$0xf]
      %v204 = vld [vmem:[%s1 + $0x8] sm:$0xf]
      %v205 = vld [vmem:[%s1 + $0xc] sm:$0xf]
      %v206 = vld [vmem:[%s193] sm:$0xf]
      %v207 = vld [vmem:[%s193 + $0x4] sm:$0xf]
      %v208 = vld [vmem:[%s193 + $0x8] sm:$0xf]
      %v209 = vld [vmem:[%s193 + $0xc] sm:$0xf]
      %v210 = vld [vmem:[%s193 + $0x10] sm:$0xf]
      %v211 = vld [vmem:[%s193 + $0x14] sm:$0xf]
      %v212 = vld [vmem:[%s193 + $0x18] sm:$0xf]
      %v213 = vld [vmem:[%s193 + $0x1c] sm:$0xf]
      %v214 = vld [vmem:[%s2] sm:$0x1]
      %v216 = vperm.slane %v214, 0
      %v226 = vunpack.c.l.b16 %v206
      %v227 = vunpack.c.l.b16 %v207
      %v228 = vunpack.c.l.b16 %v208
      %v229 = vunpack.c.l.b16 %v209
      %v230 = vunpack.c.l.b16 %v210
      %v231 = vunpack.c.l.b16 %v211
      %v232 = vunpack.c.l.b16 %v212
      %v233 = vunpack.c.l.b16 %v213
      %v234 = vpack.c.b16 %v227, %v226
      %v235 = vpack.c.b16 %v229, %v228
      %v236 = vpack.c.b16 %v231, %v230
      %v237 = vpack.c.b16 %v233, %v232
      %v242 = vunpack.c.l.b16 %v202
      %v243 = vunpack.c.l.b16 %v203
      %v244 = vunpack.c.l.b16 %v204
      %v245 = vunpack.c.l.b16 %v205
      %v246 = vpack.c.b16 %v243, %v242
      %v247 = vpack.c.b16 %v245, %v244
      %vm250 = vcmask 261120
      %v252 = vsel %vm250, %v234, 0
      %v255 = vsel %vm250, %v235, 0
      %v258 = vsel %vm250, %v236, 0
      %v261 = vsel %vm250, %v237, 0
      %263 = vmatpush.bf16.msra.mxu0 0
      %264 = vmatpush.bf16.msra.mxu0 0
      %265 = vmatpush.bf16.msra.mxu0 0
      %266 = vmatpush.bf16.msra.mxu0 0
      %267 = vmatpush.bf16.msra.mxu0 0
      %268 = vmatpush.bf16.msra.mxu0 0
      %269 = vmatpush.bf16.msra.mxu0 %v247
      %270 = vmatpush.bf16.msra.mxu0 %v246
      %271 = vmatmul.bf16.gmra.mxu0 %v252
      %v272 = vpop.f32.mrf.mxu0
      %v273 = vadd.f32 %v216, %v272
      %v274 = vpop.f32.mrf.mxu0
      %v275 = vadd.f32 %v216, %v274
      %276 = vmatmul.bf16.gmra.mxu0 %v255
      %v277 = vpop.f32.mrf.mxu0
      %v278 = vadd.f32 %v216, %v277
      %v279 = vpop.f32.mrf.mxu0
      %v280 = vadd.f32 %v216, %v279
      %281 = vmatmul.bf16.gmra.mxu0 %v258
      %v282 = vpop.f32.mrf.mxu0
      %v283 = vadd.f32 %v216, %v282
      %v284 = vpop.f32.mrf.mxu0
      %v285 = vadd.f32 %v216, %v284
      %286 = vmatmul.bf16.gmra.mxu0 %v261
      %v287 = vpop.f32.mrf.mxu0
      %v288 = vadd.f32 %v216, %v287
      %v289 = vpop.f32.mrf.mxu0
      %v290 = vadd.f32 %v216, %v289
      %291 = vdwg.mxu0
      %v292 = vxor.u32 %v273, 2147483648
      %v293 = vxor.u32 %v275, 2147483648
      %v294 = vxor.u32 %v278, 2147483648
      %v295 = vxor.u32 %v280, 2147483648
      %v296 = vxor.u32 %v283, 2147483648
      %v297 = vxor.u32 %v285, 2147483648
      %v298 = vxor.u32 %v288, 2147483648
      %v299 = vxor.u32 %v290, 2147483648
      %v300 = vmul.f32 %v292, 1.442695
      %v301 = vpow.pop %v300
      %v302 = vmul.f32 %v293, 1.442695
      %v303 = vpow.pop %v302
      %v304 = vmul.f32 %v294, 1.442695
      %v305 = vpow.pop %v304
      %v306 = vmul.f32 %v295, 1.442695
      %v307 = vpow.pop %v306
      %v308 = vmul.f32 %v296, 1.442695
      %v309 = vpow.pop %v308
      %v310 = vmul.f32 %v297, 1.442695
      %v311 = vpow.pop %v310
      %v312 = vmul.f32 %v298, 1.442695
      %v313 = vpow.pop %v312
      %v314 = vmul.f32 %v299, 1.442695
      %v315 = vpow.pop %v314
      %v316 = vadd.f32 %v301, 1.0
      %v317 = vadd.f32 %v303, 1.0
      %v318 = vadd.f32 %v305, 1.0
      %v319 = vadd.f32 %v307, 1.0
      %v320 = vadd.f32 %v309, 1.0
      %v321 = vadd.f32 %v311, 1.0
      %v322 = vadd.f32 %v313, 1.0
      %v323 = vadd.f32 %v315, 1.0
      %v324 = vrcp.pop %v316
      %v325 = vmul.f32 %v316, %v324
      %v326 = vsub.f32 1.0, %v325
      %v327 = vmul.f32 %v324, %v326
      %v328 = vadd.f32 %v324, %v327
      %vm329 = vweird.f32 %v316
      %vm330 = vweird.f32 %v324
      %vm331 = vmor %vm329, %vm330
      %v332 = vsel %vm331, %v324, %v328
      %v333 = vand.u32 2147483647, %v316
      %vm334 = vcmp.eq.f32.partialorder %v333, 8.507059e+37
      %v335 = vand.u32 %v316, 2147483648
      %v336 = vor.u32 1.1754944e-38, %v335
      %v337 = vsel %vm334, %v336, %v332
      %v338 = vmul.f32 1.0, %v337
      %v339 = vrcp.pop %v317
      %v340 = vmul.f32 %v317, %v339
      %v341 = vsub.f32 1.0, %v340
      %v342 = vmul.f32 %v339, %v341
      %v343 = vadd.f32 %v339, %v342
      %vm344 = vweird.f32 %v317
      %vm345 = vweird.f32 %v339
      %vm346 = vmor %vm344, %vm345
      %v347 = vsel %vm346, %v339, %v343
      %v348 = vand.u32 2147483647, %v317
      %vm349 = vcmp.eq.f32.partialorder %v348, 8.507059e+37
      %v350 = vand.u32 %v317, 2147483648
      %v351 = vor.u32 1.1754944e-38, %v350
      %v352 = vsel %vm349, %v351, %v347
      %v353 = vmul.f32 1.0, %v352
      %v354 = vrcp.pop %v318
      %v355 = vmul.f32 %v318, %v354
      %v356 = vsub.f32 1.0, %v355
      %v357 = vmul.f32 %v354, %v356
      %v358 = vadd.f32 %v354, %v357
      %vm359 = vweird.f32 %v318
      %vm360 = vweird.f32 %v354
      %vm361 = vmor %vm359, %vm360
      %v362 = vsel %vm361, %v354, %v358
      %v363 = vand.u32 2147483647, %v318
      %vm364 = vcmp.eq.f32.partialorder %v363, 8.507059e+37
      %v365 = vand.u32 %v318, 2147483648
      %v366 = vor.u32 1.1754944e-38, %v365
      %v367 = vsel %vm364, %v366, %v362
      %v368 = vmul.f32 1.0, %v367
      %v369 = vrcp.pop %v319
      %v370 = vmul.f32 %v319, %v369
      %v371 = vsub.f32 1.0, %v370
      %v372 = vmul.f32 %v369, %v371
      %v373 = vadd.f32 %v369, %v372
      %vm374 = vweird.f32 %v319
      %vm375 = vweird.f32 %v369
      %vm376 = vmor %vm374, %vm375
      %v377 = vsel %vm376, %v369, %v373
      %v378 = vand.u32 2147483647, %v319
      %vm379 = vcmp.eq.f32.partialorder %v378, 8.507059e+37
      %v380 = vand.u32 %v319, 2147483648
      %v381 = vor.u32 1.1754944e-38, %v380
      %v382 = vsel %vm379, %v381, %v377
      %v383 = vmul.f32 1.0, %v382
      %v384 = vrcp.pop %v320
      %v385 = vmul.f32 %v320, %v384
      %v386 = vsub.f32 1.0, %v385
      %v387 = vmul.f32 %v384, %v386
      %v388 = vadd.f32 %v384, %v387
      %vm389 = vweird.f32 %v320
      %vm390 = vweird.f32 %v384
      %vm391 = vmor %vm389, %vm390
      %v392 = vsel %vm391, %v384, %v388
      %v393 = vand.u32 2147483647, %v320
      %vm394 = vcmp.eq.f32.partialorder %v393, 8.507059e+37
      %v395 = vand.u32 %v320, 2147483648
      %v396 = vor.u32 1.1754944e-38, %v395
      %v397 = vsel %vm394, %v396, %v392
      %v398 = vmul.f32 1.0, %v397
      %v399 = vrcp.pop %v321
      %v400 = vmul.f32 %v321, %v399
      %v401 = vsub.f32 1.0, %v400
      %v402 = vmul.f32 %v399, %v401
      %v403 = vadd.f32 %v399, %v402
      %vm404 = vweird.f32 %v321
      %vm405 = vweird.f32 %v399
      %vm406 = vmor %vm404, %vm405
      %v407 = vsel %vm406, %v399, %v403
      %v408 = vand.u32 2147483647, %v321
      %vm409 = vcmp.eq.f32.partialorder %v408, 8.507059e+37
      %v410 = vand.u32 %v321, 2147483648
      %v411 = vor.u32 1.1754944e-38, %v410
      %v412 = vsel %vm409, %v411, %v407
      %v413 = vmul.f32 1.0, %v412
      %v414 = vrcp.pop %v322
      %v415 = vmul.f32 %v322, %v414
      %v416 = vsub.f32 1.0, %v415
      %v417 = vmul.f32 %v414, %v416
      %v418 = vadd.f32 %v414, %v417
      %vm419 = vweird.f32 %v322
      %vm420 = vweird.f32 %v414
      %vm421 = vmor %vm419, %vm420
      %v422 = vsel %vm421, %v414, %v418
      %v423 = vand.u32 2147483647, %v322
      %vm424 = vcmp.eq.f32.partialorder %v423, 8.507059e+37
      %v425 = vand.u32 %v322, 2147483648
      %v426 = vor.u32 1.1754944e-38, %v425
      %v427 = vsel %vm424, %v426, %v422
      %v428 = vmul.f32 1.0, %v427
      %v429 = vrcp.pop %v323
      %v430 = vmul.f32 %v323, %v429
      %v431 = vsub.f32 1.0, %v430
      %v432 = vmul.f32 %v429, %v431
      %v433 = vadd.f32 %v429, %v432
      %vm434 = vweird.f32 %v323
      %vm435 = vweird.f32 %v429
      %vm436 = vmor %vm434, %vm435
      %v437 = vsel %vm436, %v429, %v433
      %v438 = vand.u32 2147483647, %v323
      %vm439 = vcmp.eq.f32.partialorder %v438, 8.507059e+37
      %v440 = vand.u32 %v323, 2147483648
      %v441 = vor.u32 1.1754944e-38, %v440
      %v442 = vsel %vm439, %v441, %v437
      %v443 = vmul.f32 1.0, %v442
      %v444 = vld [vmem:[%s3] sm:$0xff]
      %v445 = vld [vmem:[%s3 + $0x8] sm:$0xff]
      %v454 = vrot.slane %v338, 1
      %v455 = vrot.slane %v338, 2
      %v456 = vrot.slane %v338, 3
      %v457 = vrot.slane %v338, 4
      %v458 = vrot.slane %v338, 5
      %v459 = vrot.slane %v338, 6
      %v460 = vrot.slane %v338, 7
      %v461 = vrot.slane %v353, 1
      %v462 = vrot.slane %v353, 2
      %v463 = vrot.slane %v353, 3
      %v464 = vrot.slane %v353, 4
      %v465 = vrot.slane %v353, 5
      %v466 = vrot.slane %v353, 6
      %v467 = vrot.slane %v353, 7
      %v468 = vrot.slane %v368, 1
      %v469 = vrot.slane %v368, 2
      %v470 = vrot.slane %v368, 3
      %v471 = vrot.slane %v368, 4
      %v472 = vrot.slane %v368, 5
      %v473 = vrot.slane %v368, 6
      %v474 = vrot.slane %v368, 7
      %v475 = vrot.slane %v383, 1
      %v476 = vrot.slane %v383, 2
      %v477 = vrot.slane %v383, 3
      %v478 = vrot.slane %v383, 4
      %v479 = vrot.slane %v383, 5
      %v480 = vrot.slane %v383, 6
      %v481 = vrot.slane %v383, 7
      %v482 = vrot.slane %v398, 1
      %v483 = vrot.slane %v398, 2
      %v484 = vrot.slane %v398, 3
      %v485 = vrot.slane %v398, 4
      %v486 = vrot.slane %v398, 5
      %v487 = vrot.slane %v398, 6
      %v488 = vrot.slane %v398, 7
      %v489 = vrot.slane %v413, 1
      %v490 = vrot.slane %v413, 2
      %v491 = vrot.slane %v413, 3
      %v492 = vrot.slane %v413, 4
      %v493 = vrot.slane %v413, 5
      %v494 = vrot.slane %v413, 6
      %v495 = vrot.slane %v413, 7
      %v496 = vrot.slane %v428, 1
      %v497 = vrot.slane %v428, 2
      %v498 = vrot.slane %v428, 3
      %v499 = vrot.slane %v428, 4
      %v500 = vrot.slane %v428, 5
      %v501 = vrot.slane %v428, 6
      %v502 = vrot.slane %v428, 7
      %v503 = vrot.slane %v443, 1
      %v504 = vrot.slane %v443, 2
      %v505 = vrot.slane %v443, 3
      %v506 = vrot.slane %v443, 4
      %v507 = vrot.slane %v443, 5
      %v508 = vrot.slane %v443, 6
      %v509 = vrot.slane %v443, 7
      %v510 = vperm.slane %v338, 0
      %v511 = vperm.slane %v454, 0
      %v512 = vperm.slane %v455, 0
      %v513 = vperm.slane %v456, 0
      %v514 = vperm.slane %v457, 0
      %v515 = vperm.slane %v458, 0
      %v516 = vperm.slane %v459, 0
      %v517 = vperm.slane %v460, 0
      %v518 = vperm.slane %v353, 0
      %v519 = vperm.slane %v461, 0
      %v520 = vperm.slane %v462, 0
      %v521 = vperm.slane %v463, 0
      %v522 = vperm.slane %v464, 0
      %v523 = vperm.slane %v465, 0
      %v524 = vperm.slane %v466, 0
      %v525 = vperm.slane %v467, 0
      %v526 = vperm.slane %v368, 0
      %v527 = vperm.slane %v468, 0
      %v528 = vperm.slane %v469, 0
      %v529 = vperm.slane %v470, 0
      %v530 = vperm.slane %v471, 0
      %v531 = vperm.slane %v472, 0
      %v532 = vperm.slane %v473, 0
      %v533 = vperm.slane %v474, 0
      %v534 = vperm.slane %v383, 0
      %v535 = vperm.slane %v475, 0
      %v536 = vperm.slane %v476, 0
      %v537 = vperm.slane %v477, 0
      %v538 = vperm.slane %v478, 0
      %v539 = vperm.slane %v479, 0
      %v540 = vperm.slane %v480, 0
      %v541 = vperm.slane %v481, 0
      %v542 = vperm.slane %v398, 0
      %v543 = vperm.slane %v482, 0
      %v544 = vperm.slane %v483, 0
      %v545 = vperm.slane %v484, 0
      %v546 = vperm.slane %v485, 0
      %v547 = vperm.slane %v486, 0
      %v548 = vperm.slane %v487, 0
      %v549 = vperm.slane %v488, 0
      %v550 = vperm.slane %v413, 0
      %v551 = vperm.slane %v489, 0
      %v552 = vperm.slane %v490, 0
      %v553 = vperm.slane %v491, 0
      %v554 = vperm.slane %v492, 0
      %v555 = vperm.slane %v493, 0
      %v556 = vperm.slane %v494, 0
      %v557 = vperm.slane %v495, 0
      %v558 = vperm.slane %v428, 0
      %v559 = vperm.slane %v496, 0
      %v560 = vperm.slane %v497, 0
      %v561 = vperm.slane %v498, 0
      %v562 = vperm.slane %v499, 0
      %v563 = vperm.slane %v500, 0
      %v564 = vperm.slane %v501, 0
      %v565 = vperm.slane %v502, 0
      %v566 = vperm.slane %v443, 0
      %v567 = vperm.slane %v503, 0
      %v568 = vperm.slane %v504, 0
      %v569 = vperm.slane %v505, 0
      %v570 = vperm.slane %v506, 0
      %v571 = vperm.slane %v507, 0
      %v572 = vperm.slane %v508, 0
      %v573 = vperm.slane %v509, 0
      %v638 = vmul.f32 %v444, %v510
      %v639 = vmul.f32 %v445, %v510
      %v640 = vmul.f32 %v444, %v511
      %v641 = vmul.f32 %v445, %v511
      %v642 = vmul.f32 %v444, %v512
      %v643 = vmul.f32 %v445, %v512
      %v644 = vmul.f32 %v444, %v513
      %v645 = vmul.f32 %v445, %v513
      %v646 = vmul.f32 %v444, %v514
      %v647 = vmul.f32 %v445, %v514
      %v648 = vmul.f32 %v444, %v515
      %v649 = vmul.f32 %v445, %v515
      %v650 = vmul.f32 %v444, %v516
      %v651 = vmul.f32 %v445, %v516
      %v652 = vmul.f32 %v444, %v517
      %v653 = vmul.f32 %v445, %v517
      %v654 = vmul.f32 %v444, %v518
      %v655 = vmul.f32 %v445, %v518
      %v656 = vmul.f32 %v444, %v519
      %v657 = vmul.f32 %v445, %v519
      %v658 = vmul.f32 %v444, %v520
      %v659 = vmul.f32 %v445, %v520
      %v660 = vmul.f32 %v444, %v521
      %v661 = vmul.f32 %v445, %v521
      %v662 = vmul.f32 %v444, %v522
      %v663 = vmul.f32 %v445, %v522
      %v664 = vmul.f32 %v444, %v523
      %v665 = vmul.f32 %v445, %v523
      %v666 = vmul.f32 %v444, %v524
      %v667 = vmul.f32 %v445, %v524
      %v668 = vmul.f32 %v444, %v525
      %v669 = vmul.f32 %v445, %v525
      %v670 = vmul.f32 %v444, %v526
      %v671 = vmul.f32 %v445, %v526
      %v672 = vmul.f32 %v444, %v527
      %v673 = vmul.f32 %v445, %v527
      %v674 = vmul.f32 %v444, %v528
      %v675 = vmul.f32 %v445, %v528
      %v676 = vmul.f32 %v444, %v529
      %v677 = vmul.f32 %v445, %v529
      %v678 = vmul.f32 %v444, %v530
      %v679 = vmul.f32 %v445, %v530
      %v680 = vmul.f32 %v444, %v531
      %v681 = vmul.f32 %v445, %v531
      %v682 = vmul.f32 %v444, %v532
      %v683 = vmul.f32 %v445, %v532
      %v684 = vmul.f32 %v444, %v533
      %v685 = vmul.f32 %v445, %v533
      %v686 = vmul.f32 %v444, %v534
      %v687 = vmul.f32 %v445, %v534
      %v688 = vmul.f32 %v444, %v535
      %v689 = vmul.f32 %v445, %v535
      %v690 = vmul.f32 %v444, %v536
      %v691 = vmul.f32 %v445, %v536
      %v692 = vmul.f32 %v444, %v537
      %v693 = vmul.f32 %v445, %v537
      %v694 = vmul.f32 %v444, %v538
      %v695 = vmul.f32 %v445, %v538
      %v696 = vmul.f32 %v444, %v539
      %v697 = vmul.f32 %v445, %v539
      %v698 = vmul.f32 %v444, %v540
      %v699 = vmul.f32 %v445, %v540
      %v700 = vmul.f32 %v444, %v541
      %v701 = vmul.f32 %v445, %v541
      %v702 = vmul.f32 %v444, %v542
      %v703 = vmul.f32 %v445, %v542
      %v704 = vmul.f32 %v444, %v543
      %v705 = vmul.f32 %v445, %v543
      %v706 = vmul.f32 %v444, %v544
      %v707 = vmul.f32 %v445, %v544
      %v708 = vmul.f32 %v444, %v545
      %v709 = vmul.f32 %v445, %v545
      %v710 = vmul.f32 %v444, %v546
      %v711 = vmul.f32 %v445, %v546
      %v712 = vmul.f32 %v444, %v547
      %v713 = vmul.f32 %v445, %v547
      %v714 = vmul.f32 %v444, %v548
      %v715 = vmul.f32 %v445, %v548
      %v716 = vmul.f32 %v444, %v549
      %v717 = vmul.f32 %v445, %v549
      %v718 = vmul.f32 %v444, %v550
      %v719 = vmul.f32 %v445, %v550
      %v720 = vmul.f32 %v444, %v551
      %v721 = vmul.f32 %v445, %v551
      %v722 = vmul.f32 %v444, %v552
      %v723 = vmul.f32 %v445, %v552
      %v724 = vmul.f32 %v444, %v553
      %v725 = vmul.f32 %v445, %v553
      %v726 = vmul.f32 %v444, %v554
      %v727 = vmul.f32 %v445, %v554
      %v728 = vmul.f32 %v444, %v555
      %v729 = vmul.f32 %v445, %v555
      %v730 = vmul.f32 %v444, %v556
      %v731 = vmul.f32 %v445, %v556
      %v732 = vmul.f32 %v444, %v557
      %v733 = vmul.f32 %v445, %v557
      %v734 = vmul.f32 %v444, %v558
      %v735 = vmul.f32 %v445, %v558
      %v736 = vmul.f32 %v444, %v559
      %v737 = vmul.f32 %v445, %v559
      %v738 = vmul.f32 %v444, %v560
      %v739 = vmul.f32 %v445, %v560
      %v740 = vmul.f32 %v444, %v561
      %v741 = vmul.f32 %v445, %v561
      %v742 = vmul.f32 %v444, %v562
      %v743 = vmul.f32 %v445, %v562
      %v744 = vmul.f32 %v444, %v563
      %v745 = vmul.f32 %v445, %v563
      %v746 = vmul.f32 %v444, %v564
      %v747 = vmul.f32 %v445, %v564
      %v748 = vmul.f32 %v444, %v565
      %v749 = vmul.f32 %v445, %v565
      %v750 = vmul.f32 %v444, %v566
      %v751 = vmul.f32 %v445, %v566
      %v752 = vmul.f32 %v444, %v567
      %v753 = vmul.f32 %v445, %v567
      %v754 = vmul.f32 %v444, %v568
      %v755 = vmul.f32 %v445, %v568
      %v756 = vmul.f32 %v444, %v569
      %v757 = vmul.f32 %v445, %v569
      %v758 = vmul.f32 %v444, %v570
      %v759 = vmul.f32 %v445, %v570
      %v760 = vmul.f32 %v444, %v571
      %v761 = vmul.f32 %v445, %v571
      %v762 = vmul.f32 %v444, %v572
      %v763 = vmul.f32 %v445, %v572
      %v764 = vmul.f32 %v444, %v573
      %v765 = vmul.f32 %v445, %v573
      %vm766 = vcmask 130048
      %v767 = vsel %vm766, %v638, -inf
      %768 = vmax.xlane.f32.xlu0 %v767
      %v769 = vpop.xlane.xlu0 %768
      %v770 = vsel %vm766, %v639, -inf
      %771 = vmax.xlane.f32.xlu0 %v770
      %v772 = vpop.xlane.xlu0 %771
      %v773 = vsel %vm766, %v640, -inf
      %774 = vmax.xlane.f32.xlu0 %v773
      %v775 = vpop.xlane.xlu0 %774
      %v776 = vsel %vm766, %v641, -inf
      %777 = vmax.xlane.f32.xlu0 %v776
      %v778 = vpop.xlane.xlu0 %777
      %v779 = vsel %vm766, %v642, -inf
      %780 = vmax.xlane.f32.xlu0 %v779
      %v781 = vpop.xlane.xlu0 %780
      %v782 = vsel %vm766, %v643, -inf
      %783 = vmax.xlane.f32.xlu0 %v782
      %v784 = vpop.xlane.xlu0 %783
      %v785 = vsel %vm766, %v644, -inf
      %786 = vmax.xlane.f32.xlu0 %v785
      %v787 = vpop.xlane.xlu0 %786
      %v788 = vsel %vm766, %v645, -inf
      %789 = vmax.xlane.f32.xlu0 %v788
      %v790 = vpop.xlane.xlu0 %789
      %v791 = vsel %vm766, %v646, -inf
      %792 = vmax.xlane.f32.xlu0 %v791
      %v793 = vpop.xlane.xlu0 %792
      %v794 = vsel %vm766, %v647, -inf
      %795 = vmax.xlane.f32.xlu0 %v794
      %v796 = vpop.xlane.xlu0 %795
      %v797 = vsel %vm766, %v648, -inf
      %798 = vmax.xlane.f32.xlu0 %v797
      %v799 = vpop.xlane.xlu0 %798
      %v800 = vsel %vm766, %v649, -inf
      %801 = vmax.xlane.f32.xlu0 %v800
      %v802 = vpop.xlane.xlu0 %801
      %v803 = vsel %vm766, %v650, -inf
      %804 = vmax.xlane.f32.xlu0 %v803
      %v805 = vpop.xlane.xlu0 %804
      %v806 = vsel %vm766, %v651, -inf
      %807 = vmax.xlane.f32.xlu0 %v806
      %v808 = vpop.xlane.xlu0 %807
      %v809 = vsel %vm766, %v652, -inf
      %810 = vmax.xlane.f32.xlu0 %v809
      %v811 = vpop.xlane.xlu0 %810
      %v812 = vsel %vm766, %v653, -inf
      %813 = vmax.xlane.f32.xlu0 %v812
      %v814 = vpop.xlane.xlu0 %813
      %v815 = vsel %vm766, %v654, -inf
      %816 = vmax.xlane.f32.xlu0 %v815
      %v817 = vpop.xlane.xlu0 %816
      %v818 = vsel %vm766, %v655, -inf
      %819 = vmax.xlane.f32.xlu0 %v818
      %v820 = vpop.xlane.xlu0 %819
      %v821 = vsel %vm766, %v656, -inf
      %822 = vmax.xlane.f32.xlu0 %v821
      %v823 = vpop.xlane.xlu0 %822
      %v824 = vsel %vm766, %v657, -inf
      %825 = vmax.xlane.f32.xlu0 %v824
      %v826 = vpop.xlane.xlu0 %825
      %v827 = vsel %vm766, %v658, -inf
      %828 = vmax.xlane.f32.xlu0 %v827
      %v829 = vpop.xlane.xlu0 %828
      %v830 = vsel %vm766, %v659, -inf
      %831 = vmax.xlane.f32.xlu0 %v830
      %v832 = vpop.xlane.xlu0 %831
      %v833 = vsel %vm766, %v660, -inf
      %834 = vmax.xlane.f32.xlu0 %v833
      %v835 = vpop.xlane.xlu0 %834
      %v836 = vsel %vm766, %v661, -inf
      %837 = vmax.xlane.f32.xlu0 %v836
      %v838 = vpop.xlane.xlu0 %837
      %v839 = vsel %vm766, %v662, -inf
      %840 = vmax.xlane.f32.xlu0 %v839
      %v841 = vpop.xlane.xlu0 %840
      %v842 = vsel %vm766, %v663, -inf
      %843 = vmax.xlane.f32.xlu0 %v842
      %v844 = vpop.xlane.xlu0 %843
      %v845 = vsel %vm766, %v664, -inf
      %846 = vmax.xlane.f32.xlu0 %v845
      %v847 = vpop.xlane.xlu0 %846
      %v848 = vsel %vm766, %v665, -inf
      %849 = vmax.xlane.f32.xlu0 %v848
      %v850 = vpop.xlane.xlu0 %849
      %v851 = vsel %vm766, %v666, -inf
      %852 = vmax.xlane.f32.xlu0 %v851
      %v853 = vpop.xlane.xlu0 %852
      %v854 = vsel %vm766, %v667, -inf
      %855 = vmax.xlane.f32.xlu0 %v854
      %v856 = vpop.xlane.xlu0 %855
      %v857 = vsel %vm766, %v668, -inf
      %858 = vmax.xlane.f32.xlu0 %v857
      %v859 = vpop.xlane.xlu0 %858
      %v860 = vsel %vm766, %v669, -inf
      %861 = vmax.xlane.f32.xlu0 %v860
      %v862 = vpop.xlane.xlu0 %861
      %v863 = vsel %vm766, %v670, -inf
      %864 = vmax.xlane.f32.xlu0 %v863
      %v865 = vpop.xlane.xlu0 %864
      %v866 = vsel %vm766, %v671, -inf
      %867 = vmax.xlane.f32.xlu0 %v866
      %v868 = vpop.xlane.xlu0 %867
      %v869 = vsel %vm766, %v672, -inf
      %870 = vmax.xlane.f32.xlu0 %v869
      %v871 = vpop.xlane.xlu0 %870
      %v872 = vsel %vm766, %v673, -inf
      %873 = vmax.xlane.f32.xlu0 %v872
      %v874 = vpop.xlane.xlu0 %873
      %v875 = vsel %vm766, %v674, -inf
      %876 = vmax.xlane.f32.xlu0 %v875
      %v877 = vpop.xlane.xlu0 %876
      %v878 = vsel %vm766, %v675, -inf
      %879 = vmax.xlane.f32.xlu0 %v878
      %v880 = vpop.xlane.xlu0 %879
      %v881 = vsel %vm766, %v676, -inf
      %882 = vmax.xlane.f32.xlu0 %v881
      %v883 = vpop.xlane.xlu0 %882
      %v884 = vsel %vm766, %v677, -inf
      %885 = vmax.xlane.f32.xlu0 %v884
      %v886 = vpop.xlane.xlu0 %885
      %v887 = vsel %vm766, %v678, -inf
      %888 = vmax.xlane.f32.xlu0 %v887
      %v889 = vpop.xlane.xlu0 %888
      %v890 = vsel %vm766, %v679, -inf
      %891 = vmax.xlane.f32.xlu0 %v890
      %v892 = vpop.xlane.xlu0 %891
      %v893 = vsel %vm766, %v680, -inf
      %894 = vmax.xlane.f32.xlu0 %v893
      %v895 = vpop.xlane.xlu0 %894
      %v896 = vsel %vm766, %v681, -inf
      %897 = vmax.xlane.f32.xlu0 %v896
      %v898 = vpop.xlane.xlu0 %897
      %v899 = vsel %vm766, %v682, -inf
      %900 = vmax.xlane.f32.xlu0 %v899
      %v901 = vpop.xlane.xlu0 %900
      %v902 = vsel %vm766, %v683, -inf
      %903 = vmax.xlane.f32.xlu0 %v902
      %v904 = vpop.xlane.xlu0 %903
      %v905 = vsel %vm766, %v684, -inf
      %906 = vmax.xlane.f32.xlu0 %v905
      %v907 = vpop.xlane.xlu0 %906
      %v908 = vsel %vm766, %v685, -inf
      %909 = vmax.xlane.f32.xlu0 %v908
      %v910 = vpop.xlane.xlu0 %909
      %v911 = vsel %vm766, %v686, -inf
      %912 = vmax.xlane.f32.xlu0 %v911
      %v913 = vpop.xlane.xlu0 %912
      %v914 = vsel %vm766, %v687, -inf
      %915 = vmax.xlane.f32.xlu0 %v914
      %v916 = vpop.xlane.xlu0 %915
      %v917 = vsel %vm766, %v688, -inf
      %918 = vmax.xlane.f32.xlu0 %v917
      %v919 = vpop.xlane.xlu0 %918
      %v920 = vsel %vm766, %v689, -inf
      %921 = vmax.xlane.f32.xlu0 %v920
      %v922 = vpop.xlane.xlu0 %921
      %v923 = vsel %vm766, %v690, -inf
      %924 = vmax.xlane.f32.xlu0 %v923
      %v925 = vpop.xlane.xlu0 %924
      %v926 = vsel %vm766, %v691, -inf
      %927 = vmax.xlane.f32.xlu0 %v926
      %v928 = vpop.xlane.xlu0 %927
      %v929 = vsel %vm766, %v692, -inf
      %930 = vmax.xlane.f32.xlu0 %v929
      %v931 = vpop.xlane.xlu0 %930
      %v932 = vsel %vm766, %v693, -inf
      %933 = vmax.xlane.f32.xlu0 %v932
      %v934 = vpop.xlane.xlu0 %933
      %v935 = vsel %vm766, %v694, -inf
      %936 = vmax.xlane.f32.xlu0 %v935
      %v937 = vpop.xlane.xlu0 %936
      %v938 = vsel %vm766, %v695, -inf
      %939 = vmax.xlane.f32.xlu0 %v938
      %v940 = vpop.xlane.xlu0 %939
      %v941 = vsel %vm766, %v696, -inf
      %942 = vmax.xlane.f32.xlu0 %v941
      %v943 = vpop.xlane.xlu0 %942
      %v944 = vsel %vm766, %v697, -inf
      %945 = vmax.xlane.f32.xlu0 %v944
      %v946 = vpop.xlane.xlu0 %945
      %v947 = vsel %vm766, %v698, -inf
      %948 = vmax.xlane.f32.xlu0 %v947
      %v949 = vpop.xlane.xlu0 %948
      %v950 = vsel %vm766, %v699, -inf
      %951 = vmax.xlane.f32.xlu0 %v950
      %v952 = vpop.xlane.xlu0 %951
      %v953 = vsel %vm766, %v700, -inf
      %954 = vmax.xlane.f32.xlu0 %v953
      %v955 = vpop.xlane.xlu0 %954
      %v956 = vsel %vm766, %v701, -inf
      %957 = vmax.xlane.f32.xlu0 %v956
      %v958 = vpop.xlane.xlu0 %957
      %v959 = vsel %vm766, %v702, -inf
      %960 = vmax.xlane.f32.xlu0 %v959
      %v961 = vpop.xlane.xlu0 %960
      %v962 = vsel %vm766, %v703, -inf
      %963 = vmax.xlane.f32.xlu0 %v962
      %v964 = vpop.xlane.xlu0 %963
      %v965 = vsel %vm766, %v704, -inf
      %966 = vmax.xlane.f32.xlu0 %v965
      %v967 = vpop.xlane.xlu0 %966
      %v968 = vsel %vm766, %v705, -inf
      %969 = vmax.xlane.f32.xlu0 %v968
      %v970 = vpop.xlane.xlu0 %969
      %v971 = vsel %vm766, %v706, -inf
      %972 = vmax.xlane.f32.xlu0 %v971
      %v973 = vpop.xlane.xlu0 %972
      %v974 = vsel %vm766, %v707, -inf
      %975 = vmax.xlane.f32.xlu0 %v974
      %v976 = vpop.xlane.xlu0 %975
      %v977 = vsel %vm766, %v708, -inf
      %978 = vmax.xlane.f32.xlu0 %v977
      %v979 = vpop.xlane.xlu0 %978
      %v980 = vsel %vm766, %v709, -inf
      %981 = vmax.xlane.f32.xlu0 %v980
      %v982 = vpop.xlane.xlu0 %981
      %v983 = vsel %vm766, %v710, -inf
      %984 = vmax.xlane.f32.xlu0 %v983
      %v985 = vpop.xlane.xlu0 %984
      %v986 = vsel %vm766, %v711, -inf
      %987 = vmax.xlane.f32.xlu0 %v986
      %v988 = vpop.xlane.xlu0 %987
      %v989 = vsel %vm766, %v712, -inf
      %990 = vmax.xlane.f32.xlu0 %v989
      %v991 = vpop.xlane.xlu0 %990
      %v992 = vsel %vm766, %v713, -inf
      %993 = vmax.xlane.f32.xlu0 %v992
      %v994 = vpop.xlane.xlu0 %993
      %v995 = vsel %vm766, %v714, -inf
      %996 = vmax.xlane.f32.xlu0 %v995
      %v997 = vpop.xlane.xlu0 %996
      %v998 = vsel %vm766, %v715, -inf
      %999 = vmax.xlane.f32.xlu0 %v998
      %v1000 = vpop.xlane.xlu0 %999
      %v1001 = vsel %vm766, %v716, -inf
      %1002 = vmax.xlane.f32.xlu0 %v1001
      %v1003 = vpop.xlane.xlu0 %1002
      %v1004 = vsel %vm766, %v717, -inf
      %1005 = vmax.xlane.f32.xlu0 %v1004
      %v1006 = vpop.xlane.xlu0 %1005
      %v1007 = vsel %vm766, %v718, -inf
      %1008 = vmax.xlane.f32.xlu0 %v1007
      %v1009 = vpop.xlane.xlu0 %1008
      %v1010 = vsel %vm766, %v719, -inf
      %1011 = vmax.xlane.f32.xlu0 %v1010
      %v1012 = vpop.xlane.xlu0 %1011
      %v1013 = vsel %vm766, %v720, -inf
      %1014 = vmax.xlane.f32.xlu0 %v1013
      %v1015 = vpop.xlane.xlu0 %1014
      %v1016 = vsel %vm766, %v721, -inf
      %1017 = vmax.xlane.f32.xlu0 %v1016
      %v1018 = vpop.xlane.xlu0 %1017
      %v1019 = vsel %vm766, %v722, -inf
      %1020 = vmax.xlane.f32.xlu0 %v1019
      %v1021 = vpop.xlane.xlu0 %1020
      %v1022 = vsel %vm766, %v723, -inf
      %1023 = vmax.xlane.f32.xlu0 %v1022
      %v1024 = vpop.xlane.xlu0 %1023
      %v1025 = vsel %vm766, %v724, -inf
      %1026 = vmax.xlane.f32.xlu0 %v1025
      %v1027 = vpop.xlane.xlu0 %1026
      %v1028 = vsel %vm766, %v725, -inf
      %1029 = vmax.xlane.f32.xlu0 %v1028
      %v1030 = vpop.xlane.xlu0 %1029
      %v1031 = vsel %vm766, %v726, -inf
      %1032 = vmax.xlane.f32.xlu0 %v1031
      %v1033 = vpop.xlane.xlu0 %1032
      %v1034 = vsel %vm766, %v727, -inf
      %1035 = vmax.xlane.f32.xlu0 %v1034
      %v1036 = vpop.xlane.xlu0 %1035
      %v1037 = vsel %vm766, %v728, -inf
      %1038 = vmax.xlane.f32.xlu0 %v1037
      %v1039 = vpop.xlane.xlu0 %1038
      %v1040 = vsel %vm766, %v729, -inf
      %1041 = vmax.xlane.f32.xlu0 %v1040
      %v1042 = vpop.xlane.xlu0 %1041
      %v1043 = vsel %vm766, %v730, -inf
      %1044 = vmax.xlane.f32.xlu0 %v1043
      %v1045 = vpop.xlane.xlu0 %1044
      %v1046 = vsel %vm766, %v731, -inf
      %1047 = vmax.xlane.f32.xlu0 %v1046
      %v1048 = vpop.xlane.xlu0 %1047
      %v1049 = vsel %vm766, %v732, -inf
      %1050 = vmax.xlane.f32.xlu0 %v1049
      %v1051 = vpop.xlane.xlu0 %1050
      %v1052 = vsel %vm766, %v733, -inf
      %1053 = vmax.xlane.f32.xlu0 %v1052
      %v1054 = vpop.xlane.xlu0 %1053
      %v1055 = vsel %vm766, %v734, -inf
      %1056 = vmax.xlane.f32.xlu0 %v1055
      %v1057 = vpop.xlane.xlu0 %1056
      %v1058 = vsel %vm766, %v735, -inf
      %1059 = vmax.xlane.f32.xlu0 %v1058
      %v1060 = vpop.xlane.xlu0 %1059
      %v1061 = vsel %vm766, %v736, -inf
      %1062 = vmax.xlane.f32.xlu0 %v1061
      %v1063 = vpop.xlane.xlu0 %1062
      %v1064 = vsel %vm766, %v737, -inf
      %1065 = vmax.xlane.f32.xlu0 %v1064
      %v1066 = vpop.xlane.xlu0 %1065
      %v1067 = vsel %vm766, %v738, -inf
      %1068 = vmax.xlane.f32.xlu0 %v1067
      %v1069 = vpop.xlane.xlu0 %1068
      %v1070 = vsel %vm766, %v739, -inf
      %1071 = vmax.xlane.f32.xlu0 %v1070
      %v1072 = vpop.xlane.xlu0 %1071
      %v1073 = vsel %vm766, %v740, -inf
      %1074 = vmax.xlane.f32.xlu0 %v1073
      %v1075 = vpop.xlane.xlu0 %1074
      %v1076 = vsel %vm766, %v741, -inf
      %1077 = vmax.xlane.f32.xlu0 %v1076
      %v1078 = vpop.xlane.xlu0 %1077
      %v1079 = vsel %vm766, %v742, -inf
      %1080 = vmax.xlane.f32.xlu0 %v1079
      %v1081 = vpop.xlane.xlu0 %1080
      %v1082 = vsel %vm766, %v743, -inf
      %1083 = vmax.xlane.f32.xlu0 %v1082
      %v1084 = vpop.xlane.xlu0 %1083
      %v1085 = vsel %vm766, %v744, -inf
      %1086 = vmax.xlane.f32.xlu0 %v1085
      %v1087 = vpop.xlane.xlu0 %1086
      %v1088 = vsel %vm766, %v745, -inf
      %1089 = vmax.xlane.f32.xlu0 %v1088
      %v1090 = vpop.xlane.xlu0 %1089
      %v1091 = vsel %vm766, %v746, -inf
      %1092 = vmax.xlane.f32.xlu0 %v1091
      %v1093 = vpop.xlane.xlu0 %1092
      %v1094 = vsel %vm766, %v747, -inf
      %1095 = vmax.xlane.f32.xlu0 %v1094
      %v1096 = vpop.xlane.xlu0 %1095
      %v1097 = vsel %vm766, %v748, -inf
      %1098 = vmax.xlane.f32.xlu0 %v1097
      %v1099 = vpop.xlane.xlu0 %1098
      %v1100 = vsel %vm766, %v749, -inf
      %1101 = vmax.xlane.f32.xlu0 %v1100
      %v1102 = vpop.xlane.xlu0 %1101
      %v1103 = vsel %vm766, %v750, -inf
      %1104 = vmax.xlane.f32.xlu0 %v1103
      %v1105 = vpop.xlane.xlu0 %1104
      %v1106 = vsel %vm766, %v751, -inf
      %1107 = vmax.xlane.f32.xlu0 %v1106
      %v1108 = vpop.xlane.xlu0 %1107
      %v1109 = vsel %vm766, %v752, -inf
      %1110 = vmax.xlane.f32.xlu0 %v1109
      %v1111 = vpop.xlane.xlu0 %1110
      %v1112 = vsel %vm766, %v753, -inf
      %1113 = vmax.xlane.f32.xlu0 %v1112
      %v1114 = vpop.xlane.xlu0 %1113
      %v1115 = vsel %vm766, %v754, -inf
      %1116 = vmax.xlane.f32.xlu0 %v1115
      %v1117 = vpop.xlane.xlu0 %1116
      %v1118 = vsel %vm766, %v755, -inf
      %1119 = vmax.xlane.f32.xlu0 %v1118
      %v1120 = vpop.xlane.xlu0 %1119
      %v1121 = vsel %vm766, %v756, -inf
      %1122 = vmax.xlane.f32.xlu0 %v1121
      %v1123 = vpop.xlane.xlu0 %1122
      %v1124 = vsel %vm766, %v757, -inf
      %1125 = vmax.xlane.f32.xlu0 %v1124
      %v1126 = vpop.xlane.xlu0 %1125
      %v1127 = vsel %vm766, %v758, -inf
      %1128 = vmax.xlane.f32.xlu0 %v1127
      %v1129 = vpop.xlane.xlu0 %1128
      %v1130 = vsel %vm766, %v759, -inf
      %1131 = vmax.xlane.f32.xlu0 %v1130
      %v1132 = vpop.xlane.xlu0 %1131
      %v1133 = vsel %vm766, %v760, -inf
      %1134 = vmax.xlane.f32.xlu0 %v1133
      %v1135 = vpop.xlane.xlu0 %1134
      %v1136 = vsel %vm766, %v761, -inf
      %1137 = vmax.xlane.f32.xlu0 %v1136
      %v1138 = vpop.xlane.xlu0 %1137
      %v1139 = vsel %vm766, %v762, -inf
      %1140 = vmax.xlane.f32.xlu0 %v1139
      %v1141 = vpop.xlane.xlu0 %1140
      %v1142 = vsel %vm766, %v763, -inf
      %1143 = vmax.xlane.f32.xlu0 %v1142
      %v1144 = vpop.xlane.xlu0 %1143
      %v1145 = vsel %vm766, %v764, -inf
      %1146 = vmax.xlane.f32.xlu0 %v1145
      %v1147 = vpop.xlane.xlu0 %1146
      %v1148 = vsel %vm766, %v765, -inf
      %1149 = vmax.xlane.f32.xlu0 %v1148
      %v1150 = vpop.xlane.xlu0 %1149
      %v1279 = vlaneseq
      %v1280 = vand.u32 %v1279, 127
      %v1281 = vperm.slane %v769, %v1280
      %v1282 = vadd.s32 %v1280, 4294967288
      %v1283 = vperm.slane %v772, %v1282
      %vm1284 = vcmask 130112
      %v1285 = vsel %vm1284, %v1283, %v1281
      %v1286 = vperm.slane %v775, %v1280
      %v1287 = vperm.slane %v778, %v1282
      %v1288 = vsel %vm1284, %v1287, %v1286
      %v1289 = vperm.slane %v781, %v1280
      %v1290 = vperm.slane %v784, %v1282
      %v1291 = vsel %vm1284, %v1290, %v1289
      %v1292 = vperm.slane %v787, %v1280
      %v1293 = vperm.slane %v790, %v1282
      %v1294 = vsel %vm1284, %v1293, %v1292
      %v1295 = vperm.slane %v793, %v1280
      %v1296 = vperm.slane %v796, %v1282
      %v1297 = vsel %vm1284, %v1296, %v1295
      %v1298 = vperm.slane %v799, %v1280
      %v1299 = vperm.slane %v802, %v1282
      %v1300 = vsel %vm1284, %v1299, %v1298
      %v1301 = vperm.slane %v805, %v1280
      %v1302 = vperm.slane %v808, %v1282
      %v1303 = vsel %vm1284, %v1302, %v1301
      %v1304 = vperm.slane %v811, %v1280
      %v1305 = vperm.slane %v814, %v1282
      %v1306 = vsel %vm1284, %v1305, %v1304
      %v1307 = vperm.slane %v817, %v1280
      %v1308 = vperm.slane %v820, %v1282
      %v1309 = vsel %vm1284, %v1308, %v1307
      %v1310 = vperm.slane %v823, %v1280
      %v1311 = vperm.slane %v826, %v1282
      %v1312 = vsel %vm1284, %v1311, %v1310
      %v1313 = vperm.slane %v829, %v1280
      %v1314 = vperm.slane %v832, %v1282
      %v1315 = vsel %vm1284, %v1314, %v1313
      %v1316 = vperm.slane %v835, %v1280
      %v1317 = vperm.slane %v838, %v1282
      %v1318 = vsel %vm1284, %v1317, %v1316
      %v1319 = vperm.slane %v841, %v1280
      %v1320 = vperm.slane %v844, %v1282
      %v1321 = vsel %vm1284, %v1320, %v1319
      %v1322 = vperm.slane %v847, %v1280
      %v1323 = vperm.slane %v850, %v1282
      %v1324 = vsel %vm1284, %v1323, %v1322
      %v1325 = vperm.slane %v853, %v1280
      %v1326 = vperm.slane %v856, %v1282
      %v1327 = vsel %vm1284, %v1326, %v1325
      %v1328 = vperm.slane %v859, %v1280
      %v1329 = vperm.slane %v862, %v1282
      %v1330 = vsel %vm1284, %v1329, %v1328
      %v1331 = vperm.slane %v865, %v1280
      %v1332 = vperm.slane %v868, %v1282
      %v1333 = vsel %vm1284, %v1332, %v1331
      %v1334 = vperm.slane %v871, %v1280
      %v1335 = vperm.slane %v874, %v1282
      %v1336 = vsel %vm1284, %v1335, %v1334
      %v1337 = vperm.slane %v877, %v1280
      %v1338 = vperm.slane %v880, %v1282
      %v1339 = vsel %vm1284, %v1338, %v1337
      %v1340 = vperm.slane %v883, %v1280
      %v1341 = vperm.slane %v886, %v1282
      %v1342 = vsel %vm1284, %v1341, %v1340
      %v1343 = vperm.slane %v889, %v1280
      %v1344 = vperm.slane %v892, %v1282
      %v1345 = vsel %vm1284, %v1344, %v1343
      %v1346 = vperm.slane %v895, %v1280
      %v1347 = vperm.slane %v898, %v1282
      %v1348 = vsel %vm1284, %v1347, %v1346
      %v1349 = vperm.slane %v901, %v1280
      %v1350 = vperm.slane %v904, %v1282
      %v1351 = vsel %vm1284, %v1350, %v1349
      %v1352 = vperm.slane %v907, %v1280
      %v1353 = vperm.slane %v910, %v1282
      %v1354 = vsel %vm1284, %v1353, %v1352
      %v1355 = vperm.slane %v913, %v1280
      %v1356 = vperm.slane %v916, %v1282
      %v1357 = vsel %vm1284, %v1356, %v1355
      %v1358 = vperm.slane %v919, %v1280
      %v1359 = vperm.slane %v922, %v1282
      %v1360 = vsel %vm1284, %v1359, %v1358
      %v1361 = vperm.slane %v925, %v1280
      %v1362 = vperm.slane %v928, %v1282
      %v1363 = vsel %vm1284, %v1362, %v1361
      %v1364 = vperm.slane %v931, %v1280
      %v1365 = vperm.slane %v934, %v1282
      %v1366 = vsel %vm1284, %v1365, %v1364
      %v1367 = vperm.slane %v937, %v1280
      %v1368 = vperm.slane %v940, %v1282
      %v1369 = vsel %vm1284, %v1368, %v1367
      %v1370 = vperm.slane %v943, %v1280
      %v1371 = vperm.slane %v946, %v1282
      %v1372 = vsel %vm1284, %v1371, %v1370
      %v1373 = vperm.slane %v949, %v1280
      %v1374 = vperm.slane %v952, %v1282
      %v1375 = vsel %vm1284, %v1374, %v1373
      %v1376 = vperm.slane %v955, %v1280
      %v1377 = vperm.slane %v958, %v1282
      %v1378 = vsel %vm1284, %v1377, %v1376
      %v1379 = vperm.slane %v961, %v1280
      %v1380 = vperm.slane %v964, %v1282
      %v1381 = vsel %vm1284, %v1380, %v1379
      %v1382 = vperm.slane %v967, %v1280
      %v1383 = vperm.slane %v970, %v1282
      %v1384 = vsel %vm1284, %v1383, %v1382
      %v1385 = vperm.slane %v973, %v1280
      %v1386 = vperm.slane %v976, %v1282
      %v1387 = vsel %vm1284, %v1386, %v1385
      %v1388 = vperm.slane %v979, %v1280
      %v1389 = vperm.slane %v982, %v1282
      %v1390 = vsel %vm1284, %v1389, %v1388
      %v1391 = vperm.slane %v985, %v1280
      %v1392 = vperm.slane %v988, %v1282
      %v1393 = vsel %vm1284, %v1392, %v1391
      %v1394 = vperm.slane %v991, %v1280
      %v1395 = vperm.slane %v994, %v1282
      %v1396 = vsel %vm1284, %v1395, %v1394
      %v1397 = vperm.slane %v997, %v1280
      %v1398 = vperm.slane %v1000, %v1282
      %v1399 = vsel %vm1284, %v1398, %v1397
      %v1400 = vperm.slane %v1003, %v1280
      %v1401 = vperm.slane %v1006, %v1282
      %v1402 = vsel %vm1284, %v1401, %v1400
      %v1403 = vperm.slane %v1009, %v1280
      %v1404 = vperm.slane %v1012, %v1282
      %v1405 = vsel %vm1284, %v1404, %v1403
      %v1406 = vperm.slane %v1015, %v1280
      %v1407 = vperm.slane %v1018, %v1282
      %v1408 = vsel %vm1284, %v1407, %v1406
      %v1409 = vperm.slane %v1021, %v1280
      %v1410 = vperm.slane %v1024, %v1282
      %v1411 = vsel %vm1284, %v1410, %v1409
      %v1412 = vperm.slane %v1027, %v1280
      %v1413 = vperm.slane %v1030, %v1282
      %v1414 = vsel %vm1284, %v1413, %v1412
      %v1415 = vperm.slane %v1033, %v1280
      %v1416 = vperm.slane %v1036, %v1282
      %v1417 = vsel %vm1284, %v1416, %v1415
      %v1418 = vperm.slane %v1039, %v1280
      %v1419 = vperm.slane %v1042, %v1282
      %v1420 = vsel %vm1284, %v1419, %v1418
      %v1421 = vperm.slane %v1045, %v1280
      %v1422 = vperm.slane %v1048, %v1282
      %v1423 = vsel %vm1284, %v1422, %v1421
      %v1424 = vperm.slane %v1051, %v1280
      %v1425 = vperm.slane %v1054, %v1282
      %v1426 = vsel %vm1284, %v1425, %v1424
      %v1427 = vperm.slane %v1057, %v1280
      %v1428 = vperm.slane %v1060, %v1282
      %v1429 = vsel %vm1284, %v1428, %v1427
      %v1430 = vperm.slane %v1063, %v1280
      %v1431 = vperm.slane %v1066, %v1282
      %v1432 = vsel %vm1284, %v1431, %v1430
      %v1433 = vperm.slane %v1069, %v1280
      %v1434 = vperm.slane %v1072, %v1282
      %v1435 = vsel %vm1284, %v1434, %v1433
      %v1436 = vperm.slane %v1075, %v1280
      %v1437 = vperm.slane %v1078, %v1282
      %v1438 = vsel %vm1284, %v1437, %v1436
      %v1439 = vperm.slane %v1081, %v1280
      %v1440 = vperm.slane %v1084, %v1282
      %v1441 = vsel %vm1284, %v1440, %v1439
      %v1442 = vperm.slane %v1087, %v1280
      %v1443 = vperm.slane %v1090, %v1282
      %v1444 = vsel %vm1284, %v1443, %v1442
      %v1445 = vperm.slane %v1093, %v1280
      %v1446 = vperm.slane %v1096, %v1282
      %v1447 = vsel %vm1284, %v1446, %v1445
      %v1448 = vperm.slane %v1099, %v1280
      %v1449 = vperm.slane %v1102, %v1282
      %v1450 = vsel %vm1284, %v1449, %v1448
      %v1451 = vperm.slane %v1105, %v1280
      %v1452 = vperm.slane %v1108, %v1282
      %v1453 = vsel %vm1284, %v1452, %v1451
      %v1454 = vperm.slane %v1111, %v1280
      %v1455 = vperm.slane %v1114, %v1282
      %v1456 = vsel %vm1284, %v1455, %v1454
      %v1457 = vperm.slane %v1117, %v1280
      %v1458 = vperm.slane %v1120, %v1282
      %v1459 = vsel %vm1284, %v1458, %v1457
      %v1460 = vperm.slane %v1123, %v1280
      %v1461 = vperm.slane %v1126, %v1282
      %v1462 = vsel %vm1284, %v1461, %v1460
      %v1463 = vperm.slane %v1129, %v1280
      %v1464 = vperm.slane %v1132, %v1282
      %v1465 = vsel %vm1284, %v1464, %v1463
      %v1466 = vperm.slane %v1135, %v1280
      %v1467 = vperm.slane %v1138, %v1282
      %v1468 = vsel %vm1284, %v1467, %v1466
      %v1469 = vperm.slane %v1141, %v1280
      %v1470 = vperm.slane %v1144, %v1282
      %v1471 = vsel %vm1284, %v1470, %v1469
      %v1472 = vperm.slane %v1147, %v1280
      %v1473 = vperm.slane %v1150, %v1282
      %v1474 = vsel %vm1284, %v1473, %v1472
      %vm1475 = vcmask 1041409
      %v1476 = vsel %vm1475, %v1288, %v1285
      %vm1477 = vcmask 1042434
      %v1478 = vsel %vm1477, %v1291, %v1476
      %vm1479 = vcmask 1043459
      %v1480 = vsel %vm1479, %v1294, %v1478
      %vm1481 = vcmask 1044484
      %v1482 = vsel %vm1481, %v1297, %v1480
      %vm1483 = vcmask 1045509
      %v1484 = vsel %vm1483, %v1300, %v1482
      %vm1485 = vcmask 1046534
      %v1486 = vsel %vm1485, %v1303, %v1484
      %vm1487 = vcmask 1047559
      %v1488 = vsel %vm1487, %v1306, %v1486
      %v1489 = vsel %vm1475, %v1312, %v1309
      %v1490 = vsel %vm1477, %v1315, %v1489
      %v1491 = vsel %vm1479, %v1318, %v1490
      %v1492 = vsel %vm1481, %v1321, %v1491
      %v1493 = vsel %vm1483, %v1324, %v1492
      %v1494 = vsel %vm1485, %v1327, %v1493
      %v1495 = vsel %vm1487, %v1330, %v1494
      %v1496 = vsel %vm1475, %v1336, %v1333
      %v1497 = vsel %vm1477, %v1339, %v1496
      %v1498 = vsel %vm1479, %v1342, %v1497
      %v1499 = vsel %vm1481, %v1345, %v1498
      %v1500 = vsel %vm1483, %v1348, %v1499
      %v1501 = vsel %vm1485, %v1351, %v1500
      %v1502 = vsel %vm1487, %v1354, %v1501
      %v1503 = vsel %vm1475, %v1360, %v1357
      %v1504 = vsel %vm1477, %v1363, %v1503
      %v1505 = vsel %vm1479, %v1366, %v1504
      %v1506 = vsel %vm1481, %v1369, %v1505
      %v1507 = vsel %vm1483, %v1372, %v1506
      %v1508 = vsel %vm1485, %v1375, %v1507
      %v1509 = vsel %vm1487, %v1378, %v1508
      %v1510 = vsel %vm1475, %v1384, %v1381
      %v1511 = vsel %vm1477, %v1387, %v1510
      %v1512 = vsel %vm1479, %v1390, %v1511
      %v1513 = vsel %vm1481, %v1393, %v1512
      %v1514 = vsel %vm1483, %v1396, %v1513
      %v1515 = vsel %vm1485, %v1399, %v1514
      %v1516 = vsel %vm1487, %v1402, %v1515
      %v1517 = vsel %vm1475, %v1408, %v1405
      %v1518 = vsel %vm1477, %v1411, %v1517
      %v1519 = vsel %vm1479, %v1414, %v1518
      %v1520 = vsel %vm1481, %v1417, %v1519
      %v1521 = vsel %vm1483, %v1420, %v1520
      %v1522 = vsel %vm1485, %v1423, %v1521
      %v1523 = vsel %vm1487, %v1426, %v1522
      %v1524 = vsel %vm1475, %v1432, %v1429
      %v1525 = vsel %vm1477, %v1435, %v1524
      %v1526 = vsel %vm1479, %v1438, %v1525
      %v1527 = vsel %vm1481, %v1441, %v1526
      %v1528 = vsel %vm1483, %v1444, %v1527
      %v1529 = vsel %vm1485, %v1447, %v1528
      %v1530 = vsel %vm1487, %v1450, %v1529
      %v1531 = vsel %vm1475, %v1456, %v1453
      %v1532 = vsel %vm1477, %v1459, %v1531
      %v1533 = vsel %vm1479, %v1462, %v1532
      %v1534 = vsel %vm1481, %v1465, %v1533
      %v1535 = vsel %vm1483, %v1468, %v1534
      %v1536 = vsel %vm1485, %v1471, %v1535
      %v1537 = vsel %vm1487, %v1474, %v1536
      %1546 = vst.msk [vmem:[%s199] sm:$0xff] %vm766, %v1488
      %1547 = vst.msk [vmem:[%s199 + $0x8] sm:$0xff] %vm766, %v1495
      %1548 = vst.msk [vmem:[%s199 + $0x10] sm:$0xff] %vm766, %v1502
      %1549 = vst.msk [vmem:[%s199 + $0x18] sm:$0xff] %vm766, %v1509
      %1550 = vst.msk [vmem:[%s199 + $0x20] sm:$0xff] %vm766, %v1516
      %1551 = vst.msk [vmem:[%s199 + $0x28] sm:$0xff] %vm766, %v1523
      %1552 = vst.msk [vmem:[%s199 + $0x30] sm:$0xff] %vm766, %v1530
      %1553 = vst.msk [vmem:[%s199 + $0x38] sm:$0xff] %vm766, %v1537
      %s1554 = smul.u32 8, %s15
      %p1555 = scmp.lt.s32.totalorder %s1554, 15
      %s1556 = scalar_select %p1555, %s1554, 15
      %s1557 = smul.addr %s1556, 8
      %s1558 = scalar_lea.vmem %s4, %s1557
      // Predicated region
      $region37: #{lstm_model_forward.5} parent=35 // pred_check
        %p1559 = pneg %p122
      $region38: #{lstm_model_forward.5} parent=35 // pred_check_branch
        %1561 = sbr.rel (%p1559) target = $region40
      $region39: #{lstm_model_forward.5} parent=35 // pred_region
        %s1562 = smul.u32 8, %s15
      $region40: #{lstm_model_forward.5} parent=35 // pred_fallthru
        _
    $region36: #{lstm_model_forward.5} parent=5 // pred_fallthru
      _
    %p1563 = scmp.le.s32.totalorder 2, %s10
    // Predicated region
    $region41: #{lstm_model_forward.5} parent=5 // pred_check
      %p1564 = pneg %p1563
    $region42: #{lstm_model_forward.5} parent=5 // pred_check_branch
      %1566 = sbr.rel (%p1564) target = $region44
    $region43: #{lstm_model_forward.5} parent=5 // pred_region
      %s1567 = ssub.s32 %s10, 2
      // Predicated region
      $region45: #{lstm_model_forward.5} parent=43 // pred_check
        %p1568 = pneg %p128
      $region46: #{lstm_model_forward.5} parent=43 // pred_check_branch
        %1570 = sbr.rel (%p1568) target = $region48
      $region47: #{lstm_model_forward.5} parent=43 // pred_region
        %s1571 = smul.u32 8, %s16
        %p1572 = scmp.lt.s32.totalorder %s1571, 15
        %s1573 = scalar_select %p1572, %s1571, 15
        %s1574 = smul.addr %s1573, 8
        %s1575 = scalar_lea.vmem %s4, %s1574
      $region48: #{lstm_model_forward.5} parent=43 // pred_fallthru
        _
    $region44: #{lstm_model_forward.5} parent=5 // pred_fallthru
      _
  $region6: #{lstm_model_forward.5} parent=0 // loop_footer
    %s14 = sadd.s32 1, %s10
  $region7: #{lstm_model_forward.5} parent=0 // loop_footer_branch
    %9 = sbr.rel target = $region3
  $region8: #{lstm_model_forward.5} parent=0 // loop_exit
    _

</llo_original>
